<compile_context>
chip_gen: v7x
topology: tpu7x:2x2x1
jax: 0.10.0
libtpu: 0.0.40
codegen_flags: <defaults>
</compile_context>

<pallas_src>
import jax
import jax.numpy as jnp
from jax import lax
from jax.experimental import pallas as pl
from jax.experimental.pallas import tpu as pltpu

# --- small synthetic CLIP-text-tower config ---
B = 2            # batch (number of prompts)
L = 8            # context length
D = 32           # transformer width
H = 4            # attention heads
HD = D // H      # head dim
NL = 2           # transformer layers
V = 48           # vocab size
E = 16           # text projection output dim
EP = 128         # lane-dense padded output width (sliced back to E outside)
LN_EPS = 1e-5
NEG = -1e9       # finite additive causal-mask value (no -inf -> no NaN hazard)
DENOM_EPS = 1e-20
MXU_DTYPE = jnp.bfloat16   # MXU operand dtype; stats/accumulation stay fp32


def _layernorm(x, w, b):
    mu = jnp.mean(x, axis=-1, keepdims=True)
    var = jnp.mean(jnp.square(x - mu), axis=-1, keepdims=True)
    return (x - mu) * lax.rsqrt(var + LN_EPS) * w + b


def _quick_gelu(x):
    # CLIP uses QuickGELU: x * sigmoid(1.702 * x)
    return x * jax.nn.sigmoid(1.702 * x)


def _mxu(a, b):
    # bf16 MXU operands, fp32 accumulation.
    return jnp.dot(a.astype(MXU_DTYPE), b.astype(MXU_DTYPE),
                   preferred_element_type=jnp.float32)


def text_encoder_kernel(
    # constant inputs
    x0_ref, sel_ref, hmask_ref, colind_ref, rowind_ref, bias_ref,
    # per-layer parameters, full (NL, ...) stacks (layer loop unrolled below)
    ln1_w_ref, ln1_b_ref,
    qw_ref, qb_ref, kw_ref, kb_ref, vw_ref, vb_ref,
    ow_ref, ob_ref,
    ln2_w_ref, ln2_b_ref, w1_ref, b1_ref, w2_ref, b2_ref,
    # final parameters
    lnf_w_ref, lnf_b_ref, proj_ref,
    # output
    out_ref,
):
    N, HL = B * L, H * L
    scale = 1.0 / (HD ** 0.5)

    x = x0_ref[...]                       # [N, D] fp32 (embedded + positional)
    hmask = hmask_ref[...]                # [HL, D] fp32 block-diag head mask
    bias = bias_ref[...]                  # [L, HL] fp32 additive causal mask
    colind = colind_ref[...]              # [HL, H] bf16 per-head column indicator
    rowind = rowind_ref[...]              # [H, HL] bf16 per-head row indicator

    # Static unroll of the transformer layer loop (NL = 2).
    for layer in range(NL):
        # ---- attention sub-block: x = x + attn(ln_1(x)), causal ----
        h = _layernorm(x, ln1_w_ref[layer], ln1_b_ref[layer])
        q = (_mxu(h, qw_ref[layer]) + qb_ref[layer]).reshape(B, L, D)
        k = (_mxu(h, kw_ref[layer]) + kb_ref[layer]).reshape(B, L, D)
        v = (_mxu(h, vw_ref[layer]) + vb_ref[layer]).reshape(B, L, D)

        # Fused heads: replicate K/V along a (head, key) axis and mask
        # block-diagonally (hmask[(h,m),d] = 1 iff d in head h's slice), so a
        # single batched matmul yields every head's score matrix side by side:
        #   s[b, l, h*L+m] = q_h[b,l] . k_h[b,m]
        # (Fine at D=32; at real D switch to a (B*H, L, HD) head-batched form.)
        k_exp = (jnp.concatenate([k] * H, axis=1) * hmask[None]).astype(MXU_DTYPE)
        v_exp = (jnp.concatenate([v] * H, axis=1) * hmask[None]).astype(MXU_DTYPE)

        s = jnp.einsum('bqd,bkd->bqk', q.astype(MXU_DTYPE), k_exp,
                       preferred_element_type=jnp.float32) * scale   # [B,L,HL]
        s = s + bias[None]                          # causal mask (0 / -1e9)
        s = s - jnp.max(s, axis=-1, keepdims=True)  # row stabiliser (softmax is
        e = jnp.exp(s)                              # shift-invariant per head)
        e_flat = e.reshape(N, HL)

        # Factored per-head denominator (rank-H instead of HL x HL):
        #   head_sum[n,h]   = sum_m e[n,(h,m)]          via [HL,H] indicator
        #   denom[n,(h,m)]  = head_sum[n,h]             via [H,HL] indicator
        head_sum = jnp.dot(e_flat.astype(MXU_DTYPE), colind,
                           preferred_element_type=jnp.float32)        # [N, H]
        denom = jnp.dot(head_sum.astype(MXU_DTYPE), rowind,
                        preferred_element_type=jnp.float32)           # [N, HL]
        p = e_flat * pl.reciprocal(denom + DENOM_EPS, approx=True)    # [N, HL]

        o = jnp.einsum('bqk,bkd->bqd',
                       p.reshape(B, L, HL).astype(MXU_DTYPE), v_exp,
                       preferred_element_type=jnp.float32)            # [B,L,D]
        x = x + _mxu(o.reshape(N, D), ow_ref[layer]) + ob_ref[layer]

        # ---- MLP sub-block: x = x + mlp(ln_2(x)), QuickGELU ----
        h2 = _layernorm(x, ln2_w_ref[layer], ln2_b_ref[layer])
        m = _mxu(h2, w1_ref[layer]) + b1_ref[layer]
        m = _quick_gelu(m)
        x = x + _mxu(m, w2_ref[layer]) + b2_ref[layer]

    # ---- ln_final, EOT gather (one-hot selection matmul), text projection ----
    xf = _layernorm(x, lnf_w_ref[...], lnf_b_ref[...])                 # [N, D]
    pooled = jnp.dot(sel_ref[...], xf, preferred_element_type=jnp.float32)
    out_ref[...] = jnp.dot(pooled, proj_ref[...],
                           preferred_element_type=jnp.float32)         # [B, EP]


def text_encoder(tokens, prm):
    # --- hoisted out of the kernel: embedding gather + pos add, EOT one-hot
    #     selection, and the small constant masks / indicators. ---
    x0 = (prm['tok_emb'][tokens] + prm['pos_emb'][None]).astype(jnp.float32)
    x0 = x0.reshape(B * L, D)                                          # [N, D]
    # EOT pooling assumes EOT has the largest token id (CLIP convention).
    eot = jnp.argmax(tokens, axis=-1)                                  # [B]
    sel = jax.nn.one_hot(jnp.arange(B) * L + eot, B * L,
                         dtype=jnp.float32)                            # [B, N]

    eyeH = jnp.eye(H, dtype=jnp.float32)
    hmask = jnp.kron(eyeH, jnp.ones((L, HD), jnp.float32))             # [HL, D]
    colind = jnp.kron(eyeH, jnp.ones((L, 1), jnp.float32)).astype(MXU_DTYPE)
    rowind = jnp.kron(eyeH, jnp.ones((1, L), jnp.float32)).astype(MXU_DTYPE)
    causal = jnp.tril(jnp.ones((L, L), jnp.float32))
    bias = jnp.tile(jnp.where(causal > 0, 0.0, NEG).astype(jnp.float32),
                    (1, H))                                            # [L, HL]

    proj_pad = jnp.zeros((D, EP), jnp.float32).at[:, :E].set(prm['proj'])

    wdt = MXU_DTYPE   # matmul weights as bf16 MXU operands
    # split the fused qkv weight so each projection is its own [D, D] matmul
    # (no non-128-lane slices of a fused qkv output at D=32).
    qw = prm['qkv_w'][:, :, 0 * D:1 * D].astype(wdt)
    kw = prm['qkv_w'][:, :, 1 * D:2 * D].astype(wdt)
    vw = prm['qkv_w'][:, :, 2 * D:3 * D].astype(wdt)
    qb = prm['qkv_b'][:, None, 0 * D:1 * D]
    kb = prm['qkv_b'][:, None, 1 * D:2 * D]
    vb = prm['qkv_b'][:, None, 2 * D:3 * D]

    args = (
        x0, sel, hmask, colind, rowind, bias,
        prm['ln1_w'][:, None, :], prm['ln1_b'][:, None, :],
        qw, qb, kw, kb, vw, vb,
        prm['attn_ow'].astype(wdt), prm['attn_ob'][:, None, :],
        prm['ln2_w'][:, None, :], prm['ln2_b'][:, None, :],
        prm['mlp_w1'].astype(wdt), prm['mlp_b1'][:, None, :],
        prm['mlp_w2'].astype(wdt), prm['mlp_b2'][:, None, :],
        prm['lnf_w'], prm['lnf_b'], proj_pad,
    )

    def full(a):
        nd = a.ndim
        return pl.BlockSpec(a.shape, lambda i, _nd=nd: (0,) * _nd)

    in_specs = [full(a) for a in args]

    # Single grid step: whole weight stack (~50 KB bf16) lives in VMEM; the
    # layer loop is unrolled inside the kernel.  NOTE: at real CLIP sizes a
    # leading "parallel" batch-tile axis (v7x's two TensorCores) and a trailing
    # "arbitrary" layer-streaming axis would be reintroduced here.
    out = pl.pallas_call(
        text_encoder_kernel,
        out_shape=jax.ShapeDtypeStruct((B, EP), jnp.float32),
        grid=(1,),
        in_specs=in_specs,
        out_specs=pl.BlockSpec((B, EP), lambda i: (0, 0)),
        compiler_params=pltpu.CompilerParams(
            dimension_semantics=("arbitrary",)),
    )(*args)
    return out[:, :E]


def init_params(key):
    ks = jax.random.split(key, 10)
    s = 0.05
    f32 = jnp.float32
    return dict(
        tok_emb=jax.random.normal(ks[0], (V, D), f32) * s,
        pos_emb=jax.random.normal(ks[1], (L, D), f32) * s,
        ln1_w=jnp.ones((NL, D), f32),
        ln1_b=jax.random.normal(ks[2], (NL, D), f32) * 0.01,
        qkv_w=jax.random.normal(ks[3], (NL, D, 3 * D), f32) * s,
        qkv_b=jax.random.normal(ks[4], (NL, 3 * D), f32) * 0.01,
        attn_ow=jax.random.normal(ks[5], (NL, D, D), f32) * s,
        attn_ob=jnp.zeros((NL, D), f32),
        ln2_w=jnp.ones((NL, D), f32),
        ln2_b=jnp.zeros((NL, D), f32),
        mlp_w1=jax.random.normal(ks[6], (NL, D, 4 * D), f32) * s,
        mlp_b1=jnp.zeros((NL, 4 * D), f32),
        mlp_w2=jax.random.normal(ks[7], (NL, 4 * D, D), f32) * s,
        mlp_b2=jnp.zeros((NL, D), f32),
        lnf_w=jnp.ones((1, D), f32),
        lnf_b=jnp.zeros((1, D), f32),
        proj=jax.random.normal(ks[8], (D, E), f32) * s,
    )


def reference(tokens, p):
    """Pure-JAX mirror of the PyTorch TextEncoder forward (need_token=True)."""
    def ln(x, w, b):
        mu = jnp.mean(x, axis=-1, keepdims=True)
        var = jnp.mean(jnp.square(x - mu), axis=-1, keepdims=True)
        return (x - mu) * lax.rsqrt(var + LN_EPS) * w + b

    x = p['tok_emb'][tokens] + p['pos_emb'][None]              # [B, L, D]
    causal = jnp.tril(jnp.ones((L, L), bool))
    for layer in range(NL):
        h = ln(x, p['ln1_w'][layer], p['ln1_b'][layer])
        qkv = h @ p['qkv_w'][layer] + p['qkv_b'][layer]
        q, k, v = jnp.split(qkv, 3, axis=-1)
        def heads(t):
            return t.reshape(B, L, H, HD).transpose(0, 2, 1, 3)
        qh, kh, vh = heads(q), heads(k), heads(v)
        s = jnp.einsum('bhqd,bhkd->bhqk', qh, kh) / (HD ** 0.5)
        s = jnp.where(causal[None, None], s, -jnp.inf)
        a = jax.nn.softmax(s, axis=-1)
        o = jnp.einsum('bhqk,bhkd->bhqd', a, vh)
        o = o.transpose(0, 2, 1, 3).reshape(B, L, D)
        x = x + o @ p['attn_ow'][layer] + p['attn_ob'][layer]
        h2 = ln(x, p['ln2_w'][layer], p['ln2_b'][layer])
        m = h2 @ p['mlp_w1'][layer] + p['mlp_b1'][layer]
        m = m * jax.nn.sigmoid(1.702 * m)
        x = x + m @ p['mlp_w2'][layer] + p['mlp_b2'][layer]
    x = ln(x, p['lnf_w'][0], p['lnf_b'][0])
    eot = jnp.argmax(tokens, axis=-1)
    return x[jnp.arange(B), eot] @ p['proj']


if __name__ == "__main__":
    key = jax.random.PRNGKey(0)
    kp, kt = jax.random.split(key)
    params = init_params(kp)

    # synthetic tokenized prompts: random ids with an EOT token (= V-1, the
    # max id so argmax finds it) placed at a per-prompt position.
    tokens = jax.random.randint(kt, (B, L), 1, V - 1, dtype=jnp.int32)
    eot_pos = jnp.array([5, 3], dtype=jnp.int32)
    tokens = tokens.at[jnp.arange(B), eot_pos].set(V - 1)

    out = jax.block_until_ready(jax.jit(text_encoder)(tokens, params))
    ref = jax.block_until_ready(reference(tokens, params))

    assert out.shape == (B, E) and out.dtype == jnp.float32
    assert jnp.allclose(out, ref, atol=2e-2, rtol=2e-2), (out, ref)
    print("KERNEL_OK")
</pallas_src>

<mosaic_0001>
module attributes {stable_mosaic.version = 11 : i64} {
  func.func @text_encoder_kernel(%arg0: i32, %arg1: memref<16x32xf32, #tpu.memory_space<vmem>>, %arg2: memref<2x16xf32, #tpu.memory_space<vmem>>, %arg3: memref<32x32xf32, #tpu.memory_space<vmem>>, %arg4: memref<32x4xbf16, #tpu.memory_space<vmem>>, %arg5: memref<4x32xbf16, #tpu.memory_space<vmem>>, %arg6: memref<8x32xf32, #tpu.memory_space<vmem>>, %arg7: memref<2x1x32xf32, #tpu.memory_space<vmem>>, %arg8: memref<2x1x32xf32, #tpu.memory_space<vmem>>, %arg9: memref<2x32x32xbf16, #tpu.memory_space<vmem>>, %arg10: memref<2x1x32xf32, #tpu.memory_space<vmem>>, %arg11: memref<2x32x32xbf16, #tpu.memory_space<vmem>>, %arg12: memref<2x1x32xf32, #tpu.memory_space<vmem>>, %arg13: memref<2x32x32xbf16, #tpu.memory_space<vmem>>, %arg14: memref<2x1x32xf32, #tpu.memory_space<vmem>>, %arg15: memref<2x32x32xbf16, #tpu.memory_space<vmem>>, %arg16: memref<2x1x32xf32, #tpu.memory_space<vmem>>, %arg17: memref<2x1x32xf32, #tpu.memory_space<vmem>>, %arg18: memref<2x1x32xf32, #tpu.memory_space<vmem>>, %arg19: memref<2x32x128xbf16, #tpu.memory_space<vmem>>, %arg20: memref<2x1x128xf32, #tpu.memory_space<vmem>>, %arg21: memref<2x128x32xbf16, #tpu.memory_space<vmem>>, %arg22: memref<2x1x32xf32, #tpu.memory_space<vmem>>, %arg23: memref<1x32xf32, #tpu.memory_space<vmem>>, %arg24: memref<1x32xf32, #tpu.memory_space<vmem>>, %arg25: memref<32x128xf32, #tpu.memory_space<vmem>>, %arg26: memref<2x128xf32, #tpu.memory_space<vmem>>) attributes {dimension_semantics = [#tpu.dimension_semantics<arbitrary>], iteration_bounds = array<i64: 1>, scalar_prefetch = 0 : i64, scratch_operands = 0 : i64, tpu.core_type = #tpu.core_type<tc>, window_params = [{pipeline_mode = #tpu.pipeline_mode<synchronous>, transform_indices = @transform_0, window_bounds = array<i64: 16, 32>}, {pipeline_mode = #tpu.pipeline_mode<synchronous>, transform_indices = @transform_1, window_bounds = array<i64: 2, 16>}, {pipeline_mode = #tpu.pipeline_mode<synchronous>, transform_indices = @transform_2, window_bounds = array<i64: 32, 32>}, {pipeline_mode = #tpu.pipeline_mode<synchronous>, transform_indices = @transform_3, window_bounds = array<i64: 32, 4>}, {pipeline_mode = #tpu.pipeline_mode<synchronous>, transform_indices = @transform_4, window_bounds = array<i64: 4, 32>}, {pipeline_mode = #tpu.pipeline_mode<synchronous>, transform_indices = @transform_5, window_bounds = array<i64: 8, 32>}, {pipeline_mode = #tpu.pipeline_mode<synchronous>, transform_indices = @transform_6, window_bounds = array<i64: 2, 1, 32>}, {pipeline_mode = #tpu.pipeline_mode<synchronous>, transform_indices = @transform_7, window_bounds = array<i64: 2, 1, 32>}, {pipeline_mode = #tpu.pipeline_mode<synchronous>, transform_indices = @transform_8, window_bounds = array<i64: 2, 32, 32>}, {pipeline_mode = #tpu.pipeline_mode<synchronous>, transform_indices = @transform_9, window_bounds = array<i64: 2, 1, 32>}, {pipeline_mode = #tpu.pipeline_mode<synchronous>, transform_indices = @transform_10, window_bounds = array<i64: 2, 32, 32>}, {pipeline_mode = #tpu.pipeline_mode<synchronous>, transform_indices = @transform_11, window_bounds = array<i64: 2, 1, 32>}, {pipeline_mode = #tpu.pipeline_mode<synchronous>, transform_indices = @transform_12, window_bounds = array<i64: 2, 32, 32>}, {pipeline_mode = #tpu.pipeline_mode<synchronous>, transform_indices = @transform_13, window_bounds = array<i64: 2, 1, 32>}, {pipeline_mode = #tpu.pipeline_mode<synchronous>, transform_indices = @transform_14, window_bounds = array<i64: 2, 32, 32>}, {pipeline_mode = #tpu.pipeline_mode<synchronous>, transform_indices = @transform_15, window_bounds = array<i64: 2, 1, 32>}, {pipeline_mode = #tpu.pipeline_mode<synchronous>, transform_indices = @transform_16, window_bounds = array<i64: 2, 1, 32>}, {pipeline_mode = #tpu.pipeline_mode<synchronous>, transform_indices = @transform_17, window_bounds = array<i64: 2, 1, 32>}, {pipeline_mode = #tpu.pipeline_mode<synchronous>, transform_indices = @transform_18, window_bounds = array<i64: 2, 32, 128>}, {pipeline_mode = #tpu.pipeline_mode<synchronous>, transform_indices = @transform_19, window_bounds = array<i64: 2, 1, 128>}, {pipeline_mode = #tpu.pipeline_mode<synchronous>, transform_indices = @transform_20, window_bounds = array<i64: 2, 128, 32>}, {pipeline_mode = #tpu.pipeline_mode<synchronous>, transform_indices = @transform_21, window_bounds = array<i64: 2, 1, 32>}, {pipeline_mode = #tpu.pipeline_mode<synchronous>, transform_indices = @transform_22, window_bounds = array<i64: 1, 32>}, {pipeline_mode = #tpu.pipeline_mode<synchronous>, transform_indices = @transform_23, window_bounds = array<i64: 1, 32>}, {pipeline_mode = #tpu.pipeline_mode<synchronous>, transform_indices = @transform_24, window_bounds = array<i64: 32, 128>}, {pipeline_mode = #tpu.pipeline_mode<synchronous>, transform_indices = @transform_25, window_bounds = array<i64: 2, 128>}]} {
    %c0 = arith.constant 0 : index
    %c0_0 = arith.constant 0 : index
    %0 = vector.load %arg1[%c0, %c0_0] : memref<16x32xf32, #tpu.memory_space<vmem>>, vector<16x32xf32>
    %c0_1 = arith.constant 0 : index
    %c0_2 = arith.constant 0 : index
    %1 = vector.load %arg3[%c0_1, %c0_2] : memref<32x32xf32, #tpu.memory_space<vmem>>, vector<32x32xf32>
    %c0_3 = arith.constant 0 : index
    %c0_4 = arith.constant 0 : index
    %2 = vector.load %arg6[%c0_3, %c0_4] : memref<8x32xf32, #tpu.memory_space<vmem>>, vector<8x32xf32>
    %c0_5 = arith.constant 0 : index
    %c0_6 = arith.constant 0 : index
    %3 = vector.load %arg4[%c0_5, %c0_6] : memref<32x4xbf16, #tpu.memory_space<vmem>>, vector<32x4xbf16>
    %c0_7 = arith.constant 0 : index
    %c0_8 = arith.constant 0 : index
    %4 = vector.load %arg5[%c0_7, %c0_8] : memref<4x32xbf16, #tpu.memory_space<vmem>>, vector<4x32xbf16>
    %c0_9 = arith.constant 0 : index
    %c0_10 = arith.constant 0 : index
    %c0_11 = arith.constant 0 : index
    %5 = vector.load %arg7[%c0_9, %c0_10, %c0_11] : memref<2x1x32xf32, #tpu.memory_space<vmem>>, vector<1x1x32xf32>
    %6 = vector.shape_cast %5 : vector<1x1x32xf32> to vector<1x32xf32>
    %c0_12 = arith.constant 0 : index
    %c0_13 = arith.constant 0 : index
    %c0_14 = arith.constant 0 : index
    %7 = vector.load %arg8[%c0_12, %c0_13, %c0_14] : memref<2x1x32xf32, #tpu.memory_space<vmem>>, vector<1x1x32xf32>
    %8 = vector.shape_cast %7 : vector<1x1x32xf32> to vector<1x32xf32>
    %cst = arith.constant dense<0.000000e+00> : vector<16xf32>
    %9 = vector.multi_reduction <add>, %0, %cst [1] : vector<16x32xf32> to vector<16xf32>
    %10 = vector.shape_cast %9 : vector<16xf32> to vector<16x1xf32>
    %cst_15 = arith.constant 3.200000e+01 : f32
    %11 = vector.broadcast %cst_15 : f32 to vector<16x1xf32>
    %12 = arith.divf %10, %11 : vector<16x1xf32>
    %13 = vector.broadcast %12 : vector<16x1xf32> to vector<16x32xf32>
    %14 = arith.subf %0, %13 : vector<16x32xf32>
    %15 = arith.mulf %14, %14 : vector<16x32xf32>
    %cst_16 = arith.constant dense<0.000000e+00> : vector<16xf32>
    %16 = vector.multi_reduction <add>, %15, %cst_16 [1] : vector<16x32xf32> to vector<16xf32>
    %17 = vector.shape_cast %16 : vector<16xf32> to vector<16x1xf32>
    %cst_17 = arith.constant 3.200000e+01 : f32
    %18 = vector.broadcast %cst_17 : f32 to vector<16x1xf32>
    %19 = arith.divf %17, %18 : vector<16x1xf32>
    %20 = vector.broadcast %12 : vector<16x1xf32> to vector<16x32xf32>
    %21 = arith.subf %0, %20 : vector<16x32xf32>
    %cst_18 = arith.constant 9.99999974E-6 : f32
    %22 = vector.broadcast %cst_18 : f32 to vector<16x1xf32>
    %23 = arith.addf %19, %22 : vector<16x1xf32>
    %24 = math.rsqrt %23 : vector<16x1xf32>
    %25 = vector.broadcast %24 : vector<16x1xf32> to vector<16x32xf32>
    %26 = arith.mulf %21, %25 : vector<16x32xf32>
    %27 = vector.broadcast %6 : vector<1x32xf32> to vector<16x32xf32>
    %28 = arith.mulf %26, %27 : vector<16x32xf32>
    %29 = vector.broadcast %8 : vector<1x32xf32> to vector<16x32xf32>
    %30 = arith.addf %28, %29 : vector<16x32xf32>
    %c0_19 = arith.constant 0 : index
    %c0_20 = arith.constant 0 : index
    %c0_21 = arith.constant 0 : index
    %31 = vector.load %arg9[%c0_19, %c0_20, %c0_21] : memref<2x32x32xbf16, #tpu.memory_space<vmem>>, vector<1x32x32xbf16>
    %32 = vector.shape_cast %31 : vector<1x32x32xbf16> to vector<32x32xbf16>
    %33 = arith.truncf %30 : vector<16x32xf32> to vector<16x32xbf16>
    %cst_22 = arith.constant dense<0.000000e+00> : vector<16x32xf32>
    %34 = tpu.matmul %33, %32, %cst_22 {dimension_numbers = #tpu.dot_dimension_numbers<[1], [0], [0], [1], [0, 0, 1, 1], [], []>} : vector<16x32xbf16>, vector<32x32xbf16>, vector<16x32xf32> -> vector<16x32xf32>
    %c0_23 = arith.constant 0 : index
    %c0_24 = arith.constant 0 : index
    %c0_25 = arith.constant 0 : index
    %35 = vector.load %arg10[%c0_23, %c0_24, %c0_25] : memref<2x1x32xf32, #tpu.memory_space<vmem>>, vector<1x1x32xf32>
    %36 = vector.shape_cast %35 : vector<1x1x32xf32> to vector<1x32xf32>
    %37 = vector.broadcast %36 : vector<1x32xf32> to vector<16x32xf32>
    %38 = arith.addf %34, %37 : vector<16x32xf32>
    %39 = vector.shape_cast %38 : vector<16x32xf32> to vector<2x8x32xf32>
    %c0_26 = arith.constant 0 : index
    %c0_27 = arith.constant 0 : index
    %c0_28 = arith.constant 0 : index
    %40 = vector.load %arg11[%c0_26, %c0_27, %c0_28] : memref<2x32x32xbf16, #tpu.memory_space<vmem>>, vector<1x32x32xbf16>
    %41 = vector.shape_cast %40 : vector<1x32x32xbf16> to vector<32x32xbf16>
    %42 = arith.truncf %30 : vector<16x32xf32> to vector<16x32xbf16>
    %cst_29 = arith.constant dense<0.000000e+00> : vector<16x32xf32>
    %43 = tpu.matmul %42, %41, %cst_29 {dimension_numbers = #tpu.dot_dimension_numbers<[1], [0], [0], [1], [0, 0, 1, 1], [], []>} : vector<16x32xbf16>, vector<32x32xbf16>, vector<16x32xf32> -> vector<16x32xf32>
    %c0_30 = arith.constant 0 : index
    %c0_31 = arith.constant 0 : index
    %c0_32 = arith.constant 0 : index
    %44 = vector.load %arg12[%c0_30, %c0_31, %c0_32] : memref<2x1x32xf32, #tpu.memory_space<vmem>>, vector<1x1x32xf32>
    %45 = vector.shape_cast %44 : vector<1x1x32xf32> to vector<1x32xf32>
    %46 = vector.broadcast %45 : vector<1x32xf32> to vector<16x32xf32>
    %47 = arith.addf %43, %46 : vector<16x32xf32>
    %48 = vector.shape_cast %47 : vector<16x32xf32> to vector<2x8x32xf32>
    %c0_33 = arith.constant 0 : index
    %c0_34 = arith.constant 0 : index
    %c0_35 = arith.constant 0 : index
    %49 = vector.load %arg13[%c0_33, %c0_34, %c0_35] : memref<2x32x32xbf16, #tpu.memory_space<vmem>>, vector<1x32x32xbf16>
    %50 = vector.shape_cast %49 : vector<1x32x32xbf16> to vector<32x32xbf16>
    %51 = arith.truncf %30 : vector<16x32xf32> to vector<16x32xbf16>
    %cst_36 = arith.constant dense<0.000000e+00> : vector<16x32xf32>
    %52 = tpu.matmul %51, %50, %cst_36 {dimension_numbers = #tpu.dot_dimension_numbers<[1], [0], [0], [1], [0, 0, 1, 1], [], []>} : vector<16x32xbf16>, vector<32x32xbf16>, vector<16x32xf32> -> vector<16x32xf32>
    %c0_37 = arith.constant 0 : index
    %c0_38 = arith.constant 0 : index
    %c0_39 = arith.constant 0 : index
    %53 = vector.load %arg14[%c0_37, %c0_38, %c0_39] : memref<2x1x32xf32, #tpu.memory_space<vmem>>, vector<1x1x32xf32>
    %54 = vector.shape_cast %53 : vector<1x1x32xf32> to vector<1x32xf32>
    %55 = vector.broadcast %54 : vector<1x32xf32> to vector<16x32xf32>
    %56 = arith.addf %52, %55 : vector<16x32xf32>
    %57 = vector.shape_cast %56 : vector<16x32xf32> to vector<2x8x32xf32>
    %58 = tpu.concatenate %48, %48, %48, %48 in 1 : vector<2x8x32xf32>, vector<2x8x32xf32>, vector<2x8x32xf32>, vector<2x8x32xf32> -> vector<2x32x32xf32>
    %59 = vector.shape_cast %1 : vector<32x32xf32> to vector<1x32x32xf32>
    %60 = vector.broadcast %59 : vector<1x32x32xf32> to vector<2x32x32xf32>
    %61 = arith.mulf %58, %60 : vector<2x32x32xf32>
    %62 = arith.truncf %61 : vector<2x32x32xf32> to vector<2x32x32xbf16>
    %63 = tpu.concatenate %57, %57, %57, %57 in 1 : vector<2x8x32xf32>, vector<2x8x32xf32>, vector<2x8x32xf32>, vector<2x8x32xf32> -> vector<2x32x32xf32>
    %64 = vector.shape_cast %1 : vector<32x32xf32> to vector<1x32x32xf32>
    %65 = vector.broadcast %64 : vector<1x32x32xf32> to vector<2x32x32xf32>
    %66 = arith.mulf %63, %65 : vector<2x32x32xf32>
    %67 = arith.truncf %66 : vector<2x32x32xf32> to vector<2x32x32xbf16>
    %68 = arith.truncf %39 : vector<2x8x32xf32> to vector<2x8x32xbf16>
    "tpu.trace_start"() <{level = 10 : i32, message = "bqd,bkd->bqk"}> : () -> ()
    %cst_40 = arith.constant dense<0.000000e+00> : vector<2x8x32xf32>
    %69 = tpu.matmul %68, %62, %cst_40 {dimension_numbers = #tpu.dot_dimension_numbers<[2], [2], [1], [1], [0, 0, 0, 1, 1, 1], [0], [0]>} : vector<2x8x32xbf16>, vector<2x32x32xbf16>, vector<2x8x32xf32> -> vector<2x8x32xf32>
    "tpu.trace_stop"() : () -> ()
    %cst_41 = arith.constant 0.353553385 : f32
    %70 = vector.broadcast %cst_41 : f32 to vector<2x8x32xf32>
    %71 = arith.mulf %69, %70 : vector<2x8x32xf32>
    %72 = vector.shape_cast %2 : vector<8x32xf32> to vector<1x8x32xf32>
    %73 = vector.broadcast %72 : vector<1x8x32xf32> to vector<2x8x32xf32>
    %74 = arith.addf %71, %73 : vector<2x8x32xf32>
    %cst_42 = arith.constant dense<0xFF800000> : vector<2x8xf32>
    %75 = vector.multi_reduction <maximumf>, %74, %cst_42 [2] : vector<2x8x32xf32> to vector<2x8xf32>
    %76 = vector.shape_cast %75 : vector<2x8xf32> to vector<2x8x1xf32>
    %77 = vector.broadcast %76 : vector<2x8x1xf32> to vector<2x8x32xf32>
    %78 = arith.subf %74, %77 : vector<2x8x32xf32>
    %79 = math.exp %78 : vector<2x8x32xf32>
    %80 = vector.shape_cast %79 : vector<2x8x32xf32> to vector<16x32xf32>
    %81 = arith.truncf %80 : vector<16x32xf32> to vector<16x32xbf16>
    %cst_43 = arith.constant dense<0.000000e+00> : vector<16x4xf32>
    %82 = tpu.matmul %81, %3, %cst_43 {dimension_numbers = #tpu.dot_dimension_numbers<[1], [0], [0], [1], [0, 0, 1, 1], [], []>} : vector<16x32xbf16>, vector<32x4xbf16>, vector<16x4xf32> -> vector<16x4xf32>
    %83 = arith.truncf %82 : vector<16x4xf32> to vector<16x4xbf16>
    %cst_44 = arith.constant dense<0.000000e+00> : vector<16x32xf32>
    %84 = tpu.matmul %83, %4, %cst_44 {dimension_numbers = #tpu.dot_dimension_numbers<[1], [0], [0], [1], [0, 0, 1, 1], [], []>} : vector<16x4xbf16>, vector<4x32xbf16>, vector<16x32xf32> -> vector<16x32xf32>
    %cst_45 = arith.constant 9.99999968E-21 : f32
    %85 = vector.broadcast %cst_45 : f32 to vector<16x32xf32>
    %86 = arith.addf %84, %85 : vector<16x32xf32>
    %87 = tpu.reciprocal %86 {approx = true} : vector<16x32xf32> -> vector<16x32xf32>
    %88 = arith.mulf %80, %87 : vector<16x32xf32>
    %89 = vector.shape_cast %88 : vector<16x32xf32> to vector<2x8x32xf32>
    %90 = arith.truncf %89 : vector<2x8x32xf32> to vector<2x8x32xbf16>
    "tpu.trace_start"() <{level = 10 : i32, message = "bqk,bkd->bqd"}> : () -> ()
    %cst_46 = arith.constant dense<0.000000e+00> : vector<2x8x32xf32>
    %91 = tpu.matmul %90, %67, %cst_46 {dimension_numbers = #tpu.dot_dimension_numbers<[2], [1], [1], [2], [0, 0, 0, 1, 1, 2], [0], [0]>} : vector<2x8x32xbf16>, vector<2x32x32xbf16>, vector<2x8x32xf32> -> vector<2x8x32xf32>
    "tpu.trace_stop"() : () -> ()
    %92 = vector.shape_cast %91 : vector<2x8x32xf32> to vector<16x32xf32>
    %c0_47 = arith.constant 0 : index
    %c0_48 = arith.constant 0 : index
    %c0_49 = arith.constant 0 : index
    %93 = vector.load %arg15[%c0_47, %c0_48, %c0_49] : memref<2x32x32xbf16, #tpu.memory_space<vmem>>, vector<1x32x32xbf16>
    %94 = vector.shape_cast %93 : vector<1x32x32xbf16> to vector<32x32xbf16>
    %95 = arith.truncf %92 : vector<16x32xf32> to vector<16x32xbf16>
    %cst_50 = arith.constant dense<0.000000e+00> : vector<16x32xf32>
    %96 = tpu.matmul %95, %94, %cst_50 {dimension_numbers = #tpu.dot_dimension_numbers<[1], [0], [0], [1], [0, 0, 1, 1], [], []>} : vector<16x32xbf16>, vector<32x32xbf16>, vector<16x32xf32> -> vector<16x32xf32>
    %97 = arith.addf %0, %96 : vector<16x32xf32>
    %c0_51 = arith.constant 0 : index
    %c0_52 = arith.constant 0 : index
    %c0_53 = arith.constant 0 : index
    %98 = vector.load %arg16[%c0_51, %c0_52, %c0_53] : memref<2x1x32xf32, #tpu.memory_space<vmem>>, vector<1x1x32xf32>
    %99 = vector.shape_cast %98 : vector<1x1x32xf32> to vector<1x32xf32>
    %100 = vector.broadcast %99 : vector<1x32xf32> to vector<16x32xf32>
    %101 = arith.addf %97, %100 : vector<16x32xf32>
    %c0_54 = arith.constant 0 : index
    %c0_55 = arith.constant 0 : index
    %c0_56 = arith.constant 0 : index
    %102 = vector.load %arg17[%c0_54, %c0_55, %c0_56] : memref<2x1x32xf32, #tpu.memory_space<vmem>>, vector<1x1x32xf32>
    %103 = vector.shape_cast %102 : vector<1x1x32xf32> to vector<1x32xf32>
    %c0_57 = arith.constant 0 : index
    %c0_58 = arith.constant 0 : index
    %c0_59 = arith.constant 0 : index
    %104 = vector.load %arg18[%c0_57, %c0_58, %c0_59] : memref<2x1x32xf32, #tpu.memory_space<vmem>>, vector<1x1x32xf32>
    %105 = vector.shape_cast %104 : vector<1x1x32xf32> to vector<1x32xf32>
    %cst_60 = arith.constant dense<0.000000e+00> : vector<16xf32>
    %106 = vector.multi_reduction <add>, %101, %cst_60 [1] : vector<16x32xf32> to vector<16xf32>
    %107 = vector.shape_cast %106 : vector<16xf32> to vector<16x1xf32>
    %cst_61 = arith.constant 3.200000e+01 : f32
    %108 = vector.broadcast %cst_61 : f32 to vector<16x1xf32>
    %109 = arith.divf %107, %108 : vector<16x1xf32>
    %110 = vector.broadcast %109 : vector<16x1xf32> to vector<16x32xf32>
    %111 = arith.subf %101, %110 : vector<16x32xf32>
    %112 = arith.mulf %111, %111 : vector<16x32xf32>
    %cst_62 = arith.constant dense<0.000000e+00> : vector<16xf32>
    %113 = vector.multi_reduction <add>, %112, %cst_62 [1] : vector<16x32xf32> to vector<16xf32>
    %114 = vector.shape_cast %113 : vector<16xf32> to vector<16x1xf32>
    %cst_63 = arith.constant 3.200000e+01 : f32
    %115 = vector.broadcast %cst_63 : f32 to vector<16x1xf32>
    %116 = arith.divf %114, %115 : vector<16x1xf32>
    %117 = vector.broadcast %109 : vector<16x1xf32> to vector<16x32xf32>
    %118 = arith.subf %101, %117 : vector<16x32xf32>
    %cst_64 = arith.constant 9.99999974E-6 : f32
    %119 = vector.broadcast %cst_64 : f32 to vector<16x1xf32>
    %120 = arith.addf %116, %119 : vector<16x1xf32>
    %121 = math.rsqrt %120 : vector<16x1xf32>
    %122 = vector.broadcast %121 : vector<16x1xf32> to vector<16x32xf32>
    %123 = arith.mulf %118, %122 : vector<16x32xf32>
    %124 = vector.broadcast %103 : vector<1x32xf32> to vector<16x32xf32>
    %125 = arith.mulf %123, %124 : vector<16x32xf32>
    %126 = vector.broadcast %105 : vector<1x32xf32> to vector<16x32xf32>
    %127 = arith.addf %125, %126 : vector<16x32xf32>
    %c0_65 = arith.constant 0 : index
    %c0_66 = arith.constant 0 : index
    %c0_67 = arith.constant 0 : index
    %128 = vector.load %arg19[%c0_65, %c0_66, %c0_67] : memref<2x32x128xbf16, #tpu.memory_space<vmem>>, vector<1x32x128xbf16>
    %129 = vector.shape_cast %128 : vector<1x32x128xbf16> to vector<32x128xbf16>
    %130 = arith.truncf %127 : vector<16x32xf32> to vector<16x32xbf16>
    %cst_68 = arith.constant dense<0.000000e+00> : vector<16x128xf32>
    %131 = tpu.matmul %130, %129, %cst_68 {dimension_numbers = #tpu.dot_dimension_numbers<[1], [0], [0], [1], [0, 0, 1, 1], [], []>} : vector<16x32xbf16>, vector<32x128xbf16>, vector<16x128xf32> -> vector<16x128xf32>
    %c0_69 = arith.constant 0 : index
    %c0_70 = arith.constant 0 : index
    %c0_71 = arith.constant 0 : index
    %132 = vector.load %arg20[%c0_69, %c0_70, %c0_71] : memref<2x1x128xf32, #tpu.memory_space<vmem>>, vector<1x1x128xf32>
    %133 = vector.shape_cast %132 : vector<1x1x128xf32> to vector<1x128xf32>
    %134 = vector.broadcast %133 : vector<1x128xf32> to vector<16x128xf32>
    %135 = arith.addf %131, %134 : vector<16x128xf32>
    %cst_72 = arith.constant 1.702000e+00 : f32
    %136 = vector.broadcast %cst_72 : f32 to vector<16x128xf32>
    %137 = arith.mulf %136, %135 : vector<16x128xf32>
    %138 = arith.negf %137 : vector<16x128xf32>
    %139 = math.exp %138 : vector<16x128xf32>
    %cst_73 = arith.constant 1.000000e+00 : f32
    %140 = vector.broadcast %cst_73 : f32 to vector<16x128xf32>
    %141 = arith.addf %140, %139 : vector<16x128xf32>
    %142 = arith.divf %140, %141 : vector<16x128xf32>
    %143 = arith.mulf %135, %142 : vector<16x128xf32>
    %c0_74 = arith.constant 0 : index
    %c0_75 = arith.constant 0 : index
    %c0_76 = arith.constant 0 : index
    %144 = vector.load %arg21[%c0_74, %c0_75, %c0_76] : memref<2x128x32xbf16, #tpu.memory_space<vmem>>, vector<1x128x32xbf16>
    %145 = vector.shape_cast %144 : vector<1x128x32xbf16> to vector<128x32xbf16>
    %146 = arith.truncf %143 : vector<16x128xf32> to vector<16x128xbf16>
    %cst_77 = arith.constant dense<0.000000e+00> : vector<16x32xf32>
    %147 = tpu.matmul %146, %145, %cst_77 {dimension_numbers = #tpu.dot_dimension_numbers<[1], [0], [0], [1], [0, 0, 1, 1], [], []>} : vector<16x128xbf16>, vector<128x32xbf16>, vector<16x32xf32> -> vector<16x32xf32>
    %148 = arith.addf %101, %147 : vector<16x32xf32>
    %c0_78 = arith.constant 0 : index
    %c0_79 = arith.constant 0 : index
    %c0_80 = arith.constant 0 : index
    %149 = vector.load %arg22[%c0_78, %c0_79, %c0_80] : memref<2x1x32xf32, #tpu.memory_space<vmem>>, vector<1x1x32xf32>
    %150 = vector.shape_cast %149 : vector<1x1x32xf32> to vector<1x32xf32>
    %151 = vector.broadcast %150 : vector<1x32xf32> to vector<16x32xf32>
    %152 = arith.addf %148, %151 : vector<16x32xf32>
    %c1 = arith.constant 1 : index
    %c0_81 = arith.constant 0 : index
    %c0_82 = arith.constant 0 : index
    %153 = vector.load %arg7[%c1, %c0_81, %c0_82] : memref<2x1x32xf32, #tpu.memory_space<vmem>>, vector<1x1x32xf32>
    %154 = vector.shape_cast %153 : vector<1x1x32xf32> to vector<1x32xf32>
    %c1_83 = arith.constant 1 : index
    %c0_84 = arith.constant 0 : index
    %c0_85 = arith.constant 0 : index
    %155 = vector.load %arg8[%c1_83, %c0_84, %c0_85] : memref<2x1x32xf32, #tpu.memory_space<vmem>>, vector<1x1x32xf32>
    %156 = vector.shape_cast %155 : vector<1x1x32xf32> to vector<1x32xf32>
    %cst_86 = arith.constant dense<0.000000e+00> : vector<16xf32>
    %157 = vector.multi_reduction <add>, %152, %cst_86 [1] : vector<16x32xf32> to vector<16xf32>
    %158 = vector.shape_cast %157 : vector<16xf32> to vector<16x1xf32>
    %cst_87 = arith.constant 3.200000e+01 : f32
    %159 = vector.broadcast %cst_87 : f32 to vector<16x1xf32>
    %160 = arith.divf %158, %159 : vector<16x1xf32>
    %161 = vector.broadcast %160 : vector<16x1xf32> to vector<16x32xf32>
    %162 = arith.subf %152, %161 : vector<16x32xf32>
    %163 = arith.mulf %162, %162 : vector<16x32xf32>
    %cst_88 = arith.constant dense<0.000000e+00> : vector<16xf32>
    %164 = vector.multi_reduction <add>, %163, %cst_88 [1] : vector<16x32xf32> to vector<16xf32>
    %165 = vector.shape_cast %164 : vector<16xf32> to vector<16x1xf32>
    %cst_89 = arith.constant 3.200000e+01 : f32
    %166 = vector.broadcast %cst_89 : f32 to vector<16x1xf32>
    %167 = arith.divf %165, %166 : vector<16x1xf32>
    %168 = vector.broadcast %160 : vector<16x1xf32> to vector<16x32xf32>
    %169 = arith.subf %152, %168 : vector<16x32xf32>
    %cst_90 = arith.constant 9.99999974E-6 : f32
    %170 = vector.broadcast %cst_90 : f32 to vector<16x1xf32>
    %171 = arith.addf %167, %170 : vector<16x1xf32>
    %172 = math.rsqrt %171 : vector<16x1xf32>
    %173 = vector.broadcast %172 : vector<16x1xf32> to vector<16x32xf32>
    %174 = arith.mulf %169, %173 : vector<16x32xf32>
    %175 = vector.broadcast %154 : vector<1x32xf32> to vector<16x32xf32>
    %176 = arith.mulf %174, %175 : vector<16x32xf32>
    %177 = vector.broadcast %156 : vector<1x32xf32> to vector<16x32xf32>
    %178 = arith.addf %176, %177 : vector<16x32xf32>
    %c1_91 = arith.constant 1 : index
    %c0_92 = arith.constant 0 : index
    %c0_93 = arith.constant 0 : index
    %179 = vector.load %arg9[%c1_91, %c0_92, %c0_93] : memref<2x32x32xbf16, #tpu.memory_space<vmem>>, vector<1x32x32xbf16>
    %180 = vector.shape_cast %179 : vector<1x32x32xbf16> to vector<32x32xbf16>
    %181 = arith.truncf %178 : vector<16x32xf32> to vector<16x32xbf16>
    %cst_94 = arith.constant dense<0.000000e+00> : vector<16x32xf32>
    %182 = tpu.matmul %181, %180, %cst_94 {dimension_numbers = #tpu.dot_dimension_numbers<[1], [0], [0], [1], [0, 0, 1, 1], [], []>} : vector<16x32xbf16>, vector<32x32xbf16>, vector<16x32xf32> -> vector<16x32xf32>
    %c1_95 = arith.constant 1 : index
    %c0_96 = arith.constant 0 : index
    %c0_97 = arith.constant 0 : index
    %183 = vector.load %arg10[%c1_95, %c0_96, %c0_97] : memref<2x1x32xf32, #tpu.memory_space<vmem>>, vector<1x1x32xf32>
    %184 = vector.shape_cast %183 : vector<1x1x32xf32> to vector<1x32xf32>
    %185 = vector.broadcast %184 : vector<1x32xf32> to vector<16x32xf32>
    %186 = arith.addf %182, %185 : vector<16x32xf32>
    %187 = vector.shape_cast %186 : vector<16x32xf32> to vector<2x8x32xf32>
    %c1_98 = arith.constant 1 : index
    %c0_99 = arith.constant 0 : index
    %c0_100 = arith.constant 0 : index
    %188 = vector.load %arg11[%c1_98, %c0_99, %c0_100] : memref<2x32x32xbf16, #tpu.memory_space<vmem>>, vector<1x32x32xbf16>
    %189 = vector.shape_cast %188 : vector<1x32x32xbf16> to vector<32x32xbf16>
    %190 = arith.truncf %178 : vector<16x32xf32> to vector<16x32xbf16>
    %cst_101 = arith.constant dense<0.000000e+00> : vector<16x32xf32>
    %191 = tpu.matmul %190, %189, %cst_101 {dimension_numbers = #tpu.dot_dimension_numbers<[1], [0], [0], [1], [0, 0, 1, 1], [], []>} : vector<16x32xbf16>, vector<32x32xbf16>, vector<16x32xf32> -> vector<16x32xf32>
    %c1_102 = arith.constant 1 : index
    %c0_103 = arith.constant 0 : index
    %c0_104 = arith.constant 0 : index
    %192 = vector.load %arg12[%c1_102, %c0_103, %c0_104] : memref<2x1x32xf32, #tpu.memory_space<vmem>>, vector<1x1x32xf32>
    %193 = vector.shape_cast %192 : vector<1x1x32xf32> to vector<1x32xf32>
    %194 = vector.broadcast %193 : vector<1x32xf32> to vector<16x32xf32>
    %195 = arith.addf %191, %194 : vector<16x32xf32>
    %196 = vector.shape_cast %195 : vector<16x32xf32> to vector<2x8x32xf32>
    %c1_105 = arith.constant 1 : index
    %c0_106 = arith.constant 0 : index
    %c0_107 = arith.constant 0 : index
    %197 = vector.load %arg13[%c1_105, %c0_106, %c0_107] : memref<2x32x32xbf16, #tpu.memory_space<vmem>>, vector<1x32x32xbf16>
    %198 = vector.shape_cast %197 : vector<1x32x32xbf16> to vector<32x32xbf16>
    %199 = arith.truncf %178 : vector<16x32xf32> to vector<16x32xbf16>
    %cst_108 = arith.constant dense<0.000000e+00> : vector<16x32xf32>
    %200 = tpu.matmul %199, %198, %cst_108 {dimension_numbers = #tpu.dot_dimension_numbers<[1], [0], [0], [1], [0, 0, 1, 1], [], []>} : vector<16x32xbf16>, vector<32x32xbf16>, vector<16x32xf32> -> vector<16x32xf32>
    %c1_109 = arith.constant 1 : index
    %c0_110 = arith.constant 0 : index
    %c0_111 = arith.constant 0 : index
    %201 = vector.load %arg14[%c1_109, %c0_110, %c0_111] : memref<2x1x32xf32, #tpu.memory_space<vmem>>, vector<1x1x32xf32>
    %202 = vector.shape_cast %201 : vector<1x1x32xf32> to vector<1x32xf32>
    %203 = vector.broadcast %202 : vector<1x32xf32> to vector<16x32xf32>
    %204 = arith.addf %200, %203 : vector<16x32xf32>
    %205 = vector.shape_cast %204 : vector<16x32xf32> to vector<2x8x32xf32>
    %206 = tpu.concatenate %196, %196, %196, %196 in 1 : vector<2x8x32xf32>, vector<2x8x32xf32>, vector<2x8x32xf32>, vector<2x8x32xf32> -> vector<2x32x32xf32>
    %207 = vector.shape_cast %1 : vector<32x32xf32> to vector<1x32x32xf32>
    %208 = vector.broadcast %207 : vector<1x32x32xf32> to vector<2x32x32xf32>
    %209 = arith.mulf %206, %208 : vector<2x32x32xf32>
    %210 = arith.truncf %209 : vector<2x32x32xf32> to vector<2x32x32xbf16>
    %211 = tpu.concatenate %205, %205, %205, %205 in 1 : vector<2x8x32xf32>, vector<2x8x32xf32>, vector<2x8x32xf32>, vector<2x8x32xf32> -> vector<2x32x32xf32>
    %212 = vector.shape_cast %1 : vector<32x32xf32> to vector<1x32x32xf32>
    %213 = vector.broadcast %212 : vector<1x32x32xf32> to vector<2x32x32xf32>
    %214 = arith.mulf %211, %213 : vector<2x32x32xf32>
    %215 = arith.truncf %214 : vector<2x32x32xf32> to vector<2x32x32xbf16>
    %216 = arith.truncf %187 : vector<2x8x32xf32> to vector<2x8x32xbf16>
    "tpu.trace_start"() <{level = 10 : i32, message = "bqd,bkd->bqk"}> : () -> ()
    %cst_112 = arith.constant dense<0.000000e+00> : vector<2x8x32xf32>
    %217 = tpu.matmul %216, %210, %cst_112 {dimension_numbers = #tpu.dot_dimension_numbers<[2], [2], [1], [1], [0, 0, 0, 1, 1, 1], [0], [0]>} : vector<2x8x32xbf16>, vector<2x32x32xbf16>, vector<2x8x32xf32> -> vector<2x8x32xf32>
    "tpu.trace_stop"() : () -> ()
    %cst_113 = arith.constant 0.353553385 : f32
    %218 = vector.broadcast %cst_113 : f32 to vector<2x8x32xf32>
    %219 = arith.mulf %217, %218 : vector<2x8x32xf32>
    %220 = vector.shape_cast %2 : vector<8x32xf32> to vector<1x8x32xf32>
    %221 = vector.broadcast %220 : vector<1x8x32xf32> to vector<2x8x32xf32>
    %222 = arith.addf %219, %221 : vector<2x8x32xf32>
    %cst_114 = arith.constant dense<0xFF800000> : vector<2x8xf32>
    %223 = vector.multi_reduction <maximumf>, %222, %cst_114 [2] : vector<2x8x32xf32> to vector<2x8xf32>
    %224 = vector.shape_cast %223 : vector<2x8xf32> to vector<2x8x1xf32>
    %225 = vector.broadcast %224 : vector<2x8x1xf32> to vector<2x8x32xf32>
    %226 = arith.subf %222, %225 : vector<2x8x32xf32>
    %227 = math.exp %226 : vector<2x8x32xf32>
    %228 = vector.shape_cast %227 : vector<2x8x32xf32> to vector<16x32xf32>
    %229 = arith.truncf %228 : vector<16x32xf32> to vector<16x32xbf16>
    %cst_115 = arith.constant dense<0.000000e+00> : vector<16x4xf32>
    %230 = tpu.matmul %229, %3, %cst_115 {dimension_numbers = #tpu.dot_dimension_numbers<[1], [0], [0], [1], [0, 0, 1, 1], [], []>} : vector<16x32xbf16>, vector<32x4xbf16>, vector<16x4xf32> -> vector<16x4xf32>
    %231 = arith.truncf %230 : vector<16x4xf32> to vector<16x4xbf16>
    %cst_116 = arith.constant dense<0.000000e+00> : vector<16x32xf32>
    %232 = tpu.matmul %231, %4, %cst_116 {dimension_numbers = #tpu.dot_dimension_numbers<[1], [0], [0], [1], [0, 0, 1, 1], [], []>} : vector<16x4xbf16>, vector<4x32xbf16>, vector<16x32xf32> -> vector<16x32xf32>
    %cst_117 = arith.constant 9.99999968E-21 : f32
    %233 = vector.broadcast %cst_117 : f32 to vector<16x32xf32>
    %234 = arith.addf %232, %233 : vector<16x32xf32>
    %235 = tpu.reciprocal %234 {approx = true} : vector<16x32xf32> -> vector<16x32xf32>
    %236 = arith.mulf %228, %235 : vector<16x32xf32>
    %237 = vector.shape_cast %236 : vector<16x32xf32> to vector<2x8x32xf32>
    %238 = arith.truncf %237 : vector<2x8x32xf32> to vector<2x8x32xbf16>
    "tpu.trace_start"() <{level = 10 : i32, message = "bqk,bkd->bqd"}> : () -> ()
    %cst_118 = arith.constant dense<0.000000e+00> : vector<2x8x32xf32>
    %239 = tpu.matmul %238, %215, %cst_118 {dimension_numbers = #tpu.dot_dimension_numbers<[2], [1], [1], [2], [0, 0, 0, 1, 1, 2], [0], [0]>} : vector<2x8x32xbf16>, vector<2x32x32xbf16>, vector<2x8x32xf32> -> vector<2x8x32xf32>
    "tpu.trace_stop"() : () -> ()
    %240 = vector.shape_cast %239 : vector<2x8x32xf32> to vector<16x32xf32>
    %c1_119 = arith.constant 1 : index
    %c0_120 = arith.constant 0 : index
    %c0_121 = arith.constant 0 : index
    %241 = vector.load %arg15[%c1_119, %c0_120, %c0_121] : memref<2x32x32xbf16, #tpu.memory_space<vmem>>, vector<1x32x32xbf16>
    %242 = vector.shape_cast %241 : vector<1x32x32xbf16> to vector<32x32xbf16>
    %243 = arith.truncf %240 : vector<16x32xf32> to vector<16x32xbf16>
    %cst_122 = arith.constant dense<0.000000e+00> : vector<16x32xf32>
    %244 = tpu.matmul %243, %242, %cst_122 {dimension_numbers = #tpu.dot_dimension_numbers<[1], [0], [0], [1], [0, 0, 1, 1], [], []>} : vector<16x32xbf16>, vector<32x32xbf16>, vector<16x32xf32> -> vector<16x32xf32>
    %245 = arith.addf %152, %244 : vector<16x32xf32>
    %c1_123 = arith.constant 1 : index
    %c0_124 = arith.constant 0 : index
    %c0_125 = arith.constant 0 : index
    %246 = vector.load %arg16[%c1_123, %c0_124, %c0_125] : memref<2x1x32xf32, #tpu.memory_space<vmem>>, vector<1x1x32xf32>
    %247 = vector.shape_cast %246 : vector<1x1x32xf32> to vector<1x32xf32>
    %248 = vector.broadcast %247 : vector<1x32xf32> to vector<16x32xf32>
    %249 = arith.addf %245, %248 : vector<16x32xf32>
    %c1_126 = arith.constant 1 : index
    %c0_127 = arith.constant 0 : index
    %c0_128 = arith.constant 0 : index
    %250 = vector.load %arg17[%c1_126, %c0_127, %c0_128] : memref<2x1x32xf32, #tpu.memory_space<vmem>>, vector<1x1x32xf32>
    %251 = vector.shape_cast %250 : vector<1x1x32xf32> to vector<1x32xf32>
    %c1_129 = arith.constant 1 : index
    %c0_130 = arith.constant 0 : index
    %c0_131 = arith.constant 0 : index
    %252 = vector.load %arg18[%c1_129, %c0_130, %c0_131] : memref<2x1x32xf32, #tpu.memory_space<vmem>>, vector<1x1x32xf32>
    %253 = vector.shape_cast %252 : vector<1x1x32xf32> to vector<1x32xf32>
    %cst_132 = arith.constant dense<0.000000e+00> : vector<16xf32>
    %254 = vector.multi_reduction <add>, %249, %cst_132 [1] : vector<16x32xf32> to vector<16xf32>
    %255 = vector.shape_cast %254 : vector<16xf32> to vector<16x1xf32>
    %cst_133 = arith.constant 3.200000e+01 : f32
    %256 = vector.broadcast %cst_133 : f32 to vector<16x1xf32>
    %257 = arith.divf %255, %256 : vector<16x1xf32>
    %258 = vector.broadcast %257 : vector<16x1xf32> to vector<16x32xf32>
    %259 = arith.subf %249, %258 : vector<16x32xf32>
    %260 = arith.mulf %259, %259 : vector<16x32xf32>
    %cst_134 = arith.constant dense<0.000000e+00> : vector<16xf32>
    %261 = vector.multi_reduction <add>, %260, %cst_134 [1] : vector<16x32xf32> to vector<16xf32>
    %262 = vector.shape_cast %261 : vector<16xf32> to vector<16x1xf32>
    %cst_135 = arith.constant 3.200000e+01 : f32
    %263 = vector.broadcast %cst_135 : f32 to vector<16x1xf32>
    %264 = arith.divf %262, %263 : vector<16x1xf32>
    %265 = vector.broadcast %257 : vector<16x1xf32> to vector<16x32xf32>
    %266 = arith.subf %249, %265 : vector<16x32xf32>
    %cst_136 = arith.constant 9.99999974E-6 : f32
    %267 = vector.broadcast %cst_136 : f32 to vector<16x1xf32>
    %268 = arith.addf %264, %267 : vector<16x1xf32>
    %269 = math.rsqrt %268 : vector<16x1xf32>
    %270 = vector.broadcast %269 : vector<16x1xf32> to vector<16x32xf32>
    %271 = arith.mulf %266, %270 : vector<16x32xf32>
    %272 = vector.broadcast %251 : vector<1x32xf32> to vector<16x32xf32>
    %273 = arith.mulf %271, %272 : vector<16x32xf32>
    %274 = vector.broadcast %253 : vector<1x32xf32> to vector<16x32xf32>
    %275 = arith.addf %273, %274 : vector<16x32xf32>
    %c1_137 = arith.constant 1 : index
    %c0_138 = arith.constant 0 : index
    %c0_139 = arith.constant 0 : index
    %276 = vector.load %arg19[%c1_137, %c0_138, %c0_139] : memref<2x32x128xbf16, #tpu.memory_space<vmem>>, vector<1x32x128xbf16>
    %277 = vector.shape_cast %276 : vector<1x32x128xbf16> to vector<32x128xbf16>
    %278 = arith.truncf %275 : vector<16x32xf32> to vector<16x32xbf16>
    %cst_140 = arith.constant dense<0.000000e+00> : vector<16x128xf32>
    %279 = tpu.matmul %278, %277, %cst_140 {dimension_numbers = #tpu.dot_dimension_numbers<[1], [0], [0], [1], [0, 0, 1, 1], [], []>} : vector<16x32xbf16>, vector<32x128xbf16>, vector<16x128xf32> -> vector<16x128xf32>
    %c1_141 = arith.constant 1 : index
    %c0_142 = arith.constant 0 : index
    %c0_143 = arith.constant 0 : index
    %280 = vector.load %arg20[%c1_141, %c0_142, %c0_143] : memref<2x1x128xf32, #tpu.memory_space<vmem>>, vector<1x1x128xf32>
    %281 = vector.shape_cast %280 : vector<1x1x128xf32> to vector<1x128xf32>
    %282 = vector.broadcast %281 : vector<1x128xf32> to vector<16x128xf32>
    %283 = arith.addf %279, %282 : vector<16x128xf32>
    %cst_144 = arith.constant 1.702000e+00 : f32
    %284 = vector.broadcast %cst_144 : f32 to vector<16x128xf32>
    %285 = arith.mulf %284, %283 : vector<16x128xf32>
    %286 = arith.negf %285 : vector<16x128xf32>
    %287 = math.exp %286 : vector<16x128xf32>
    %cst_145 = arith.constant 1.000000e+00 : f32
    %288 = vector.broadcast %cst_145 : f32 to vector<16x128xf32>
    %289 = arith.addf %288, %287 : vector<16x128xf32>
    %290 = arith.divf %288, %289 : vector<16x128xf32>
    %291 = arith.mulf %283, %290 : vector<16x128xf32>
    %c1_146 = arith.constant 1 : index
    %c0_147 = arith.constant 0 : index
    %c0_148 = arith.constant 0 : index
    %292 = vector.load %arg21[%c1_146, %c0_147, %c0_148] : memref<2x128x32xbf16, #tpu.memory_space<vmem>>, vector<1x128x32xbf16>
    %293 = vector.shape_cast %292 : vector<1x128x32xbf16> to vector<128x32xbf16>
    %294 = arith.truncf %291 : vector<16x128xf32> to vector<16x128xbf16>
    %cst_149 = arith.constant dense<0.000000e+00> : vector<16x32xf32>
    %295 = tpu.matmul %294, %293, %cst_149 {dimension_numbers = #tpu.dot_dimension_numbers<[1], [0], [0], [1], [0, 0, 1, 1], [], []>} : vector<16x128xbf16>, vector<128x32xbf16>, vector<16x32xf32> -> vector<16x32xf32>
    %296 = arith.addf %249, %295 : vector<16x32xf32>
    %c1_150 = arith.constant 1 : index
    %c0_151 = arith.constant 0 : index
    %c0_152 = arith.constant 0 : index
    %297 = vector.load %arg22[%c1_150, %c0_151, %c0_152] : memref<2x1x32xf32, #tpu.memory_space<vmem>>, vector<1x1x32xf32>
    %298 = vector.shape_cast %297 : vector<1x1x32xf32> to vector<1x32xf32>
    %299 = vector.broadcast %298 : vector<1x32xf32> to vector<16x32xf32>
    %300 = arith.addf %296, %299 : vector<16x32xf32>
    %c0_153 = arith.constant 0 : index
    %c0_154 = arith.constant 0 : index
    %301 = vector.load %arg23[%c0_153, %c0_154] : memref<1x32xf32, #tpu.memory_space<vmem>>, vector<1x32xf32>
    %c0_155 = arith.constant 0 : index
    %c0_156 = arith.constant 0 : index
    %302 = vector.load %arg24[%c0_155, %c0_156] : memref<1x32xf32, #tpu.memory_space<vmem>>, vector<1x32xf32>
    %cst_157 = arith.constant dense<0.000000e+00> : vector<16xf32>
    %303 = vector.multi_reduction <add>, %300, %cst_157 [1] : vector<16x32xf32> to vector<16xf32>
    %304 = vector.shape_cast %303 : vector<16xf32> to vector<16x1xf32>
    %cst_158 = arith.constant 3.200000e+01 : f32
    %305 = vector.broadcast %cst_158 : f32 to vector<16x1xf32>
    %306 = arith.divf %304, %305 : vector<16x1xf32>
    %307 = vector.broadcast %306 : vector<16x1xf32> to vector<16x32xf32>
    %308 = arith.subf %300, %307 : vector<16x32xf32>
    %309 = arith.mulf %308, %308 : vector<16x32xf32>
    %cst_159 = arith.constant dense<0.000000e+00> : vector<16xf32>
    %310 = vector.multi_reduction <add>, %309, %cst_159 [1] : vector<16x32xf32> to vector<16xf32>
    %311 = vector.shape_cast %310 : vector<16xf32> to vector<16x1xf32>
    %cst_160 = arith.constant 3.200000e+01 : f32
    %312 = vector.broadcast %cst_160 : f32 to vector<16x1xf32>
    %313 = arith.divf %311, %312 : vector<16x1xf32>
    %314 = vector.broadcast %306 : vector<16x1xf32> to vector<16x32xf32>
    %315 = arith.subf %300, %314 : vector<16x32xf32>
    %cst_161 = arith.constant 9.99999974E-6 : f32
    %316 = vector.broadcast %cst_161 : f32 to vector<16x1xf32>
    %317 = arith.addf %313, %316 : vector<16x1xf32>
    %318 = math.rsqrt %317 : vector<16x1xf32>
    %319 = vector.broadcast %318 : vector<16x1xf32> to vector<16x32xf32>
    %320 = arith.mulf %315, %319 : vector<16x32xf32>
    %321 = vector.broadcast %301 : vector<1x32xf32> to vector<16x32xf32>
    %322 = arith.mulf %320, %321 : vector<16x32xf32>
    %323 = vector.broadcast %302 : vector<1x32xf32> to vector<16x32xf32>
    %324 = arith.addf %322, %323 : vector<16x32xf32>
    %c0_162 = arith.constant 0 : index
    %c0_163 = arith.constant 0 : index
    %325 = vector.load %arg2[%c0_162, %c0_163] : memref<2x16xf32, #tpu.memory_space<vmem>>, vector<2x16xf32>
    %cst_164 = arith.constant dense<0.000000e+00> : vector<2x32xf32>
    %326 = tpu.matmul %325, %324, %cst_164 {dimension_numbers = #tpu.dot_dimension_numbers<[1], [0], [0], [1], [0, 0, 1, 1], [], []>} : vector<2x16xf32>, vector<16x32xf32>, vector<2x32xf32> -> vector<2x32xf32>
    %c0_165 = arith.constant 0 : index
    %c0_166 = arith.constant 0 : index
    %327 = vector.load %arg25[%c0_165, %c0_166] : memref<32x128xf32, #tpu.memory_space<vmem>>, vector<32x128xf32>
    %cst_167 = arith.constant dense<0.000000e+00> : vector<2x128xf32>
    %328 = tpu.matmul %326, %327, %cst_167 {dimension_numbers = #tpu.dot_dimension_numbers<[1], [0], [0], [1], [0, 0, 1, 1], [], []>} : vector<2x32xf32>, vector<32x128xf32>, vector<2x128xf32> -> vector<2x128xf32>
    %c0_168 = arith.constant 0 : index
    %c0_169 = arith.constant 0 : index
    %329 = vector.load %arg26[%c0_168, %c0_169] : memref<2x128xf32, #tpu.memory_space<vmem>>, vector<2x128xf32>
    tpu.vector_store %arg26[%c0_168, %c0_169], %328 {strides = array<i32>} : memref<2x128xf32, #tpu.memory_space<vmem>>, vector<2x128xf32>,
    return
  }
  func.func @transform_0(%arg0: i32) -> (i32, i32) {
    %c0_i32 = arith.constant 0 : i32
    %c0_i32_0 = arith.constant 0 : i32
    %c0_i32_1 = arith.constant 0 : i32
    return %c0_i32, %c0_i32_0 : i32, i32
  }
  func.func @transform_1(%arg0: i32) -> (i32, i32) {
    %c0_i32 = arith.constant 0 : i32
    %c0_i32_0 = arith.constant 0 : i32
    %c0_i32_1 = arith.constant 0 : i32
    return %c0_i32, %c0_i32_0 : i32, i32
  }
  func.func @transform_2(%arg0: i32) -> (i32, i32) {
    %c0_i32 = arith.constant 0 : i32
    %c0_i32_0 = arith.constant 0 : i32
    %c0_i32_1 = arith.constant 0 : i32
    return %c0_i32, %c0_i32_0 : i32, i32
  }
  func.func @transform_3(%arg0: i32) -> (i32, i32) {
    %c0_i32 = arith.constant 0 : i32
    %c0_i32_0 = arith.constant 0 : i32
    %c0_i32_1 = arith.constant 0 : i32
    return %c0_i32, %c0_i32_0 : i32, i32
  }
  func.func @transform_4(%arg0: i32) -> (i32, i32) {
    %c0_i32 = arith.constant 0 : i32
    %c0_i32_0 = arith.constant 0 : i32
    %c0_i32_1 = arith.constant 0 : i32
    return %c0_i32, %c0_i32_0 : i32, i32
  }
  func.func @transform_5(%arg0: i32) -> (i32, i32) {
    %c0_i32 = arith.constant 0 : i32
    %c0_i32_0 = arith.constant 0 : i32
    %c0_i32_1 = arith.constant 0 : i32
    return %c0_i32, %c0_i32_0 : i32, i32
  }
  func.func @transform_6(%arg0: i32) -> (i32, i32, i32) {
    %c0_i32 = arith.constant 0 : i32
    %c0_i32_0 = arith.constant 0 : i32
    %c0_i32_1 = arith.constant 0 : i32
    %c0_i32_2 = arith.constant 0 : i32
    return %c0_i32, %c0_i32_0, %c0_i32_1 : i32, i32, i32
  }
  func.func @transform_7(%arg0: i32) -> (i32, i32, i32) {
    %c0_i32 = arith.constant 0 : i32
    %c0_i32_0 = arith.constant 0 : i32
    %c0_i32_1 = arith.constant 0 : i32
    %c0_i32_2 = arith.constant 0 : i32
    return %c0_i32, %c0_i32_0, %c0_i32_1 : i32, i32, i32
  }
  func.func @transform_8(%arg0: i32) -> (i32, i32, i32) {
    %c0_i32 = arith.constant 0 : i32
    %c0_i32_0 = arith.constant 0 : i32
    %c0_i32_1 = arith.constant 0 : i32
    %c0_i32_2 = arith.constant 0 : i32
    return %c0_i32, %c0_i32_0, %c0_i32_1 : i32, i32, i32
  }
  func.func @transform_9(%arg0: i32) -> (i32, i32, i32) {
    %c0_i32 = arith.constant 0 : i32
    %c0_i32_0 = arith.constant 0 : i32
    %c0_i32_1 = arith.constant 0 : i32
    %c0_i32_2 = arith.constant 0 : i32
    return %c0_i32, %c0_i32_0, %c0_i32_1 : i32, i32, i32
  }
  func.func @transform_10(%arg0: i32) -> (i32, i32, i32) {
    %c0_i32 = arith.constant 0 : i32
    %c0_i32_0 = arith.constant 0 : i32
    %c0_i32_1 = arith.constant 0 : i32
    %c0_i32_2 = arith.constant 0 : i32
    return %c0_i32, %c0_i32_0, %c0_i32_1 : i32, i32, i32
  }
  func.func @transform_11(%arg0: i32) -> (i32, i32, i32) {
    %c0_i32 = arith.constant 0 : i32
    %c0_i32_0 = arith.constant 0 : i32
    %c0_i32_1 = arith.constant 0 : i32
    %c0_i32_2 = arith.constant 0 : i32
    return %c0_i32, %c0_i32_0, %c0_i32_1 : i32, i32, i32
  }
  func.func @transform_12(%arg0: i32) -> (i32, i32, i32) {
    %c0_i32 = arith.constant 0 : i32
    %c0_i32_0 = arith.constant 0 : i32
    %c0_i32_1 = arith.constant 0 : i32
    %c0_i32_2 = arith.constant 0 : i32
    return %c0_i32, %c0_i32_0, %c0_i32_1 : i32, i32, i32
  }
  func.func @transform_13(%arg0: i32) -> (i32, i32, i32) {
    %c0_i32 = arith.constant 0 : i32
    %c0_i32_0 = arith.constant 0 : i32
    %c0_i32_1 = arith.constant 0 : i32
    %c0_i32_2 = arith.constant 0 : i32
    return %c0_i32, %c0_i32_0, %c0_i32_1 : i32, i32, i32
  }
  func.func @transform_14(%arg0: i32) -> (i32, i32, i32) {
    %c0_i32 = arith.constant 0 : i32
    %c0_i32_0 = arith.constant 0 : i32
    %c0_i32_1 = arith.constant 0 : i32
    %c0_i32_2 = arith.constant 0 : i32
    return %c0_i32, %c0_i32_0, %c0_i32_1 : i32, i32, i32
  }
  func.func @transform_15(%arg0: i32) -> (i32, i32, i32) {
    %c0_i32 = arith.constant 0 : i32
    %c0_i32_0 = arith.constant 0 : i32
    %c0_i32_1 = arith.constant 0 : i32
    %c0_i32_2 = arith.constant 0 : i32
    return %c0_i32, %c0_i32_0, %c0_i32_1 : i32, i32, i32
  }
  func.func @transform_16(%arg0: i32) -> (i32, i32, i32) {
    %c0_i32 = arith.constant 0 : i32
    %c0_i32_0 = arith.constant 0 : i32
    %c0_i32_1 = arith.constant 0 : i32
    %c0_i32_2 = arith.constant 0 : i32
    return %c0_i32, %c0_i32_0, %c0_i32_1 : i32, i32, i32
  }
  func.func @transform_17(%arg0: i32) -> (i32, i32, i32) {
    %c0_i32 = arith.constant 0 : i32
    %c0_i32_0 = arith.constant 0 : i32
    %c0_i32_1 = arith.constant 0 : i32
    %c0_i32_2 = arith.constant 0 : i32
    return %c0_i32, %c0_i32_0, %c0_i32_1 : i32, i32, i32
  }
  func.func @transform_18(%arg0: i32) -> (i32, i32, i32) {
    %c0_i32 = arith.constant 0 : i32
    %c0_i32_0 = arith.constant 0 : i32
    %c0_i32_1 = arith.constant 0 : i32
    %c0_i32_2 = arith.constant 0 : i32
    return %c0_i32, %c0_i32_0, %c0_i32_1 : i32, i32, i32
  }
  func.func @transform_19(%arg0: i32) -> (i32, i32, i32) {
    %c0_i32 = arith.constant 0 : i32
    %c0_i32_0 = arith.constant 0 : i32
    %c0_i32_1 = arith.constant 0 : i32
    %c0_i32_2 = arith.constant 0 : i32
    return %c0_i32, %c0_i32_0, %c0_i32_1 : i32, i32, i32
  }
  func.func @transform_20(%arg0: i32) -> (i32, i32, i32) {
    %c0_i32 = arith.constant 0 : i32
    %c0_i32_0 = arith.constant 0 : i32
    %c0_i32_1 = arith.constant 0 : i32
    %c0_i32_2 = arith.constant 0 : i32
    return %c0_i32, %c0_i32_0, %c0_i32_1 : i32, i32, i32
  }
  func.func @transform_21(%arg0: i32) -> (i32, i32, i32) {
    %c0_i32 = arith.constant 0 : i32
    %c0_i32_0 = arith.constant 0 : i32
    %c0_i32_1 = arith.constant 0 : i32
    %c0_i32_2 = arith.constant 0 : i32
    return %c0_i32, %c0_i32_0, %c0_i32_1 : i32, i32, i32
  }
  func.func @transform_22(%arg0: i32) -> (i32, i32) {
    %c0_i32 = arith.constant 0 : i32
    %c0_i32_0 = arith.constant 0 : i32
    %c0_i32_1 = arith.constant 0 : i32
    return %c0_i32, %c0_i32_0 : i32, i32
  }
  func.func @transform_23(%arg0: i32) -> (i32, i32) {
    %c0_i32 = arith.constant 0 : i32
    %c0_i32_0 = arith.constant 0 : i32
    %c0_i32_1 = arith.constant 0 : i32
    return %c0_i32, %c0_i32_0 : i32, i32
  }
  func.func @transform_24(%arg0: i32) -> (i32, i32) {
    %c0_i32 = arith.constant 0 : i32
    %c0_i32_0 = arith.constant 0 : i32
    %c0_i32_1 = arith.constant 0 : i32
    return %c0_i32, %c0_i32_0 : i32, i32
  }
  func.func @transform_25(%arg0: i32) -> (i32, i32) {
    %c0_i32 = arith.constant 0 : i32
    %c0_i32_0 = arith.constant 0 : i32
    %c0_i32_1 = arith.constant 0 : i32
    return %c0_i32, %c0_i32_0 : i32, i32
  }
}

</mosaic_0001>

<llo_original>
// kernel: tile.9
$region0: #{tile.9}
  %s0 = inlined_call_operand.vmem [shape: f32[8,4,8], index: 0, kind: input, shape index: {}]
  %s1 = inlined_call_operand.vmem [shape: f32[8,32], index: 1, kind: output, shape index: {}]
  $region1: #{tile.9} parent=0
    #allocation0 [shape = 'u8[32768]{0}', space=vmem, size = 0x8000, scoped, tag = 'scoped mem for input reshape']
    %s3 = sshllo.u32 0, 4
    %s4 = smul.addr 4, 7
    %s5 = scalar_lea.vmem %s0, %s4
    %v6 = vld [vmem:[%s5] sm:%s3]
    %s7 = scalar_lea.vmem [#allocation0], 56
    %8 = vst [vmem:[%s7] sm:%s3] %v6
    %s9 = smul.addr 4, 6
    %s10 = scalar_lea.vmem %s0, %s9
    %v11 = vld [vmem:[%s10] sm:%s3]
    %s12 = scalar_lea.vmem [#allocation0], 48
    %13 = vst [vmem:[%s12] sm:%s3] %v11
    %s14 = smul.addr 4, 5
    %s15 = scalar_lea.vmem %s0, %s14
    %v16 = vld [vmem:[%s15] sm:%s3]
    %s17 = scalar_lea.vmem [#allocation0], 40
    %18 = vst [vmem:[%s17] sm:%s3] %v16
    %s19 = smul.addr 4, 4
    %s20 = scalar_lea.vmem %s0, %s19
    %v21 = vld [vmem:[%s20] sm:%s3]
    %s22 = scalar_lea.vmem [#allocation0], 32
    %23 = vst [vmem:[%s22] sm:%s3] %v21
    %s24 = smul.addr 4, 3
    %s25 = scalar_lea.vmem %s0, %s24
    %v26 = vld [vmem:[%s25] sm:%s3]
    %s27 = scalar_lea.vmem [#allocation0], 24
    %28 = vst [vmem:[%s27] sm:%s3] %v26
    %s29 = smul.addr 4, 2
    %s30 = scalar_lea.vmem %s0, %s29
    %v31 = vld [vmem:[%s30] sm:%s3]
    %s32 = scalar_lea.vmem [#allocation0], 16
    %33 = vst [vmem:[%s32] sm:%s3] %v31
    %s34 = scalar_lea.vmem %s0, 4
    %v35 = vld [vmem:[%s34] sm:%s3]
    %s36 = scalar_lea.vmem [#allocation0], 8
    %37 = vst [vmem:[%s36] sm:%s3] %v35
    %v38 = vld [vmem:[%s0] sm:%s3]
    %39 = vst [vmem:[#allocation0] sm:%s3] %v38
    %v40 = vld [vmem:[#allocation0] ss:$8 sm:$0xf]
    %v41 = vld [vmem:[#allocation0] ss:$8 sm:$0xf0]
    %vm42 = vcmask 1047556
    %v43 = vsel %vm42, %v41, %v40
    %vm44 = vcmask 64512
    %45 = vst.msk [vmem:[%s1] sm:$0xff] %vm44, %v43
    %s46 = scalar_lea.vmem [#allocation0], 3
    %v47 = vld [vmem:[%s46] ss:$8 sm:$0xf]
    %s48 = scalar_lea.vmem [#allocation0], 3
    %v49 = vld [vmem:[%s48] ss:$8 sm:$0xf0]
    %vm50 = vcmask 1047556
    %v51 = vsel %vm50, %v49, %v47
    %52 = vrot.lane.b32.xlu0 %v51, 24
    %v53 = vpop.permute.xlu0 %52
    %vm54 = vcmask 261312
    %55 = vst.msk [vmem:[%s1] sm:$0xff] %vm54, %v53
    %s56 = scalar_lea.vmem [#allocation0], 2
    %v57 = vld [vmem:[%s56] ss:$8 sm:$0xf]
    %s58 = scalar_lea.vmem [#allocation0], 2
    %v59 = vld [vmem:[%s58] ss:$8 sm:$0xf0]
    %vm60 = vcmask 1047556
    %v61 = vsel %vm60, %v59, %v57
    %62 = vrot.lane.b32.xlu0 %v61, 16
    %v63 = vpop.permute.xlu0 %62
    %vm64 = vcmask 195712
    %65 = vst.msk [vmem:[%s1] sm:$0xff] %vm64, %v63
    %s66 = scalar_lea.vmem [#allocation0], 1
    %v67 = vld [vmem:[%s66] ss:$8 sm:$0xf]
    %s68 = scalar_lea.vmem [#allocation0], 1
    %v69 = vld [vmem:[%s68] ss:$8 sm:$0xf0]
    %vm70 = vcmask 1047556
    %v71 = vsel %vm70, %v69, %v67
    %72 = vrot.lane.b32.xlu0 %v71, 8
    %v73 = vpop.permute.xlu0 %72
    %vm74 = vcmask 130112
    %75 = vst.msk [vmem:[%s1] sm:$0xff] %vm74, %v73

// kernel: text_encoder.1
$region0: #{text_encoder.1}
  #allocation0 [shape = 'u32[]', space=smem, size = 0x4, offset = 0x4, fixed_abs, tag = 'smem constant byte address 0x4 - core index']
  #allocation1 [shape = 'u32[144,128]{1,0:T(1,128)}', space=vmem, size = 0x12000, scoped, tag = 'internal scratch']
  %s0 = inlined_call_operand.vmem [shape: f32[16,32], index: 0, kind: input, shape index: {}]
  %s1 = inlined_call_operand.vmem [shape: f32[2,16], index: 1, kind: input, shape index: {}]
  %s2 = inlined_call_operand.vmem [shape: f32[32,32], index: 2, kind: input, shape index: {}]
  %s3 = inlined_call_operand.vmem [shape: bf16[32,4], index: 3, kind: input, shape index: {}]
  %s4 = inlined_call_operand.vmem [shape: bf16[4,32], index: 4, kind: input, shape index: {}]
  %s5 = inlined_call_operand.vmem [shape: f32[8,32], index: 5, kind: input, shape index: {}]
  %s6 = inlined_call_operand.vmem [shape: f32[2,1,32], index: 6, kind: input, shape index: {}]
  %s7 = inlined_call_operand.vmem [shape: f32[2,1,32], index: 7, kind: input, shape index: {}]
  %s8 = inlined_call_operand.vmem [shape: bf16[2,32,32], index: 8, kind: input, shape index: {}]
  %s9 = inlined_call_operand.vmem [shape: f32[2,1,32], index: 9, kind: input, shape index: {}]
  %s10 = inlined_call_operand.vmem [shape: bf16[2,32,32], index: 10, kind: input, shape index: {}]
  %s11 = inlined_call_operand.vmem [shape: f32[2,1,32], index: 11, kind: input, shape index: {}]
  %s12 = inlined_call_operand.vmem [shape: bf16[2,32,32], index: 12, kind: input, shape index: {}]
  %s13 = inlined_call_operand.vmem [shape: f32[2,1,32], index: 13, kind: input, shape index: {}]
  %s14 = inlined_call_operand.vmem [shape: bf16[2,32,32], index: 14, kind: input, shape index: {}]
  %s15 = inlined_call_operand.vmem [shape: f32[2,1,32], index: 15, kind: input, shape index: {}]
  %s16 = inlined_call_operand.vmem [shape: f32[2,1,32], index: 16, kind: input, shape index: {}]
  %s17 = inlined_call_operand.vmem [shape: f32[2,1,32], index: 17, kind: input, shape index: {}]
  %s18 = inlined_call_operand.vmem [shape: bf16[2,32,128], index: 18, kind: input, shape index: {}]
  %s19 = inlined_call_operand.vmem [shape: f32[2,1,128], index: 19, kind: input, shape index: {}]
  %s20 = inlined_call_operand.vmem [shape: bf16[2,128,32], index: 20, kind: input, shape index: {}]
  %s21 = inlined_call_operand.vmem [shape: f32[2,1,32], index: 21, kind: input, shape index: {}]
  %s22 = inlined_call_operand.vmem [shape: f32[1,32], index: 22, kind: input, shape index: {}]
  %s23 = inlined_call_operand.vmem [shape: f32[1,32], index: 23, kind: input, shape index: {}]
  %s24 = inlined_call_operand.vmem [shape: f32[32,128], index: 24, kind: input, shape index: {}]
  %s25 = inlined_call_operand.hbm [shape: f32[2,128], index: 25, kind: output, shape index: {}]
  %s26 = sld [smem:[#allocation0]]
  $region110: #{text_encoder.1} parent=0
    _
  %s28 = ssub.s32 1, %s26
  %s29 = scalar_select 0, %s28, %s26
  $region1: #{text_encoder.1} parent=0
    #allocation2 [shape = 'u8[1024]{0}', space=vmem, size = 0x400, scoped, tag = 'output window, operand 0, single buffered']
    #allocation3 [shape = 's32[1]{0}', space=sflag, size = 0x4, scoped, tag = 'scoped memory for text_encoder.1']
    %30 = vsyncpa [#allocation3], 0
    // Predicated region
    $region2: #{text_encoder.1} parent=1 // pred_check
      _
    $region3: #{text_encoder.1} parent=1 // pred_check_branch
      %32 = sbr.rel (0) target = $region5
    $region4: #{text_encoder.1} parent=1 // pred_region
      _
    $region5: #{text_encoder.1} parent=1 // pred_fallthru
      _
    // Predicated region
    $region6: #{text_encoder.1} parent=1 // pred_check
      _
    $region7: #{text_encoder.1} parent=1 // pred_check_branch
      %34 = sbr.rel (0) target = $region9
    $region8: #{text_encoder.1} parent=1 // pred_region
      _
    $region9: #{text_encoder.1} parent=1 // pred_fallthru
      _
    // Predicated region
    $region10: #{text_encoder.1} parent=1 // pred_check
      _
    $region11: #{text_encoder.1} parent=1 // pred_check_branch
      %36 = sbr.rel (0) target = $region13
    $region12: #{text_encoder.1} parent=1 // pred_region
      _
    $region13: #{text_encoder.1} parent=1 // pred_fallthru
      _
    // Predicated region
    $region14: #{text_encoder.1} parent=1 // pred_check
      _
    $region15: #{text_encoder.1} parent=1 // pred_check_branch
      %38 = sbr.rel (0) target = $region17
    $region16: #{text_encoder.1} parent=1 // pred_region
      _
    $region17: #{text_encoder.1} parent=1 // pred_fallthru
      _
    // Predicated region
    $region18: #{text_encoder.1} parent=1 // pred_check
      _
    $region19: #{text_encoder.1} parent=1 // pred_check_branch
      %40 = sbr.rel (0) target = $region21
    $region20: #{text_encoder.1} parent=1 // pred_region
      _
    $region21: #{text_encoder.1} parent=1 // pred_fallthru
      _
    // Predicated region
    $region22: #{text_encoder.1} parent=1 // pred_check
      _
    $region23: #{text_encoder.1} parent=1 // pred_check_branch
      %42 = sbr.rel (0) target = $region25
    $region24: #{text_encoder.1} parent=1 // pred_region
      _
    $region25: #{text_encoder.1} parent=1 // pred_fallthru
      _
    // Predicated region
    $region26: #{text_encoder.1} parent=1 // pred_check
      _
    $region27: #{text_encoder.1} parent=1 // pred_check_branch
      %44 = sbr.rel (0) target = $region29
    $region28: #{text_encoder.1} parent=1 // pred_region
      _
    $region29: #{text_encoder.1} parent=1 // pred_fallthru
      _
    // Predicated region
    $region30: #{text_encoder.1} parent=1 // pred_check
      _
    $region31: #{text_encoder.1} parent=1 // pred_check_branch
      %46 = sbr.rel (0) target = $region33
    $region32: #{text_encoder.1} parent=1 // pred_region
      _
    $region33: #{text_encoder.1} parent=1 // pred_fallthru
      _
    // Predicated region
    $region34: #{text_encoder.1} parent=1 // pred_check
      _
    $region35: #{text_encoder.1} parent=1 // pred_check_branch
      %48 = sbr.rel (0) target = $region37
    $region36: #{text_encoder.1} parent=1 // pred_region
      _
    $region37: #{text_encoder.1} parent=1 // pred_fallthru
      _
    // Predicated region
    $region38: #{text_encoder.1} parent=1 // pred_check
      _
    $region39: #{text_encoder.1} parent=1 // pred_check_branch
      %50 = sbr.rel (0) target = $region41
    $region40: #{text_encoder.1} parent=1 // pred_region
      _
    $region41: #{text_encoder.1} parent=1 // pred_fallthru
      _
    // Predicated region
    $region42: #{text_encoder.1} parent=1 // pred_check
      _
    $region43: #{text_encoder.1} parent=1 // pred_check_branch
      %52 = sbr.rel (0) target = $region45
    $region44: #{text_encoder.1} parent=1 // pred_region
      _
    $region45: #{text_encoder.1} parent=1 // pred_fallthru
      _
    // Predicated region
    $region46: #{text_encoder.1} parent=1 // pred_check
      _
    $region47: #{text_encoder.1} parent=1 // pred_check_branch
      %54 = sbr.rel (0) target = $region49
    $region48: #{text_encoder.1} parent=1 // pred_region
      _
    $region49: #{text_encoder.1} parent=1 // pred_fallthru
      _
    // Predicated region
    $region50: #{text_encoder.1} parent=1 // pred_check
      _
    $region51: #{text_encoder.1} parent=1 // pred_check_branch
      %56 = sbr.rel (0) target = $region53
    $region52: #{text_encoder.1} parent=1 // pred_region
      _
    $region53: #{text_encoder.1} parent=1 // pred_fallthru
      _
    // Predicated region
    $region54: #{text_encoder.1} parent=1 // pred_check
      _
    $region55: #{text_encoder.1} parent=1 // pred_check_branch
      %58 = sbr.rel (0) target = $region57
    $region56: #{text_encoder.1} parent=1 // pred_region
      _
    $region57: #{text_encoder.1} parent=1 // pred_fallthru
      _
    // Predicated region
    $region58: #{text_encoder.1} parent=1 // pred_check
      _
    $region59: #{text_encoder.1} parent=1 // pred_check_branch
      %60 = sbr.rel (0) target = $region61
    $region60: #{text_encoder.1} parent=1 // pred_region
      _
    $region61: #{text_encoder.1} parent=1 // pred_fallthru
      _
    // Predicated region
    $region62: #{text_encoder.1} parent=1 // pred_check
      _
    $region63: #{text_encoder.1} parent=1 // pred_check_branch
      %62 = sbr.rel (0) target = $region65
    $region64: #{text_encoder.1} parent=1 // pred_region
      _
    $region65: #{text_encoder.1} parent=1 // pred_fallthru
      _
    // Predicated region
    $region66: #{text_encoder.1} parent=1 // pred_check
      _
    $region67: #{text_encoder.1} parent=1 // pred_check_branch
      %64 = sbr.rel (0) target = $region69
    $region68: #{text_encoder.1} parent=1 // pred_region
      _
    $region69: #{text_encoder.1} parent=1 // pred_fallthru
      _
    // Predicated region
    $region70: #{text_encoder.1} parent=1 // pred_check
      _
    $region71: #{text_encoder.1} parent=1 // pred_check_branch
      %66 = sbr.rel (0) target = $region73
    $region72: #{text_encoder.1} parent=1 // pred_region
      _
    $region73: #{text_encoder.1} parent=1 // pred_fallthru
      _
    // Predicated region
    $region74: #{text_encoder.1} parent=1 // pred_check
      _
    $region75: #{text_encoder.1} parent=1 // pred_check_branch
      %68 = sbr.rel (0) target = $region77
    $region76: #{text_encoder.1} parent=1 // pred_region
      _
    $region77: #{text_encoder.1} parent=1 // pred_fallthru
      _
    // Predicated region
    $region78: #{text_encoder.1} parent=1 // pred_check
      _
    $region79: #{text_encoder.1} parent=1 // pred_check_branch
      %70 = sbr.rel (0) target = $region81
    $region80: #{text_encoder.1} parent=1 // pred_region
      _
    $region81: #{text_encoder.1} parent=1 // pred_fallthru
      _
    // Predicated region
    $region82: #{text_encoder.1} parent=1 // pred_check
      _
    $region83: #{text_encoder.1} parent=1 // pred_check_branch
      %72 = sbr.rel (0) target = $region85
    $region84: #{text_encoder.1} parent=1 // pred_region
      _
    $region85: #{text_encoder.1} parent=1 // pred_fallthru
      _
    // Predicated region
    $region86: #{text_encoder.1} parent=1 // pred_check
      _
    $region87: #{text_encoder.1} parent=1 // pred_check_branch
      %74 = sbr.rel (0) target = $region89
    $region88: #{text_encoder.1} parent=1 // pred_region
      _
    $region89: #{text_encoder.1} parent=1 // pred_fallthru
      _
    // Predicated region
    $region90: #{text_encoder.1} parent=1 // pred_check
      _
    $region91: #{text_encoder.1} parent=1 // pred_check_branch
      %76 = sbr.rel (0) target = $region93
    $region92: #{text_encoder.1} parent=1 // pred_region
      _
    $region93: #{text_encoder.1} parent=1 // pred_fallthru
      _
    // Predicated region
    $region94: #{text_encoder.1} parent=1 // pred_check
      _
    $region95: #{text_encoder.1} parent=1 // pred_check_branch
      %78 = sbr.rel (0) target = $region97
    $region96: #{text_encoder.1} parent=1 // pred_region
      _
    $region97: #{text_encoder.1} parent=1 // pred_fallthru
      _
    // Predicated region
    $region98: #{text_encoder.1} parent=1 // pred_check
      _
    $region99: #{text_encoder.1} parent=1 // pred_check_branch
      %80 = sbr.rel (0) target = $region101
    $region100: #{text_encoder.1} parent=1 // pred_region
      _
    $region101: #{text_encoder.1} parent=1 // pred_fallthru
      _
    %v82 = vld [vmem:[%s0] sm:$0xff]
    %v83 = vld [vmem:[%s0 + $0x8] sm:$0xff]
    %v84 = vld [vmem:[%s2] sm:$0xff]
    %v85 = vld [vmem:[%s2 + $0x8] sm:$0xff]
    %v86 = vld [vmem:[%s2 + $0x10] sm:$0xff]
    %v87 = vld [vmem:[%s2 + $0x18] sm:$0xff]
    %v88 = vld [vmem:[%s5] sm:$0xff]
    %v89 = vld [vmem:[%s3] sm:$0xf]
    %v90 = vld [vmem:[%s3 + $0x4] sm:$0xf]
    %v91 = vld [vmem:[%s3 + $0x8] sm:$0xf]
    %v92 = vld [vmem:[%s3 + $0xc] sm:$0xf]
    %v93 = vld [vmem:[%s4] sm:$0x3]
    %v94 = vld [vmem:[%s6] sm:$0x1]
    %v95 = vld [vmem:[%s7] sm:$0x1]
    %vm96 = vcmask 261120
    %v97 = vsel %vm96, %v82, 0.0
    %98 = vadd.xlane.f32.xlu0 %v97
    %v99 = vpop.xlane.xlu0 %98
    %v100 = vsel %vm96, %v83, 0.0
    %101 = vadd.xlane.f32.xlu0 %v100
    %v102 = vpop.xlane.xlu0 %101
    %v103 = vrcp.pop 32.0
    %v104 = vmul.f32 %v99, %v103
    %v105 = vmul.f32 %v102, %v103
    %v106 = vsub.f32 %v82, %v104
    %v107 = vsub.f32 %v83, %v105
    %v108 = vmul.f32 %v106, %v106
    %v109 = vmul.f32 %v107, %v107
    %v110 = vsel %vm96, %v108, 0.0
    %111 = vadd.xlane.f32.xlu0 %v110
    %v112 = vpop.xlane.xlu0 %111
    %v113 = vsel %vm96, %v109, 0.0
    %114 = vadd.xlane.f32.xlu0 %v113
    %v115 = vpop.xlane.xlu0 %114
    %v116 = vmul.f32 %v112, %v103
    %v117 = vmul.f32 %v115, %v103
    %v118 = vadd.f32 %v116, 1e-05
    %v119 = vadd.f32 %v117, 1e-05
    %v120 = vrsqrt.pop %v118
    %v121 = vrsqrt.pop %v119
    %v122 = vmul.f32 %v106, %v120
    %v123 = vmul.f32 %v107, %v121
    %v125 = vlaneseq
    %v126 = vshrl.u32 %v125, 7
    %v127 = vsub.s32 0, %v126
    %v128 = vrot.slane %v94, %v127
    %v130 = vmul.f32 %v122, %v128
    %v131 = vmul.f32 %v123, %v128
    %v133 = vlaneseq
    %v134 = vshrl.u32 %v133, 7
    %v135 = vsub.s32 0, %v134
    %v136 = vrot.slane %v95, %v135
    %v138 = vadd.f32 %v130, %v136
    %v139 = vadd.f32 %v131, %v136
    %v140 = vld [vmem:[%s8] sm:$0xf]
    %v141 = vld [vmem:[%s8 + $0x4] sm:$0xf]
    %v142 = vld [vmem:[%s8 + $0x8] sm:$0xf]
    %v143 = vld [vmem:[%s8 + $0xc] sm:$0xf]
    %v144 = vpack.c.bf16 %v139, %v138
    %v145 = vld [vmem:[%s9] sm:$0x1]
    %v147 = vlaneseq
    %v148 = vshrl.u32 %v147, 7
    %v149 = vsub.s32 0, %v148
    %v150 = vrot.slane %v145, %v149
    %v156 = vunpack.c.l.b16 %v140
    %v157 = vunpack.c.l.b16 %v141
    %v158 = vunpack.c.l.b16 %v142
    %v159 = vunpack.c.l.b16 %v143
    %v160 = vpack.c.b16 %v157, %v156
    %v161 = vpack.c.b16 %v159, %v158
    %v165 = vsel %vm96, %v144, 0
    %167 = vmatprep.subr.bf16.mxu0 0
    %168 = vmatpush1.bf16.msra.mxu0 %v160
    %169 = vmatprep.subr.bf16.mxu0 0
    %170 = vmatpush1.bf16.msra.mxu0 %v161
    %171 = vmatprep.subr.bf16.mxu0 0
    %172 = vmatpush1.bf16.msra.mxu0 0
    %173 = vmatprep.subr.bf16.mxu0 0
    %174 = vmatpush1.bf16.msra.mxu0 0
    %175 = vmatprep.subr.bf16.mxu0 0
    %176 = vmatpush1.bf16.msra.mxu0 0
    %177 = vmatprep.subr.bf16.mxu0 0
    %178 = vmatpush1.bf16.msra.mxu0 0
    %179 = vmatprep.subr.bf16.mxu0 0
    %180 = vmatpush1.bf16.msra.mxu0 0
    %181 = vmatprep.subr.bf16.mxu0 0
    %182 = vmatpush1.bf16.msra.mxu0 0
    %183 = vmatprep.subr.bf16.mxu0 0
    %184 = vmatpush1.bf16.msra.mxu0 0
    %185 = vmatprep.subr.bf16.mxu0 0
    %186 = vmatpush1.bf16.msra.mxu0 0
    %187 = vmatprep.subr.bf16.mxu0 0
    %188 = vmatpush1.bf16.msra.mxu0 0
    %189 = vmatprep.subr.bf16.mxu0 0
    %190 = vmatpush1.bf16.msra.mxu0 0
    %191 = vmatprep.subr.bf16.mxu0 0
    %192 = vmatpush1.bf16.msra.mxu0 0
    %193 = vmatprep.subr.bf16.mxu0 0
    %194 = vmatpush1.bf16.msra.mxu0 0
    %195 = vmatprep.subr.bf16.mxu0 0
    %196 = vmatpush1.bf16.msra.mxu0 0
    %197 = vmatprep.subr.bf16.mxu0 0
    %198 = vmatpush1.bf16.msra.mxu0 0
    %199 = vmatprep.mubr.bf16.mxu0 0
    %200 = vmatmul.mubr.bf16.gmra.mrb[0].mxu0 %v165
    %v201 = vpop.f32.mrb[0].mxu0
    %v202 = vadd.f32 %v150, %v201
    %v203 = vpop.f32.mrb[0].mxu0
    %v204 = vpop.f32.mrb[0].mxu0
    %v205 = vadd.f32 %v150, %v204
    %v206 = vpop.f32.mrb[0].mxu0
    %207 = vdwg.mxu0
    %v208 = vld [vmem:[%s10] sm:$0xf]
    %v209 = vld [vmem:[%s10 + $0x4] sm:$0xf]
    %v210 = vld [vmem:[%s10 + $0x8] sm:$0xf]
    %v211 = vld [vmem:[%s10 + $0xc] sm:$0xf]
    %v212 = vld [vmem:[%s11] sm:$0x1]
    %v214 = vlaneseq
    %v215 = vshrl.u32 %v214, 7
    %v216 = vsub.s32 0, %v215
    %v217 = vrot.slane %v212, %v216
    %v223 = vunpack.c.l.b16 %v208
    %v224 = vunpack.c.l.b16 %v209
    %v225 = vunpack.c.l.b16 %v210
    %v226 = vunpack.c.l.b16 %v211
    %v227 = vpack.c.b16 %v224, %v223
    %v228 = vpack.c.b16 %v226, %v225
    %231 = vmatprep.subr.bf16.mxu0 0
    %232 = vmatpush1.bf16.msra.mxu0 %v227
    %233 = vmatprep.subr.bf16.mxu0 0
    %234 = vmatpush1.bf16.msra.mxu0 %v228
    %235 = vmatprep.subr.bf16.mxu0 0
    %236 = vmatpush1.bf16.msra.mxu0 0
    %237 = vmatprep.subr.bf16.mxu0 0
    %238 = vmatpush1.bf16.msra.mxu0 0
    %239 = vmatprep.subr.bf16.mxu0 0
    %240 = vmatpush1.bf16.msra.mxu0 0
    %241 = vmatprep.subr.bf16.mxu0 0
    %242 = vmatpush1.bf16.msra.mxu0 0
    %243 = vmatprep.subr.bf16.mxu0 0
    %244 = vmatpush1.bf16.msra.mxu0 0
    %245 = vmatprep.subr.bf16.mxu0 0
    %246 = vmatpush1.bf16.msra.mxu0 0
    %247 = vmatprep.subr.bf16.mxu0 0
    %248 = vmatpush1.bf16.msra.mxu0 0
    %249 = vmatprep.subr.bf16.mxu0 0
    %250 = vmatpush1.bf16.msra.mxu0 0
    %251 = vmatprep.subr.bf16.mxu0 0
    %252 = vmatpush1.bf16.msra.mxu0 0
    %253 = vmatprep.subr.bf16.mxu0 0
    %254 = vmatpush1.bf16.msra.mxu0 0
    %255 = vmatprep.subr.bf16.mxu0 0
    %256 = vmatpush1.bf16.msra.mxu0 0
    %257 = vmatprep.subr.bf16.mxu0 0
    %258 = vmatpush1.bf16.msra.mxu0 0
    %259 = vmatprep.subr.bf16.mxu0 0
    %260 = vmatpush1.bf16.msra.mxu0 0
    %261 = vmatprep.subr.bf16.mxu0 0
    %262 = vmatpush1.bf16.msra.mxu0 0
    %263 = vmatprep.mubr.bf16.mxu0 0
    %264 = vmatmul.mubr.bf16.gmra.mrb[0].mxu0 %v165
    %v265 = vpop.f32.mrb[0].mxu0
    %v266 = vadd.f32 %v217, %v265
    %v267 = vpop.f32.mrb[0].mxu0
    %v268 = vpop.f32.mrb[0].mxu0
    %v269 = vadd.f32 %v217, %v268
    %v270 = vpop.f32.mrb[0].mxu0
    %271 = vdwg.mxu0
    %v272 = vld [vmem:[%s12] sm:$0xf]
    %v273 = vld [vmem:[%s12 + $0x4] sm:$0xf]
    %v274 = vld [vmem:[%s12 + $0x8] sm:$0xf]
    %v275 = vld [vmem:[%s12 + $0xc] sm:$0xf]
    %v276 = vld [vmem:[%s13] sm:$0x1]
    %v278 = vlaneseq
    %v279 = vshrl.u32 %v278, 7
    %v280 = vsub.s32 0, %v279
    %v281 = vrot.slane %v276, %v280
    %v287 = vunpack.c.l.b16 %v272
    %v288 = vunpack.c.l.b16 %v273
    %v289 = vunpack.c.l.b16 %v274
    %v290 = vunpack.c.l.b16 %v275
    %v291 = vpack.c.b16 %v288, %v287
    %v292 = vpack.c.b16 %v290, %v289
    %295 = vmatprep.subr.bf16.mxu0 0
    %296 = vmatpush1.bf16.msra.mxu0 %v291
    %297 = vmatprep.subr.bf16.mxu0 0
    %298 = vmatpush1.bf16.msra.mxu0 %v292
    %299 = vmatprep.subr.bf16.mxu0 0
    %300 = vmatpush1.bf16.msra.mxu0 0
    %301 = vmatprep.subr.bf16.mxu0 0
    %302 = vmatpush1.bf16.msra.mxu0 0
    %303 = vmatprep.subr.bf16.mxu0 0
    %304 = vmatpush1.bf16.msra.mxu0 0
    %305 = vmatprep.subr.bf16.mxu0 0
    %306 = vmatpush1.bf16.msra.mxu0 0
    %307 = vmatprep.subr.bf16.mxu0 0
    %308 = vmatpush1.bf16.msra.mxu0 0
    %309 = vmatprep.subr.bf16.mxu0 0
    %310 = vmatpush1.bf16.msra.mxu0 0
    %311 = vmatprep.subr.bf16.mxu0 0
    %312 = vmatpush1.bf16.msra.mxu0 0
    %313 = vmatprep.subr.bf16.mxu0 0
    %314 = vmatpush1.bf16.msra.mxu0 0
    %315 = vmatprep.subr.bf16.mxu0 0
    %316 = vmatpush1.bf16.msra.mxu0 0
    %317 = vmatprep.subr.bf16.mxu0 0
    %318 = vmatpush1.bf16.msra.mxu0 0
    %319 = vmatprep.subr.bf16.mxu0 0
    %320 = vmatpush1.bf16.msra.mxu0 0
    %321 = vmatprep.subr.bf16.mxu0 0
    %322 = vmatpush1.bf16.msra.mxu0 0
    %323 = vmatprep.subr.bf16.mxu0 0
    %324 = vmatpush1.bf16.msra.mxu0 0
    %325 = vmatprep.subr.bf16.mxu0 0
    %326 = vmatpush1.bf16.msra.mxu0 0
    %327 = vmatprep.mubr.bf16.mxu0 0
    %328 = vmatmul.mubr.bf16.gmra.mrb[0].mxu0 %v165
    %v329 = vpop.f32.mrb[0].mxu0
    %v330 = vadd.f32 %v281, %v329
    %v331 = vpop.f32.mrb[0].mxu0
    %v332 = vpop.f32.mrb[0].mxu0
    %v333 = vadd.f32 %v281, %v332
    %v334 = vpop.f32.mrb[0].mxu0
    %335 = vdwg.mxu0
    %v336 = vmul.f32 %v266, %v84
    %v337 = vmul.f32 %v266, %v85
    %v338 = vmul.f32 %v266, %v86
    %v339 = vmul.f32 %v266, %v87
    %v340 = vmul.f32 %v269, %v84
    %v341 = vmul.f32 %v269, %v85
    %v342 = vmul.f32 %v269, %v86
    %v343 = vmul.f32 %v269, %v87
    %v344 = vpack.c.bf16 %v337, %v336
    %v345 = vpack.c.bf16 %v339, %v338
    %v346 = vpack.c.bf16 %v341, %v340
    %v347 = vpack.c.bf16 %v343, %v342
    %v348 = vmul.f32 %v330, %v84
    %v349 = vmul.f32 %v330, %v85
    %v350 = vmul.f32 %v330, %v86
    %v351 = vmul.f32 %v330, %v87
    %v352 = vmul.f32 %v333, %v84
    %v353 = vmul.f32 %v333, %v85
    %v354 = vmul.f32 %v333, %v86
    %v355 = vmul.f32 %v333, %v87
    %v356 = vpack.c.bf16 %v349, %v348
    %v357 = vpack.c.bf16 %v351, %v350
    %v358 = vpack.c.bf16 %v353, %v352
    %v359 = vpack.c.bf16 %v355, %v354
    %v360 = vpack.c.bf16 %v202, %v202
    %v361 = vpack.c.bf16 %v205, %v205
    %v363 = vsel %vm96, %v360, 0
    %v366 = vsel %vm96, %v344, 0
    %v369 = vsel %vm96, %v345, 0
    %371 = vmatprep.subr.bf16.mxu0 0
    %372 = vmatpush1.bf16.xpose.msra.mxu0 %v366
    %373 = vmatprep.subr.bf16.mxu0 0
    %374 = vmatpush1.bf16.xpose.msra.mxu0 %v369
    %375 = vmatprep.subr.bf16.mxu0 0
    %376 = vmatpush1.bf16.xpose.msra.mxu0 0
    %377 = vmatprep.subr.bf16.mxu0 0
    %378 = vmatpush1.bf16.xpose.msra.mxu0 0
    %379 = vmatprep.subr.bf16.mxu0 0
    %380 = vmatpush1.bf16.xpose.msra.mxu0 0
    %381 = vmatprep.subr.bf16.mxu0 0
    %382 = vmatpush1.bf16.xpose.msra.mxu0 0
    %383 = vmatprep.subr.bf16.mxu0 0
    %384 = vmatpush1.bf16.xpose.msra.mxu0 0
    %385 = vmatprep.subr.bf16.mxu0 0
    %386 = vmatpush1.bf16.xpose.msra.mxu0 0
    %387 = vmatprep.subr.bf16.mxu0 0
    %388 = vmatpush1.bf16.xpose.msra.mxu0 0
    %389 = vmatprep.subr.bf16.mxu0 0
    %390 = vmatpush1.bf16.xpose.msra.mxu0 0
    %391 = vmatprep.subr.bf16.mxu0 0
    %392 = vmatpush1.bf16.xpose.msra.mxu0 0
    %393 = vmatprep.subr.bf16.mxu0 0
    %394 = vmatpush1.bf16.xpose.msra.mxu0 0
    %395 = vmatprep.subr.bf16.mxu0 0
    %396 = vmatpush1.bf16.xpose.msra.mxu0 0
    %397 = vmatprep.subr.bf16.mxu0 0
    %398 = vmatpush1.bf16.xpose.msra.mxu0 0
    %399 = vmatprep.subr.bf16.mxu0 0
    %400 = vmatpush1.bf16.xpose.msra.mxu0 0
    %401 = vmatprep.subr.bf16.mxu0 0
    %402 = vmatpush1.bf16.xpose.msra.mxu0 0
    %403 = vmatprep.mubr.bf16.mxu0 0
    %404 = vmatmul.mubr.bf16.gmra.mrb[0].mxu0 %v363
    %v405 = vpop.f32.mrb[0].mxu0
    %v406 = vadd.f32 0.0, %v405
    %v407 = vpop.f32.mrb[0].mxu0
    %v408 = vpop.f32.mrb[0].mxu0
    %v409 = vpop.f32.mrb[0].mxu0
    %410 = vdwg.mxu0
    %v412 = vsel %vm96, %v361, 0
    %v415 = vsel %vm96, %v346, 0
    %v418 = vsel %vm96, %v347, 0
    %420 = vmatprep.subr.bf16.mxu0 0
    %421 = vmatpush1.bf16.xpose.msra.mxu0 %v415
    %422 = vmatprep.subr.bf16.mxu0 0
    %423 = vmatpush1.bf16.xpose.msra.mxu0 %v418
    %424 = vmatprep.subr.bf16.mxu0 0
    %425 = vmatpush1.bf16.xpose.msra.mxu0 0
    %426 = vmatprep.subr.bf16.mxu0 0
    %427 = vmatpush1.bf16.xpose.msra.mxu0 0
    %428 = vmatprep.subr.bf16.mxu0 0
    %429 = vmatpush1.bf16.xpose.msra.mxu0 0
    %430 = vmatprep.subr.bf16.mxu0 0
    %431 = vmatpush1.bf16.xpose.msra.mxu0 0
    %432 = vmatprep.subr.bf16.mxu0 0
    %433 = vmatpush1.bf16.xpose.msra.mxu0 0
    %434 = vmatprep.subr.bf16.mxu0 0
    %435 = vmatpush1.bf16.xpose.msra.mxu0 0
    %436 = vmatprep.subr.bf16.mxu0 0
    %437 = vmatpush1.bf16.xpose.msra.mxu0 0
    %438 = vmatprep.subr.bf16.mxu0 0
    %439 = vmatpush1.bf16.xpose.msra.mxu0 0
    %440 = vmatprep.subr.bf16.mxu0 0
    %441 = vmatpush1.bf16.xpose.msra.mxu0 0
    %442 = vmatprep.subr.bf16.mxu0 0
    %443 = vmatpush1.bf16.xpose.msra.mxu0 0
    %444 = vmatprep.subr.bf16.mxu0 0
    %445 = vmatpush1.bf16.xpose.msra.mxu0 0
    %446 = vmatprep.subr.bf16.mxu0 0
    %447 = vmatpush1.bf16.xpose.msra.mxu0 0
    %448 = vmatprep.subr.bf16.mxu0 0
    %449 = vmatpush1.bf16.xpose.msra.mxu0 0
    %450 = vmatprep.subr.bf16.mxu0 0
    %451 = vmatpush1.bf16.xpose.msra.mxu0 0
    %452 = vmatprep.mubr.bf16.mxu0 0
    %453 = vmatmul.mubr.bf16.gmra.mrb[0].mxu0 %v412
    %v454 = vpop.f32.mrb[0].mxu0
    %v455 = vadd.f32 0.0, %v454
    %v456 = vpop.f32.mrb[0].mxu0
    %v457 = vpop.f32.mrb[0].mxu0
    %v458 = vpop.f32.mrb[0].mxu0
    %459 = vdwg.mxu0
    %v460 = vmul.f32 %v406, 0.35355338
    %v461 = vmul.f32 %v455, 0.35355338
    %v462 = vadd.f32 %v460, %v88
    %v463 = vadd.f32 %v461, %v88
    %v464 = vsel %vm96, %v462, -inf
    %465 = vmax.xlane.f32.xlu0 %v464
    %v466 = vpop.xlane.xlu0 %465
    %v467 = vsel %vm96, %v463, -inf
    %468 = vmax.xlane.f32.xlu0 %v467
    %v469 = vpop.xlane.xlu0 %468
    %v470 = vsub.f32 %v462, %v466
    %v471 = vsub.f32 %v463, %v469
    %v472 = vmul.f32 %v470, 1.442695
    %v473 = vpow.pop %v472
    %v474 = vmul.f32 %v471, 1.442695
    %v475 = vpow.pop %v474
    %v476 = vpack.c.bf16 %v475, %v473
    %v481 = vunpack.c.l.b16 %v89
    %v482 = vunpack.c.l.b16 %v90
    %v483 = vunpack.c.l.b16 %v91
    %v484 = vunpack.c.l.b16 %v92
    %v485 = vpack.c.b16 %v482, %v481
    %v486 = vpack.c.b16 %v484, %v483
    %v490 = vsel %vm96, %v476, 0
    %492 = vmatprep.subr.bf16.mxu0 0
    %493 = vmatpush1.bf16.msra.mxu0 %v485
    %494 = vmatprep.subr.bf16.mxu0 0
    %495 = vmatpush1.bf16.msra.mxu0 %v486
    %496 = vmatprep.subr.bf16.mxu0 0
    %497 = vmatpush1.bf16.msra.mxu0 0
    %498 = vmatprep.subr.bf16.mxu0 0
    %499 = vmatpush1.bf16.msra.mxu0 0
    %500 = vmatprep.subr.bf16.mxu0 0
    %501 = vmatpush1.bf16.msra.mxu0 0
    %502 = vmatprep.subr.bf16.mxu0 0
    %503 = vmatpush1.bf16.msra.mxu0 0
    %504 = vmatprep.subr.bf16.mxu0 0
    %505 = vmatpush1.bf16.msra.mxu0 0
    %506 = vmatprep.subr.bf16.mxu0 0
    %507 = vmatpush1.bf16.msra.mxu0 0
    %508 = vmatprep.subr.bf16.mxu0 0
    %509 = vmatpush1.bf16.msra.mxu0 0
    %510 = vmatprep.subr.bf16.mxu0 0
    %511 = vmatpush1.bf16.msra.mxu0 0
    %512 = vmatprep.subr.bf16.mxu0 0
    %513 = vmatpush1.bf16.msra.mxu0 0
    %514 = vmatprep.subr.bf16.mxu0 0
    %515 = vmatpush1.bf16.msra.mxu0 0
    %516 = vmatprep.subr.bf16.mxu0 0
    %517 = vmatpush1.bf16.msra.mxu0 0
    %518 = vmatprep.subr.bf16.mxu0 0
    %519 = vmatpush1.bf16.msra.mxu0 0
    %520 = vmatprep.subr.bf16.mxu0 0
    %521 = vmatpush1.bf16.msra.mxu0 0
    %522 = vmatprep.subr.bf16.mxu0 0
    %523 = vmatpush1.bf16.msra.mxu0 0
    %524 = vmatprep.mubr.bf16.mxu0 0
    %525 = vmatmul.mubr.bf16.gmra.mrb[0].mxu0 %v490
    %v526 = vpop.f32.mrb[0].mxu0
    %v527 = vadd.f32 0.0, %v526
    %v528 = vpop.f32.mrb[0].mxu0
    %v529 = vpop.f32.mrb[0].mxu0
    %v530 = vadd.f32 0.0, %v529
    %v531 = vpop.f32.mrb[0].mxu0
    %532 = vdwg.mxu0
    %v533 = vpack.c.bf16 %v530, %v527
    %vm534 = vcmask 31744
    %v536 = vsel %vm534, %v533, 0
    %vm538 = vcmask 1041408
    %v540 = vsel %vm538, %v93, 0
    %542 = vmatprep.subr.bf16.mxu0 0
    %543 = vmatpush1.bf16.msra.mxu0 %v540
    %544 = vmatprep.subr.bf16.mxu0 0
    %545 = vmatpush1.bf16.msra.mxu0 0
    %546 = vmatprep.subr.bf16.mxu0 0
    %547 = vmatpush1.bf16.msra.mxu0 0
    %548 = vmatprep.subr.bf16.mxu0 0
    %549 = vmatpush1.bf16.msra.mxu0 0
    %550 = vmatprep.subr.bf16.mxu0 0
    %551 = vmatpush1.bf16.msra.mxu0 0
    %552 = vmatprep.subr.bf16.mxu0 0
    %553 = vmatpush1.bf16.msra.mxu0 0
    %554 = vmatprep.subr.bf16.mxu0 0
    %555 = vmatpush1.bf16.msra.mxu0 0
    %556 = vmatprep.subr.bf16.mxu0 0
    %557 = vmatpush1.bf16.msra.mxu0 0
    %558 = vmatprep.subr.bf16.mxu0 0
    %559 = vmatpush1.bf16.msra.mxu0 0
    %560 = vmatprep.subr.bf16.mxu0 0
    %561 = vmatpush1.bf16.msra.mxu0 0
    %562 = vmatprep.subr.bf16.mxu0 0
    %563 = vmatpush1.bf16.msra.mxu0 0
    %564 = vmatprep.subr.bf16.mxu0 0
    %565 = vmatpush1.bf16.msra.mxu0 0
    %566 = vmatprep.subr.bf16.mxu0 0
    %567 = vmatpush1.bf16.msra.mxu0 0
    %568 = vmatprep.subr.bf16.mxu0 0
    %569 = vmatpush1.bf16.msra.mxu0 0
    %570 = vmatprep.subr.bf16.mxu0 0
    %571 = vmatpush1.bf16.msra.mxu0 0
    %572 = vmatprep.subr.bf16.mxu0 0
    %573 = vmatpush1.bf16.msra.mxu0 0
    %574 = vmatprep.mubr.bf16.mxu0 0
    %575 = vmatmul.mubr.bf16.gmra.mrb[0].mxu0 %v536
    %v576 = vpop.f32.mrb[0].mxu0
    %v577 = vadd.f32 1e-20, %v576
    %v578 = vpop.f32.mrb[0].mxu0
    %v579 = vpop.f32.mrb[0].mxu0
    %v580 = vadd.f32 1e-20, %v579
    %v581 = vpop.f32.mrb[0].mxu0
    %582 = vdwg.mxu0
    %v583 = vrcp.pop %v577
    %v584 = vrcp.pop %v580
    %v585 = vmul.f32 %v473, %v583
    %v586 = vmul.f32 %v475, %v584
    %v587 = vpack.c.bf16 %v585, %v585
    %v588 = vpack.c.bf16 %v586, %v586
    %v590 = vsel %vm96, %v587, 0
    %592 = vmatprep.subr.bf16.mxu0 0
    %593 = vmatpush1.bf16.msra.mxu0 %v356
    %594 = vmatprep.subr.bf16.mxu0 0
    %595 = vmatpush1.bf16.msra.mxu0 %v357
    %596 = vmatprep.subr.bf16.mxu0 0
    %597 = vmatpush1.bf16.msra.mxu0 0
    %598 = vmatprep.subr.bf16.mxu0 0
    %599 = vmatpush1.bf16.msra.mxu0 0
    %600 = vmatprep.subr.bf16.mxu0 0
    %601 = vmatpush1.bf16.msra.mxu0 0
    %602 = vmatprep.subr.bf16.mxu0 0
    %603 = vmatpush1.bf16.msra.mxu0 0
    %604 = vmatprep.subr.bf16.mxu0 0
    %605 = vmatpush1.bf16.msra.mxu0 0
    %606 = vmatprep.subr.bf16.mxu0 0
    %607 = vmatpush1.bf16.msra.mxu0 0
    %608 = vmatprep.subr.bf16.mxu0 0
    %609 = vmatpush1.bf16.msra.mxu0 0
    %610 = vmatprep.subr.bf16.mxu0 0
    %611 = vmatpush1.bf16.msra.mxu0 0
    %612 = vmatprep.subr.bf16.mxu0 0
    %613 = vmatpush1.bf16.msra.mxu0 0
    %614 = vmatprep.subr.bf16.mxu0 0
    %615 = vmatpush1.bf16.msra.mxu0 0
    %616 = vmatprep.subr.bf16.mxu0 0
    %617 = vmatpush1.bf16.msra.mxu0 0
    %618 = vmatprep.subr.bf16.mxu0 0
    %619 = vmatpush1.bf16.msra.mxu0 0
    %620 = vmatprep.subr.bf16.mxu0 0
    %621 = vmatpush1.bf16.msra.mxu0 0
    %622 = vmatprep.subr.bf16.mxu0 0
    %623 = vmatpush1.bf16.msra.mxu0 0
    %624 = vmatprep.mubr.bf16.mxu0 0
    %625 = vmatmul.mubr.bf16.gmra.mrb[0].mxu0 %v590
    %v626 = vpop.f32.mrb[0].mxu0
    %v627 = vadd.f32 0.0, %v626
    %v628 = vpop.f32.mrb[0].mxu0
    %v629 = vpop.f32.mrb[0].mxu0
    %v630 = vpop.f32.mrb[0].mxu0
    %631 = vdwg.mxu0
    %v633 = vsel %vm96, %v588, 0
    %635 = vmatprep.subr.bf16.mxu0 0
    %636 = vmatpush1.bf16.msra.mxu0 %v358
    %637 = vmatprep.subr.bf16.mxu0 0
    %638 = vmatpush1.bf16.msra.mxu0 %v359
    %639 = vmatprep.subr.bf16.mxu0 0
    %640 = vmatpush1.bf16.msra.mxu0 0
    %641 = vmatprep.subr.bf16.mxu0 0
    %642 = vmatpush1.bf16.msra.mxu0 0
    %643 = vmatprep.subr.bf16.mxu0 0
    %644 = vmatpush1.bf16.msra.mxu0 0
    %645 = vmatprep.subr.bf16.mxu0 0
    %646 = vmatpush1.bf16.msra.mxu0 0
    %647 = vmatprep.subr.bf16.mxu0 0
    %648 = vmatpush1.bf16.msra.mxu0 0
    %649 = vmatprep.subr.bf16.mxu0 0
    %650 = vmatpush1.bf16.msra.mxu0 0
    %651 = vmatprep.subr.bf16.mxu0 0
    %652 = vmatpush1.bf16.msra.mxu0 0
    %653 = vmatprep.subr.bf16.mxu0 0
    %654 = vmatpush1.bf16.msra.mxu0 0
    %655 = vmatprep.subr.bf16.mxu0 0
    %656 = vmatpush1.bf16.msra.mxu0 0
    %657 = vmatprep.subr.bf16.mxu0 0
    %658 = vmatpush1.bf16.msra.mxu0 0
    %659 = vmatprep.subr.bf16.mxu0 0
    %660 = vmatpush1.bf16.msra.mxu0 0
    %661 = vmatprep.subr.bf16.mxu0 0
    %662 = vmatpush1.bf16.msra.mxu0 0
    %663 = vmatprep.subr.bf16.mxu0 0
    %664 = vmatpush1.bf16.msra.mxu0 0
    %665 = vmatprep.subr.bf16.mxu0 0
    %666 = vmatpush1.bf16.msra.mxu0 0
    %667 = vmatprep.mubr.bf16.mxu0 0
    %668 = vmatmul.mubr.bf16.gmra.mrb[0].mxu0 %v633
    %v669 = vpop.f32.mrb[0].mxu0
    %v670 = vadd.f32 0.0, %v669
    %v671 = vpop.f32.mrb[0].mxu0
    %v672 = vpop.f32.mrb[0].mxu0
    %v673 = vpop.f32.mrb[0].mxu0
    %674 = vdwg.mxu0
    %v675 = vld [vmem:[%s14] sm:$0xf]
    %v676 = vld [vmem:[%s14 + $0x4] sm:$0xf]
    %v677 = vld [vmem:[%s14 + $0x8] sm:$0xf]
    %v678 = vld [vmem:[%s14 + $0xc] sm:$0xf]
    %v679 = vpack.c.bf16 %v670, %v627
    %v684 = vunpack.c.l.b16 %v675
    %v685 = vunpack.c.l.b16 %v676
    %v686 = vunpack.c.l.b16 %v677
    %v687 = vunpack.c.l.b16 %v678
    %v688 = vpack.c.b16 %v685, %v684
    %v689 = vpack.c.b16 %v687, %v686
    %v693 = vsel %vm96, %v679, 0
    %695 = vmatprep.subr.bf16.mxu0 0
    %696 = vmatpush1.bf16.msra.mxu0 %v688
    %697 = vmatprep.subr.bf16.mxu0 0
    %698 = vmatpush1.bf16.msra.mxu0 %v689
    %699 = vmatprep.subr.bf16.mxu0 0
    %700 = vmatpush1.bf16.msra.mxu0 0
    %701 = vmatprep.subr.bf16.mxu0 0
    %702 = vmatpush1.bf16.msra.mxu0 0
    %703 = vmatprep.subr.bf16.mxu0 0
    %704 = vmatpush1.bf16.msra.mxu0 0
    %705 = vmatprep.subr.bf16.mxu0 0
    %706 = vmatpush1.bf16.msra.mxu0 0
    %707 = vmatprep.subr.bf16.mxu0 0
    %708 = vmatpush1.bf16.msra.mxu0 0
    %709 = vmatprep.subr.bf16.mxu0 0
    %710 = vmatpush1.bf16.msra.mxu0 0
    %711 = vmatprep.subr.bf16.mxu0 0
    %712 = vmatpush1.bf16.msra.mxu0 0
    %713 = vmatprep.subr.bf16.mxu0 0
    %714 = vmatpush1.bf16.msra.mxu0 0
    %715 = vmatprep.subr.bf16.mxu0 0
    %716 = vmatpush1.bf16.msra.mxu0 0
    %717 = vmatprep.subr.bf16.mxu0 0
    %718 = vmatpush1.bf16.msra.mxu0 0
    %719 = vmatprep.subr.bf16.mxu0 0
    %720 = vmatpush1.bf16.msra.mxu0 0
    %721 = vmatprep.subr.bf16.mxu0 0
    %722 = vmatpush1.bf16.msra.mxu0 0
    %723 = vmatprep.subr.bf16.mxu0 0
    %724 = vmatpush1.bf16.msra.mxu0 0
    %725 = vmatprep.subr.bf16.mxu0 0
    %726 = vmatpush1.bf16.msra.mxu0 0
    %727 = vmatprep.mubr.bf16.mxu0 0
    %728 = vmatmul.mubr.bf16.gmra.mrb[0].mxu0 %v693
    %v729 = vpop.f32.mrb[0].mxu0
    %v730 = vadd.f32 0.0, %v729
    %v731 = vpop.f32.mrb[0].mxu0
    %v732 = vpop.f32.mrb[0].mxu0
    %v733 = vadd.f32 0.0, %v732
    %v734 = vpop.f32.mrb[0].mxu0
    %735 = vdwg.mxu0
    %v736 = vadd.f32 %v82, %v730
    %v737 = vadd.f32 %v83, %v733
    %v738 = vld [vmem:[%s15] sm:$0x1]
    %v740 = vlaneseq
    %v741 = vshrl.u32 %v740, 7
    %v742 = vsub.s32 0, %v741
    %v743 = vrot.slane %v738, %v742
    %v745 = vadd.f32 %v736, %v743
    %v746 = vadd.f32 %v737, %v743
    %v747 = vld [vmem:[%s16] sm:$0x1]
    %v748 = vld [vmem:[%s17] sm:$0x1]
    %v749 = vsel %vm96, %v745, 0.0
    %750 = vadd.xlane.f32.xlu0 %v749
    %v751 = vpop.xlane.xlu0 %750
    %v752 = vsel %vm96, %v746, 0.0
    %753 = vadd.xlane.f32.xlu0 %v752
    %v754 = vpop.xlane.xlu0 %753
    %v755 = vmul.f32 %v751, %v103
    %v756 = vmul.f32 %v754, %v103
    %v757 = vsub.f32 %v745, %v755
    %v758 = vsub.f32 %v746, %v756
    %v759 = vmul.f32 %v757, %v757
    %v760 = vmul.f32 %v758, %v758
    %v761 = vsel %vm96, %v759, 0.0
    %762 = vadd.xlane.f32.xlu0 %v761
    %v763 = vpop.xlane.xlu0 %762
    %v764 = vsel %vm96, %v760, 0.0
    %765 = vadd.xlane.f32.xlu0 %v764
    %v766 = vpop.xlane.xlu0 %765
    %v767 = vmul.f32 %v763, %v103
    %v768 = vmul.f32 %v766, %v103
    %v769 = vadd.f32 %v767, 1e-05
    %v770 = vadd.f32 %v768, 1e-05
    %v771 = vrsqrt.pop %v769
    %v772 = vrsqrt.pop %v770
    %v773 = vmul.f32 %v757, %v771
    %v774 = vmul.f32 %v758, %v772
    %v776 = vlaneseq
    %v777 = vshrl.u32 %v776, 7
    %v778 = vsub.s32 0, %v777
    %v779 = vrot.slane %v747, %v778
    %v781 = vmul.f32 %v773, %v779
    %v782 = vmul.f32 %v774, %v779
    %v784 = vlaneseq
    %v785 = vshrl.u32 %v784, 7
    %v786 = vsub.s32 0, %v785
    %v787 = vrot.slane %v748, %v786
    %v789 = vadd.f32 %v781, %v787
    %v790 = vadd.f32 %v782, %v787
    %v791 = vld [vmem:[%s18] sm:$0xf]
    %v792 = vld [vmem:[%s18 + $0x4] sm:$0xf]
    %v793 = vld [vmem:[%s18 + $0x8] sm:$0xf]
    %v794 = vld [vmem:[%s18 + $0xc] sm:$0xf]
    %v795 = vpack.c.bf16 %v790, %v789
    %v796 = vld [vmem:[%s19] sm:$0x1]
    %v798 = vlaneseq
    %v799 = vshrl.u32 %v798, 7
    %v800 = vsub.s32 0, %v799
    %v801 = vrot.slane %v796, %v800
    %v807 = vunpack.c.l.b16 %v791
    %v808 = vunpack.c.l.b16 %v792
    %v809 = vunpack.c.l.b16 %v793
    %v810 = vunpack.c.l.b16 %v794
    %v811 = vpack.c.b16 %v808, %v807
    %v812 = vpack.c.b16 %v810, %v809
    %v816 = vsel %vm96, %v795, 0
    %818 = vmatprep.subr.bf16.mxu0 0
    %819 = vmatpush1.bf16.msra.mxu0 %v811
    %820 = vmatprep.subr.bf16.mxu0 0
    %821 = vmatpush1.bf16.msra.mxu0 %v812
    %822 = vmatprep.subr.bf16.mxu0 0
    %823 = vmatpush1.bf16.msra.mxu0 0
    %824 = vmatprep.subr.bf16.mxu0 0
    %825 = vmatpush1.bf16.msra.mxu0 0
    %826 = vmatprep.subr.bf16.mxu0 0
    %827 = vmatpush1.bf16.msra.mxu0 0
    %828 = vmatprep.subr.bf16.mxu0 0
    %829 = vmatpush1.bf16.msra.mxu0 0
    %830 = vmatprep.subr.bf16.mxu0 0
    %831 = vmatpush1.bf16.msra.mxu0 0
    %832 = vmatprep.subr.bf16.mxu0 0
    %833 = vmatpush1.bf16.msra.mxu0 0
    %834 = vmatprep.subr.bf16.mxu0 0
    %835 = vmatpush1.bf16.msra.mxu0 0
    %836 = vmatprep.subr.bf16.mxu0 0
    %837 = vmatpush1.bf16.msra.mxu0 0
    %838 = vmatprep.subr.bf16.mxu0 0
    %839 = vmatpush1.bf16.msra.mxu0 0
    %840 = vmatprep.subr.bf16.mxu0 0
    %841 = vmatpush1.bf16.msra.mxu0 0
    %842 = vmatprep.subr.bf16.mxu0 0
    %843 = vmatpush1.bf16.msra.mxu0 0
    %844 = vmatprep.subr.bf16.mxu0 0
    %845 = vmatpush1.bf16.msra.mxu0 0
    %846 = vmatprep.subr.bf16.mxu0 0
    %847 = vmatpush1.bf16.msra.mxu0 0
    %848 = vmatprep.subr.bf16.mxu0 0
    %849 = vmatpush1.bf16.msra.mxu0 0
    %850 = vmatprep.mubr.bf16.mxu0 0
    %851 = vmatmul.mubr.bf16.gmra.mrb[0].mxu0 %v816
    %v852 = vpop.f32.mrb[0].mxu0
    %v853 = vadd.f32 %v801, %v852
    %v854 = vpop.f32.mrb[0].mxu0
    %v855 = vpop.f32.mrb[0].mxu0
    %v856 = vadd.f32 %v801, %v855
    %v857 = vpop.f32.mrb[0].mxu0
    %858 = vdwg.mxu0
    %v859 = vmul.f32 %v853, 1.702
    %v860 = vmul.f32 %v856, 1.702
    %v861 = vxor.u32 %v859, 2147483648
    %v862 = vxor.u32 %v860, 2147483648
    %v863 = vmul.f32 %v861, 1.442695
    %v864 = vpow.pop %v863
    %v865 = vmul.f32 %v862, 1.442695
    %v866 = vpow.pop %v865
    %v867 = vadd.f32 %v864, 1.0
    %v868 = vadd.f32 %v866, 1.0
    %v869 = vrcp.pop %v867
    %v870 = vmul.f32 1.0, %v869
    %v871 = vrcp.pop %v868
    %v872 = vmul.f32 1.0, %v871
    %v873 = vmul.f32 %v853, %v870
    %v874 = vmul.f32 %v856, %v872
    %v875 = vld [vmem:[%s20] sm:$0xf]
    %v876 = vld [vmem:[%s20 + $0x4] sm:$0xf]
    %v877 = vld [vmem:[%s20 + $0x8] sm:$0xf]
    %v878 = vld [vmem:[%s20 + $0xc] sm:$0xf]
    %v879 = vld [vmem:[%s20 + $0x10] sm:$0xf]
    %v880 = vld [vmem:[%s20 + $0x14] sm:$0xf]
    %v881 = vld [vmem:[%s20 + $0x18] sm:$0xf]
    %v882 = vld [vmem:[%s20 + $0x1c] sm:$0xf]
    %v883 = vld [vmem:[%s20 + $0x20] sm:$0xf]
    %v884 = vld [vmem:[%s20 + $0x24] sm:$0xf]
    %v885 = vld [vmem:[%s20 + $0x28] sm:$0xf]
    %v886 = vld [vmem:[%s20 + $0x2c] sm:$0xf]
    %v887 = vld [vmem:[%s20 + $0x30] sm:$0xf]
    %v888 = vld [vmem:[%s20 + $0x34] sm:$0xf]
    %v889 = vld [vmem:[%s20 + $0x38] sm:$0xf]
    %v890 = vld [vmem:[%s20 + $0x3c] sm:$0xf]
    %v891 = vpack.c.bf16 %v874, %v873
    %v908 = vunpack.c.l.b16 %v875
    %v909 = vunpack.c.l.b16 %v876
    %v910 = vunpack.c.l.b16 %v877
    %v911 = vunpack.c.l.b16 %v878
    %v912 = vunpack.c.l.b16 %v879
    %v913 = vunpack.c.l.b16 %v880
    %v914 = vunpack.c.l.b16 %v881
    %v915 = vunpack.c.l.b16 %v882
    %v916 = vunpack.c.l.b16 %v883
    %v917 = vunpack.c.l.b16 %v884
    %v918 = vunpack.c.l.b16 %v885
    %v919 = vunpack.c.l.b16 %v886
    %v920 = vunpack.c.l.b16 %v887
    %v921 = vunpack.c.l.b16 %v888
    %v922 = vunpack.c.l.b16 %v889
    %v923 = vunpack.c.l.b16 %v890
    %v924 = vpack.c.b16 %v909, %v908
    %v925 = vpack.c.b16 %v911, %v910
    %v926 = vpack.c.b16 %v913, %v912
    %v927 = vpack.c.b16 %v915, %v914
    %v928 = vpack.c.b16 %v917, %v916
    %v929 = vpack.c.b16 %v919, %v918
    %v930 = vpack.c.b16 %v921, %v920
    %v931 = vpack.c.b16 %v923, %v922
    %940 = vmatprep.subr.bf16.mxu0 0
    %941 = vmatpush1.bf16.msra.mxu0 %v924
    %942 = vmatprep.subr.bf16.mxu0 0
    %943 = vmatpush1.bf16.msra.mxu0 %v925
    %944 = vmatprep.subr.bf16.mxu0 0
    %945 = vmatpush1.bf16.msra.mxu0 %v926
    %946 = vmatprep.subr.bf16.mxu0 0
    %947 = vmatpush1.bf16.msra.mxu0 %v927
    %948 = vmatprep.subr.bf16.mxu0 0
    %949 = vmatpush1.bf16.msra.mxu0 %v928
    %950 = vmatprep.subr.bf16.mxu0 0
    %951 = vmatpush1.bf16.msra.mxu0 %v929
    %952 = vmatprep.subr.bf16.mxu0 0
    %953 = vmatpush1.bf16.msra.mxu0 %v930
    %954 = vmatprep.subr.bf16.mxu0 0
    %955 = vmatpush1.bf16.msra.mxu0 %v931
    %956 = vmatprep.subr.bf16.mxu0 0
    %957 = vmatpush1.bf16.msra.mxu0 0
    %958 = vmatprep.subr.bf16.mxu0 0
    %959 = vmatpush1.bf16.msra.mxu0 0
    %960 = vmatprep.subr.bf16.mxu0 0
    %961 = vmatpush1.bf16.msra.mxu0 0
    %962 = vmatprep.subr.bf16.mxu0 0
    %963 = vmatpush1.bf16.msra.mxu0 0
    %964 = vmatprep.subr.bf16.mxu0 0
    %965 = vmatpush1.bf16.msra.mxu0 0
    %966 = vmatprep.subr.bf16.mxu0 0
    %967 = vmatpush1.bf16.msra.mxu0 0
    %968 = vmatprep.subr.bf16.mxu0 0
    %969 = vmatpush1.bf16.msra.mxu0 0
    %970 = vmatprep.subr.bf16.mxu0 0
    %971 = vmatpush1.bf16.msra.mxu0 0
    %972 = vmatprep.mubr.bf16.mxu0 0
    %973 = vmatmul.mubr.bf16.gmra.mrb[0].mxu0 %v891
    %v974 = vpop.f32.mrb[0].mxu0
    %v975 = vadd.f32 0.0, %v974
    %v976 = vpop.f32.mrb[0].mxu0
    %v977 = vpop.f32.mrb[0].mxu0
    %v978 = vadd.f32 0.0, %v977
    %v979 = vpop.f32.mrb[0].mxu0
    %980 = vdwg.mxu0
    %v981 = vadd.f32 %v745, %v975
    %v982 = vadd.f32 %v746, %v978
    %v983 = vld [vmem:[%s21] sm:$0x1]
    %v985 = vlaneseq
    %v986 = vshrl.u32 %v985, 7
    %v987 = vsub.s32 0, %v986
    %v988 = vrot.slane %v983, %v987
    %v990 = vadd.f32 %v981, %v988
    %v991 = vadd.f32 %v982, %v988
    %s992 = scalar_lea.vmem %s6, 1
    %v993 = vld [vmem:[%s992] sm:$0x1]
    %s994 = scalar_lea.vmem %s7, 1
    %v995 = vld [vmem:[%s994] sm:$0x1]
    %v996 = vsel %vm96, %v990, 0.0
    %997 = vadd.xlane.f32.xlu0 %v996
    %v998 = vpop.xlane.xlu0 %997
    %v999 = vsel %vm96, %v991, 0.0
    %1000 = vadd.xlane.f32.xlu0 %v999
    %v1001 = vpop.xlane.xlu0 %1000
    %v1002 = vmul.f32 %v998, %v103
    %v1003 = vmul.f32 %v1001, %v103
    %v1004 = vsub.f32 %v990, %v1002
    %v1005 = vsub.f32 %v991, %v1003
    %v1006 = vmul.f32 %v1004, %v1004
    %v1007 = vmul.f32 %v1005, %v1005
    %v1008 = vsel %vm96, %v1006, 0.0
    %1009 = vadd.xlane.f32.xlu0 %v1008
    %v1010 = vpop.xlane.xlu0 %1009
    %v1011 = vsel %vm96, %v1007, 0.0
    %1012 = vadd.xlane.f32.xlu0 %v1011
    %v1013 = vpop.xlane.xlu0 %1012
    %v1014 = vmul.f32 %v1010, %v103
    %v1015 = vmul.f32 %v1013, %v103
    %v1016 = vadd.f32 %v1014, 1e-05
    %v1017 = vadd.f32 %v1015, 1e-05
    %v1018 = vrsqrt.pop %v1016
    %v1019 = vrsqrt.pop %v1017
    %v1020 = vmul.f32 %v1004, %v1018
    %v1021 = vmul.f32 %v1005, %v1019
    %v1023 = vlaneseq
    %v1024 = vshrl.u32 %v1023, 7
    %v1025 = vsub.s32 0, %v1024
    %v1026 = vrot.slane %v993, %v1025
    %v1028 = vmul.f32 %v1020, %v1026
    %v1029 = vmul.f32 %v1021, %v1026
    %v1031 = vlaneseq
    %v1032 = vshrl.u32 %v1031, 7
    %v1033 = vsub.s32 0, %v1032
    %v1034 = vrot.slane %v995, %v1033
    %v1036 = vadd.f32 %v1028, %v1034
    %v1037 = vadd.f32 %v1029, %v1034
    %s1038 = scalar_lea.vmem %s8, 16
    %v1039 = vld [vmem:[%s1038] sm:$0xf]
    %v1040 = vld [vmem:[%s1038 + $0x4] sm:$0xf]
    %v1041 = vld [vmem:[%s1038 + $0x8] sm:$0xf]
    %v1042 = vld [vmem:[%s1038 + $0xc] sm:$0xf]
    %v1043 = vpack.c.bf16 %v1037, %v1036
    %s1044 = scalar_lea.vmem %s9, 1
    %v1045 = vld [vmem:[%s1044] sm:$0x1]
    %v1047 = vlaneseq
    %v1048 = vshrl.u32 %v1047, 7
    %v1049 = vsub.s32 0, %v1048
    %v1050 = vrot.slane %v1045, %v1049
    %v1056 = vunpack.c.l.b16 %v1039
    %v1057 = vunpack.c.l.b16 %v1040
    %v1058 = vunpack.c.l.b16 %v1041
    %v1059 = vunpack.c.l.b16 %v1042
    %v1060 = vpack.c.b16 %v1057, %v1056
    %v1061 = vpack.c.b16 %v1059, %v1058
    %v1065 = vsel %vm96, %v1043, 0
    %1067 = vmatprep.subr.bf16.mxu0 0
    %1068 = vmatpush1.bf16.msra.mxu0 %v1060
    %1069 = vmatprep.subr.bf16.mxu0 0
    %1070 = vmatpush1.bf16.msra.mxu0 %v1061
    %1071 = vmatprep.subr.bf16.mxu0 0
    %1072 = vmatpush1.bf16.msra.mxu0 0
    %1073 = vmatprep.subr.bf16.mxu0 0
    %1074 = vmatpush1.bf16.msra.mxu0 0
    %1075 = vmatprep.subr.bf16.mxu0 0
    %1076 = vmatpush1.bf16.msra.mxu0 0
    %1077 = vmatprep.subr.bf16.mxu0 0
    %1078 = vmatpush1.bf16.msra.mxu0 0
    %1079 = vmatprep.subr.bf16.mxu0 0
    %1080 = vmatpush1.bf16.msra.mxu0 0
    %1081 = vmatprep.subr.bf16.mxu0 0
    %1082 = vmatpush1.bf16.msra.mxu0 0
    %1083 = vmatprep.subr.bf16.mxu0 0
    %1084 = vmatpush1.bf16.msra.mxu0 0
    %1085 = vmatprep.subr.bf16.mxu0 0
    %1086 = vmatpush1.bf16.msra.mxu0 0
    %1087 = vmatprep.subr.bf16.mxu0 0
    %1088 = vmatpush1.bf16.msra.mxu0 0
    %1089 = vmatprep.subr.bf16.mxu0 0
    %1090 = vmatpush1.bf16.msra.mxu0 0
    %1091 = vmatprep.subr.bf16.mxu0 0
    %1092 = vmatpush1.bf16.msra.mxu0 0
    %1093 = vmatprep.subr.bf16.mxu0 0
    %1094 = vmatpush1.bf16.msra.mxu0 0
    %1095 = vmatprep.subr.bf16.mxu0 0
    %1096 = vmatpush1.bf16.msra.mxu0 0
    %1097 = vmatprep.subr.bf16.mxu0 0
    %1098 = vmatpush1.bf16.msra.mxu0 0
    %1099 = vmatprep.mubr.bf16.mxu0 0
    %1100 = vmatmul.mubr.bf16.gmra.mrb[0].mxu0 %v1065
    %v1101 = vpop.f32.mrb[0].mxu0
    %v1102 = vadd.f32 %v1050, %v1101
    %v1103 = vpop.f32.mrb[0].mxu0
    %v1104 = vpop.f32.mrb[0].mxu0
    %v1105 = vadd.f32 %v1050, %v1104
    %v1106 = vpop.f32.mrb[0].mxu0
    %1107 = vdwg.mxu0
    %s1108 = scalar_lea.vmem %s10, 16
    %v1109 = vld [vmem:[%s1108] sm:$0xf]
    %v1110 = vld [vmem:[%s1108 + $0x4] sm:$0xf]
    %v1111 = vld [vmem:[%s1108 + $0x8] sm:$0xf]
    %v1112 = vld [vmem:[%s1108 + $0xc] sm:$0xf]
    %s1113 = scalar_lea.vmem %s11, 1
    %v1114 = vld [vmem:[%s1113] sm:$0x1]
    %v1116 = vlaneseq
    %v1117 = vshrl.u32 %v1116, 7
    %v1118 = vsub.s32 0, %v1117
    %v1119 = vrot.slane %v1114, %v1118
    %v1125 = vunpack.c.l.b16 %v1109
    %v1126 = vunpack.c.l.b16 %v1110
    %v1127 = vunpack.c.l.b16 %v1111
    %v1128 = vunpack.c.l.b16 %v1112
    %v1129 = vpack.c.b16 %v1126, %v1125
    %v1130 = vpack.c.b16 %v1128, %v1127
    %1133 = vmatprep.subr.bf16.mxu0 0
    %1134 = vmatpush1.bf16.msra.mxu0 %v1129
    %1135 = vmatprep.subr.bf16.mxu0 0
    %1136 = vmatpush1.bf16.msra.mxu0 %v1130
    %1137 = vmatprep.subr.bf16.mxu0 0
    %1138 = vmatpush1.bf16.msra.mxu0 0
    %1139 = vmatprep.subr.bf16.mxu0 0
    %1140 = vmatpush1.bf16.msra.mxu0 0
    %1141 = vmatprep.subr.bf16.mxu0 0
    %1142 = vmatpush1.bf16.msra.mxu0 0
    %1143 = vmatprep.subr.bf16.mxu0 0
    %1144 = vmatpush1.bf16.msra.mxu0 0
    %1145 = vmatprep.subr.bf16.mxu0 0
    %1146 = vmatpush1.bf16.msra.mxu0 0
    %1147 = vmatprep.subr.bf16.mxu0 0
    %1148 = vmatpush1.bf16.msra.mxu0 0
    %1149 = vmatprep.subr.bf16.mxu0 0
    %1150 = vmatpush1.bf16.msra.mxu0 0
    %1151 = vmatprep.subr.bf16.mxu0 0
    %1152 = vmatpush1.bf16.msra.mxu0 0
    %1153 = vmatprep.subr.bf16.mxu0 0
    %1154 = vmatpush1.bf16.msra.mxu0 0
    %1155 = vmatprep.subr.bf16.mxu0 0
    %1156 = vmatpush1.bf16.msra.mxu0 0
    %1157 = vmatprep.subr.bf16.mxu0 0
    %1158 = vmatpush1.bf16.msra.mxu0 0
    %1159 = vmatprep.subr.bf16.mxu0 0
    %1160 = vmatpush1.bf16.msra.mxu0 0
    %1161 = vmatprep.subr.bf16.mxu0 0
    %1162 = vmatpush1.bf16.msra.mxu0 0
    %1163 = vmatprep.subr.bf16.mxu0 0
    %1164 = vmatpush1.bf16.msra.mxu0 0
    %1165 = vmatprep.mubr.bf16.mxu0 0
    %1166 = vmatmul.mubr.bf16.gmra.mrb[0].mxu0 %v1065
    %v1167 = vpop.f32.mrb[0].mxu0
    %v1168 = vadd.f32 %v1119, %v1167
    %v1169 = vpop.f32.mrb[0].mxu0
    %v1170 = vpop.f32.mrb[0].mxu0
    %v1171 = vadd.f32 %v1119, %v1170
    %v1172 = vpop.f32.mrb[0].mxu0
    %1173 = vdwg.mxu0
    %s1174 = scalar_lea.vmem %s12, 16
    %v1175 = vld [vmem:[%s1174] sm:$0xf]
    %v1176 = vld [vmem:[%s1174 + $0x4] sm:$0xf]
    %v1177 = vld [vmem:[%s1174 + $0x8] sm:$0xf]
    %v1178 = vld [vmem:[%s1174 + $0xc] sm:$0xf]
    %s1179 = scalar_lea.vmem %s13, 1
    %v1180 = vld [vmem:[%s1179] sm:$0x1]
    %v1182 = vlaneseq
    %v1183 = vshrl.u32 %v1182, 7
    %v1184 = vsub.s32 0, %v1183
    %v1185 = vrot.slane %v1180, %v1184
    %v1191 = vunpack.c.l.b16 %v1175
    %v1192 = vunpack.c.l.b16 %v1176
    %v1193 = vunpack.c.l.b16 %v1177
    %v1194 = vunpack.c.l.b16 %v1178
    %v1195 = vpack.c.b16 %v1192, %v1191
    %v1196 = vpack.c.b16 %v1194, %v1193
    %1199 = vmatprep.subr.bf16.mxu0 0
    %1200 = vmatpush1.bf16.msra.mxu0 %v1195
    %1201 = vmatprep.subr.bf16.mxu0 0
    %1202 = vmatpush1.bf16.msra.mxu0 %v1196
    %1203 = vmatprep.subr.bf16.mxu0 0
    %1204 = vmatpush1.bf16.msra.mxu0 0
    %1205 = vmatprep.subr.bf16.mxu0 0
    %1206 = vmatpush1.bf16.msra.mxu0 0
    %1207 = vmatprep.subr.bf16.mxu0 0
    %1208 = vmatpush1.bf16.msra.mxu0 0
    %1209 = vmatprep.subr.bf16.mxu0 0
    %1210 = vmatpush1.bf16.msra.mxu0 0
    %1211 = vmatprep.subr.bf16.mxu0 0
    %1212 = vmatpush1.bf16.msra.mxu0 0
    %1213 = vmatprep.subr.bf16.mxu0 0
    %1214 = vmatpush1.bf16.msra.mxu0 0
    %1215 = vmatprep.subr.bf16.mxu0 0
    %1216 = vmatpush1.bf16.msra.mxu0 0
    %1217 = vmatprep.subr.bf16.mxu0 0
    %1218 = vmatpush1.bf16.msra.mxu0 0
    %1219 = vmatprep.subr.bf16.mxu0 0
    %1220 = vmatpush1.bf16.msra.mxu0 0
    %1221 = vmatprep.subr.bf16.mxu0 0
    %1222 = vmatpush1.bf16.msra.mxu0 0
    %1223 = vmatprep.subr.bf16.mxu0 0
    %1224 = vmatpush1.bf16.msra.mxu0 0
    %1225 = vmatprep.subr.bf16.mxu0 0
    %1226 = vmatpush1.bf16.msra.mxu0 0
    %1227 = vmatprep.subr.bf16.mxu0 0
    %1228 = vmatpush1.bf16.msra.mxu0 0
    %1229 = vmatprep.subr.bf16.mxu0 0
    %1230 = vmatpush1.bf16.msra.mxu0 0
    %1231 = vmatprep.mubr.bf16.mxu0 0
    %1232 = vmatmul.mubr.bf16.gmra.mrb[0].mxu0 %v1065
    %v1233 = vpop.f32.mrb[0].mxu0
    %v1234 = vadd.f32 %v1185, %v1233
    %v1235 = vpop.f32.mrb[0].mxu0
    %v1236 = vpop.f32.mrb[0].mxu0
    %v1237 = vadd.f32 %v1185, %v1236
    %v1238 = vpop.f32.mrb[0].mxu0
    %1239 = vdwg.mxu0
    %v1240 = vmul.f32 %v1168, %v84
    %v1241 = vmul.f32 %v1168, %v85
    %v1242 = vmul.f32 %v1168, %v86
    %v1243 = vmul.f32 %v1168, %v87
    %v1244 = vmul.f32 %v1171, %v84
    %v1245 = vmul.f32 %v1171, %v85
    %v1246 = vmul.f32 %v1171, %v86
    %v1247 = vmul.f32 %v1171, %v87
    %v1248 = vpack.c.bf16 %v1241, %v1240
    %v1249 = vpack.c.bf16 %v1243, %v1242
    %v1250 = vpack.c.bf16 %v1245, %v1244
    %v1251 = vpack.c.bf16 %v1247, %v1246
    %v1252 = vmul.f32 %v1234, %v84
    %v1253 = vmul.f32 %v1234, %v85
    %v1254 = vmul.f32 %v1234, %v86
    %v1255 = vmul.f32 %v1234, %v87
    %v1256 = vmul.f32 %v1237, %v84
    %v1257 = vmul.f32 %v1237, %v85
    %v1258 = vmul.f32 %v1237, %v86
    %v1259 = vmul.f32 %v1237, %v87
    %v1260 = vpack.c.bf16 %v1253, %v1252
    %v1261 = vpack.c.bf16 %v1255, %v1254
    %v1262 = vpack.c.bf16 %v1257, %v1256
    %v1263 = vpack.c.bf16 %v1259, %v1258
    %v1264 = vpack.c.bf16 %v1102, %v1102
    %v1265 = vpack.c.bf16 %v1105, %v1105
    %v1267 = vsel %vm96, %v1264, 0
    %v1270 = vsel %vm96, %v1248, 0
    %v1273 = vsel %vm96, %v1249, 0
    %1275 = vmatprep.subr.bf16.mxu0 0
    %1276 = vmatpush1.bf16.xpose.msra.mxu0 %v1270
    %1277 = vmatprep.subr.bf16.mxu0 0
    %1278 = vmatpush1.bf16.xpose.msra.mxu0 %v1273
    %1279 = vmatprep.subr.bf16.mxu0 0
    %1280 = vmatpush1.bf16.xpose.msra.mxu0 0
    %1281 = vmatprep.subr.bf16.mxu0 0
    %1282 = vmatpush1.bf16.xpose.msra.mxu0 0
    %1283 = vmatprep.subr.bf16.mxu0 0
    %1284 = vmatpush1.bf16.xpose.msra.mxu0 0
    %1285 = vmatprep.subr.bf16.mxu0 0
    %1286 = vmatpush1.bf16.xpose.msra.mxu0 0
    %1287 = vmatprep.subr.bf16.mxu0 0
    %1288 = vmatpush1.bf16.xpose.msra.mxu0 0
    %1289 = vmatprep.subr.bf16.mxu0 0
    %1290 = vmatpush1.bf16.xpose.msra.mxu0 0
    %1291 = vmatprep.subr.bf16.mxu0 0
    %1292 = vmatpush1.bf16.xpose.msra.mxu0 0
    %1293 = vmatprep.subr.bf16.mxu0 0
    %1294 = vmatpush1.bf16.xpose.msra.mxu0 0
    %1295 = vmatprep.subr.bf16.mxu0 0
    %1296 = vmatpush1.bf16.xpose.msra.mxu0 0
    %1297 = vmatprep.subr.bf16.mxu0 0
    %1298 = vmatpush1.bf16.xpose.msra.mxu0 0
    %1299 = vmatprep.subr.bf16.mxu0 0
    %1300 = vmatpush1.bf16.xpose.msra.mxu0 0
    %1301 = vmatprep.subr.bf16.mxu0 0
    %1302 = vmatpush1.bf16.xpose.msra.mxu0 0
    %1303 = vmatprep.subr.bf16.mxu0 0
    %1304 = vmatpush1.bf16.xpose.msra.mxu0 0
    %1305 = vmatprep.subr.bf16.mxu0 0
    %1306 = vmatpush1.bf16.xpose.msra.mxu0 0
    %1307 = vmatprep.mubr.bf16.mxu0 0
    %1308 = vmatmul.mubr.bf16.gmra.mrb[0].mxu0 %v1267
    %v1309 = vpop.f32.mrb[0].mxu0
    %v1310 = vadd.f32 0.0, %v1309
    %v1311 = vpop.f32.mrb[0].mxu0
    %v1312 = vpop.f32.mrb[0].mxu0
    %v1313 = vpop.f32.mrb[0].mxu0
    %1314 = vdwg.mxu0
    %v1316 = vsel %vm96, %v1265, 0
    %v1319 = vsel %vm96, %v1250, 0
    %v1322 = vsel %vm96, %v1251, 0
    %1324 = vmatprep.subr.bf16.mxu0 0
    %1325 = vmatpush1.bf16.xpose.msra.mxu0 %v1319
    %1326 = vmatprep.subr.bf16.mxu0 0
    %1327 = vmatpush1.bf16.xpose.msra.mxu0 %v1322
    %1328 = vmatprep.subr.bf16.mxu0 0
    %1329 = vmatpush1.bf16.xpose.msra.mxu0 0
    %1330 = vmatprep.subr.bf16.mxu0 0
    %1331 = vmatpush1.bf16.xpose.msra.mxu0 0
    %1332 = vmatprep.subr.bf16.mxu0 0
    %1333 = vmatpush1.bf16.xpose.msra.mxu0 0
    %1334 = vmatprep.subr.bf16.mxu0 0
    %1335 = vmatpush1.bf16.xpose.msra.mxu0 0
    %1336 = vmatprep.subr.bf16.mxu0 0
    %1337 = vmatpush1.bf16.xpose.msra.mxu0 0
    %1338 = vmatprep.subr.bf16.mxu0 0
    %1339 = vmatpush1.bf16.xpose.msra.mxu0 0
    %1340 = vmatprep.subr.bf16.mxu0 0
    %1341 = vmatpush1.bf16.xpose.msra.mxu0 0
    %1342 = vmatprep.subr.bf16.mxu0 0
    %1343 = vmatpush1.bf16.xpose.msra.mxu0 0
    %1344 = vmatprep.subr.bf16.mxu0 0
    %1345 = vmatpush1.bf16.xpose.msra.mxu0 0
    %1346 = vmatprep.subr.bf16.mxu0 0
    %1347 = vmatpush1.bf16.xpose.msra.mxu0 0
    %1348 = vmatprep.subr.bf16.mxu0 0
    %1349 = vmatpush1.bf16.xpose.msra.mxu0 0
    %1350 = vmatprep.subr.bf16.mxu0 0
    %1351 = vmatpush1.bf16.xpose.msra.mxu0 0
    %1352 = vmatprep.subr.bf16.mxu0 0
    %1353 = vmatpush1.bf16.xpose.msra.mxu0 0
    %1354 = vmatprep.subr.bf16.mxu0 0
    %1355 = vmatpush1.bf16.xpose.msra.mxu0 0
    %1356 = vmatprep.mubr.bf16.mxu0 0
    %1357 = vmatmul.mubr.bf16.gmra.mrb[0].mxu0 %v1316
    %v1358 = vpop.f32.mrb[0].mxu0
    %v1359 = vadd.f32 0.0, %v1358
    %v1360 = vpop.f32.mrb[0].mxu0
    %v1361 = vpop.f32.mrb[0].mxu0
    %v1362 = vpop.f32.mrb[0].mxu0
    %1363 = vdwg.mxu0
    %v1364 = vmul.f32 %v1310, 0.35355338
    %v1365 = vmul.f32 %v1359, 0.35355338
    %v1366 = vadd.f32 %v1364, %v88
    %v1367 = vadd.f32 %v1365, %v88
    %v1368 = vsel %vm96, %v1366, -inf
    %1369 = vmax.xlane.f32.xlu0 %v1368
    %v1370 = vpop.xlane.xlu0 %1369
    %v1371 = vsel %vm96, %v1367, -inf
    %1372 = vmax.xlane.f32.xlu0 %v1371
    %v1373 = vpop.xlane.xlu0 %1372
    %v1374 = vsub.f32 %v1366, %v1370
    %v1375 = vsub.f32 %v1367, %v1373
    %v1376 = vmul.f32 %v1374, 1.442695
    %v1377 = vpow.pop %v1376
    %v1378 = vmul.f32 %v1375, 1.442695
    %v1379 = vpow.pop %v1378
    %v1380 = vpack.c.bf16 %v1379, %v1377
    %v1382 = vsel %vm96, %v1380, 0
    %1384 = vmatprep.subr.bf16.mxu0 0
    %1385 = vmatpush1.bf16.msra.mxu0 %v485
    %1386 = vmatprep.subr.bf16.mxu0 0
    %1387 = vmatpush1.bf16.msra.mxu0 %v486
    %1388 = vmatprep.subr.bf16.mxu0 0
    %1389 = vmatpush1.bf16.msra.mxu0 0
    %1390 = vmatprep.subr.bf16.mxu0 0
    %1391 = vmatpush1.bf16.msra.mxu0 0
    %1392 = vmatprep.subr.bf16.mxu0 0
    %1393 = vmatpush1.bf16.msra.mxu0 0
    %1394 = vmatprep.subr.bf16.mxu0 0
    %1395 = vmatpush1.bf16.msra.mxu0 0
    %1396 = vmatprep.subr.bf16.mxu0 0
    %1397 = vmatpush1.bf16.msra.mxu0 0
    %1398 = vmatprep.subr.bf16.mxu0 0
    %1399 = vmatpush1.bf16.msra.mxu0 0
    %1400 = vmatprep.subr.bf16.mxu0 0
    %1401 = vmatpush1.bf16.msra.mxu0 0
    %1402 = vmatprep.subr.bf16.mxu0 0
    %1403 = vmatpush1.bf16.msra.mxu0 0
    %1404 = vmatprep.subr.bf16.mxu0 0
    %1405 = vmatpush1.bf16.msra.mxu0 0
    %1406 = vmatprep.subr.bf16.mxu0 0
    %1407 = vmatpush1.bf16.msra.mxu0 0
    %1408 = vmatprep.subr.bf16.mxu0 0
    %1409 = vmatpush1.bf16.msra.mxu0 0
    %1410 = vmatprep.subr.bf16.mxu0 0
    %1411 = vmatpush1.bf16.msra.mxu0 0
    %1412 = vmatprep.subr.bf16.mxu0 0
    %1413 = vmatpush1.bf16.msra.mxu0 0
    %1414 = vmatprep.subr.bf16.mxu0 0
    %1415 = vmatpush1.bf16.msra.mxu0 0
    %1416 = vmatprep.mubr.bf16.mxu0 0
    %1417 = vmatmul.mubr.bf16.gmra.mrb[0].mxu0 %v1382
    %v1418 = vpop.f32.mrb[0].mxu0
    %v1419 = vadd.f32 0.0, %v1418
    %v1420 = vpop.f32.mrb[0].mxu0
    %v1421 = vpop.f32.mrb[0].mxu0
    %v1422 = vadd.f32 0.0, %v1421
    %v1423 = vpop.f32.mrb[0].mxu0
    %1424 = vdwg.mxu0
    %v1425 = vpack.c.bf16 %v1422, %v1419
    %v1427 = vsel %vm534, %v1425, 0
    %1429 = vmatprep.subr.bf16.mxu0 0
    %1430 = vmatpush1.bf16.msra.mxu0 %v540
    %1431 = vmatprep.subr.bf16.mxu0 0
    %1432 = vmatpush1.bf16.msra.mxu0 0
    %1433 = vmatprep.subr.bf16.mxu0 0
    %1434 = vmatpush1.bf16.msra.mxu0 0
    %1435 = vmatprep.subr.bf16.mxu0 0
    %1436 = vmatpush1.bf16.msra.mxu0 0
    %1437 = vmatprep.subr.bf16.mxu0 0
    %1438 = vmatpush1.bf16.msra.mxu0 0
    %1439 = vmatprep.subr.bf16.mxu0 0
    %1440 = vmatpush1.bf16.msra.mxu0 0
    %1441 = vmatprep.subr.bf16.mxu0 0
    %1442 = vmatpush1.bf16.msra.mxu0 0
    %1443 = vmatprep.subr.bf16.mxu0 0
    %1444 = vmatpush1.bf16.msra.mxu0 0
    %1445 = vmatprep.subr.bf16.mxu0 0
    %1446 = vmatpush1.bf16.msra.mxu0 0
    %1447 = vmatprep.subr.bf16.mxu0 0
    %1448 = vmatpush1.bf16.msra.mxu0 0
    %1449 = vmatprep.subr.bf16.mxu0 0
    %1450 = vmatpush1.bf16.msra.mxu0 0
    %1451 = vmatprep.subr.bf16.mxu0 0
    %1452 = vmatpush1.bf16.msra.mxu0 0
    %1453 = vmatprep.subr.bf16.mxu0 0
    %1454 = vmatpush1.bf16.msra.mxu0 0
    %1455 = vmatprep.subr.bf16.mxu0 0
    %1456 = vmatpush1.bf16.msra.mxu0 0
    %1457 = vmatprep.subr.bf16.mxu0 0
    %1458 = vmatpush1.bf16.msra.mxu0 0
    %1459 = vmatprep.subr.bf16.mxu0 0
    %1460 = vmatpush1.bf16.msra.mxu0 0
    %1461 = vmatprep.mubr.bf16.mxu0 0
    %1462 = vmatmul.mubr.bf16.gmra.mrb[0].mxu0 %v1427
    %v1463 = vpop.f32.mrb[0].mxu0
    %v1464 = vadd.f32 1e-20, %v1463
    %v1465 = vpop.f32.mrb[0].mxu0
    %v1466 = vpop.f32.mrb[0].mxu0
    %v1467 = vadd.f32 1e-20, %v1466
    %v1468 = vpop.f32.mrb[0].mxu0
    %1469 = vdwg.mxu0
    %v1470 = vrcp.pop %v1464
    %v1471 = vrcp.pop %v1467
    %v1472 = vmul.f32 %v1377, %v1470
    %v1473 = vmul.f32 %v1379, %v1471
    %v1474 = vpack.c.bf16 %v1472, %v1472
    %v1475 = vpack.c.bf16 %v1473, %v1473
    %v1477 = vsel %vm96, %v1474, 0
    %1479 = vmatprep.subr.bf16.mxu0 0
    %1480 = vmatpush1.bf16.msra.mxu0 %v1260
    %1481 = vmatprep.subr.bf16.mxu0 0
    %1482 = vmatpush1.bf16.msra.mxu0 %v1261
    %1483 = vmatprep.subr.bf16.mxu0 0
    %1484 = vmatpush1.bf16.msra.mxu0 0
    %1485 = vmatprep.subr.bf16.mxu0 0
    %1486 = vmatpush1.bf16.msra.mxu0 0
    %1487 = vmatprep.subr.bf16.mxu0 0
    %1488 = vmatpush1.bf16.msra.mxu0 0
    %1489 = vmatprep.subr.bf16.mxu0 0
    %1490 = vmatpush1.bf16.msra.mxu0 0
    %1491 = vmatprep.subr.bf16.mxu0 0
    %1492 = vmatpush1.bf16.msra.mxu0 0
    %1493 = vmatprep.subr.bf16.mxu0 0
    %1494 = vmatpush1.bf16.msra.mxu0 0
    %1495 = vmatprep.subr.bf16.mxu0 0
    %1496 = vmatpush1.bf16.msra.mxu0 0
    %1497 = vmatprep.subr.bf16.mxu0 0
    %1498 = vmatpush1.bf16.msra.mxu0 0
    %1499 = vmatprep.subr.bf16.mxu0 0
    %1500 = vmatpush1.bf16.msra.mxu0 0
    %1501 = vmatprep.subr.bf16.mxu0 0
    %1502 = vmatpush1.bf16.msra.mxu0 0
    %1503 = vmatprep.subr.bf16.mxu0 0
    %1504 = vmatpush1.bf16.msra.mxu0 0
    %1505 = vmatprep.subr.bf16.mxu0 0
    %1506 = vmatpush1.bf16.msra.mxu0 0
    %1507 = vmatprep.subr.bf16.mxu0 0
    %1508 = vmatpush1.bf16.msra.mxu0 0
    %1509 = vmatprep.subr.bf16.mxu0 0
    %1510 = vmatpush1.bf16.msra.mxu0 0
    %1511 = vmatprep.mubr.bf16.mxu0 0
    %1512 = vmatmul.mubr.bf16.gmra.mrb[0].mxu0 %v1477
    %v1513 = vpop.f32.mrb[0].mxu0
    %v1514 = vadd.f32 0.0, %v1513
    %v1515 = vpop.f32.mrb[0].mxu0
    %v1516 = vpop.f32.mrb[0].mxu0
    %v1517 = vpop.f32.mrb[0].mxu0
    %1518 = vdwg.mxu0
    %v1520 = vsel %vm96, %v1475, 0
    %1522 = vmatprep.subr.bf16.mxu0 0
    %1523 = vmatpush1.bf16.msra.mxu0 %v1262
    %1524 = vmatprep.subr.bf16.mxu0 0
    %1525 = vmatpush1.bf16.msra.mxu0 %v1263
    %1526 = vmatprep.subr.bf16.mxu0 0
    %1527 = vmatpush1.bf16.msra.mxu0 0
    %1528 = vmatprep.subr.bf16.mxu0 0
    %1529 = vmatpush1.bf16.msra.mxu0 0
    %1530 = vmatprep.subr.bf16.mxu0 0
    %1531 = vmatpush1.bf16.msra.mxu0 0
    %1532 = vmatprep.subr.bf16.mxu0 0
    %1533 = vmatpush1.bf16.msra.mxu0 0
    %1534 = vmatprep.subr.bf16.mxu0 0
    %1535 = vmatpush1.bf16.msra.mxu0 0
    %1536 = vmatprep.subr.bf16.mxu0 0
    %1537 = vmatpush1.bf16.msra.mxu0 0
    %1538 = vmatprep.subr.bf16.mxu0 0
    %1539 = vmatpush1.bf16.msra.mxu0 0
    %1540 = vmatprep.subr.bf16.mxu0 0
    %1541 = vmatpush1.bf16.msra.mxu0 0
    %1542 = vmatprep.subr.bf16.mxu0 0
    %1543 = vmatpush1.bf16.msra.mxu0 0
    %1544 = vmatprep.subr.bf16.mxu0 0
    %1545 = vmatpush1.bf16.msra.mxu0 0
    %1546 = vmatprep.subr.bf16.mxu0 0
    %1547 = vmatpush1.bf16.msra.mxu0 0
    %1548 = vmatprep.subr.bf16.mxu0 0
    %1549 = vmatpush1.bf16.msra.mxu0 0
    %1550 = vmatprep.subr.bf16.mxu0 0
    %1551 = vmatpush1.bf16.msra.mxu0 0
    %1552 = vmatprep.subr.bf16.mxu0 0
    %1553 = vmatpush1.bf16.msra.mxu0 0
    %1554 = vmatprep.mubr.bf16.mxu0 0
    %1555 = vmatmul.mubr.bf16.gmra.mrb[0].mxu0 %v1520
    %v1556 = vpop.f32.mrb[0].mxu0
    %v1557 = vadd.f32 0.0, %v1556
    %v1558 = vpop.f32.mrb[0].mxu0
    %v1559 = vpop.f32.mrb[0].mxu0
    %v1560 = vpop.f32.mrb[0].mxu0
    %1561 = vdwg.mxu0
    %s1562 = scalar_lea.vmem %s14, 16
    %v1563 = vld [vmem:[%s1562] sm:$0xf]
    %v1564 = vld [vmem:[%s1562 + $0x4] sm:$0xf]
    %v1565 = vld [vmem:[%s1562 + $0x8] sm:$0xf]
    %v1566 = vld [vmem:[%s1562 + $0xc] sm:$0xf]
    %v1567 = vpack.c.bf16 %v1557, %v1514
    %v1572 = vunpack.c.l.b16 %v1563
    %v1573 = vunpack.c.l.b16 %v1564
    %v1574 = vunpack.c.l.b16 %v1565
    %v1575 = vunpack.c.l.b16 %v1566
    %v1576 = vpack.c.b16 %v1573, %v1572
    %v1577 = vpack.c.b16 %v1575, %v1574
    %v1581 = vsel %vm96, %v1567, 0
    %1583 = vmatprep.subr.bf16.mxu0 0
    %1584 = vmatpush1.bf16.msra.mxu0 %v1576
    %1585 = vmatprep.subr.bf16.mxu0 0
    %1586 = vmatpush1.bf16.msra.mxu0 %v1577
    %1587 = vmatprep.subr.bf16.mxu0 0
    %1588 = vmatpush1.bf16.msra.mxu0 0
    %1589 = vmatprep.subr.bf16.mxu0 0
    %1590 = vmatpush1.bf16.msra.mxu0 0
    %1591 = vmatprep.subr.bf16.mxu0 0
    %1592 = vmatpush1.bf16.msra.mxu0 0
    %1593 = vmatprep.subr.bf16.mxu0 0
    %1594 = vmatpush1.bf16.msra.mxu0 0
    %1595 = vmatprep.subr.bf16.mxu0 0
    %1596 = vmatpush1.bf16.msra.mxu0 0
    %1597 = vmatprep.subr.bf16.mxu0 0
    %1598 = vmatpush1.bf16.msra.mxu0 0
    %1599 = vmatprep.subr.bf16.mxu0 0
    %1600 = vmatpush1.bf16.msra.mxu0 0
    %1601 = vmatprep.subr.bf16.mxu0 0
    %1602 = vmatpush1.bf16.msra.mxu0 0
    %1603 = vmatprep.subr.bf16.mxu0 0
    %1604 = vmatpush1.bf16.msra.mxu0 0
    %1605 = vmatprep.subr.bf16.mxu0 0
    %1606 = vmatpush1.bf16.msra.mxu0 0
    %1607 = vmatprep.subr.bf16.mxu0 0
    %1608 = vmatpush1.bf16.msra.mxu0 0
    %1609 = vmatprep.subr.bf16.mxu0 0
    %1610 = vmatpush1.bf16.msra.mxu0 0
    %1611 = vmatprep.subr.bf16.mxu0 0
    %1612 = vmatpush1.bf16.msra.mxu0 0
    %1613 = vmatprep.subr.bf16.mxu0 0
    %1614 = vmatpush1.bf16.msra.mxu0 0
    %1615 = vmatprep.mubr.bf16.mxu0 0
    %1616 = vmatmul.mubr.bf16.gmra.mrb[0].mxu0 %v1581
    %v1617 = vpop.f32.mrb[0].mxu0
    %v1618 = vadd.f32 0.0, %v1617
    %v1619 = vpop.f32.mrb[0].mxu0
    %v1620 = vpop.f32.mrb[0].mxu0
    %v1621 = vadd.f32 0.0, %v1620
    %v1622 = vpop.f32.mrb[0].mxu0
    %1623 = vdwg.mxu0
    %v1624 = vadd.f32 %v990, %v1618
    %v1625 = vadd.f32 %v991, %v1621
    %s1626 = scalar_lea.vmem %s15, 1
    %v1627 = vld [vmem:[%s1626] sm:$0x1]
    %v1629 = vlaneseq
    %v1630 = vshrl.u32 %v1629, 7
    %v1631 = vsub.s32 0, %v1630
    %v1632 = vrot.slane %v1627, %v1631
    %v1634 = vadd.f32 %v1624, %v1632
    %v1635 = vadd.f32 %v1625, %v1632
    %s1636 = scalar_lea.vmem %s16, 1
    %v1637 = vld [vmem:[%s1636] sm:$0x1]
    %s1638 = scalar_lea.vmem %s17, 1
    %v1639 = vld [vmem:[%s1638] sm:$0x1]
    %v1640 = vsel %vm96, %v1634, 0.0
    %1641 = vadd.xlane.f32.xlu0 %v1640
    %v1642 = vpop.xlane.xlu0 %1641
    %v1643 = vsel %vm96, %v1635, 0.0
    %1644 = vadd.xlane.f32.xlu0 %v1643
    %v1645 = vpop.xlane.xlu0 %1644
    %v1646 = vmul.f32 %v1642, %v103
    %v1647 = vmul.f32 %v1645, %v103
    %v1648 = vsub.f32 %v1634, %v1646
    %v1649 = vsub.f32 %v1635, %v1647
    %v1650 = vmul.f32 %v1648, %v1648
    %v1651 = vmul.f32 %v1649, %v1649
    %v1652 = vsel %vm96, %v1650, 0.0
    %1653 = vadd.xlane.f32.xlu0 %v1652
    %v1654 = vpop.xlane.xlu0 %1653
    %v1655 = vsel %vm96, %v1651, 0.0
    %1656 = vadd.xlane.f32.xlu0 %v1655
    %v1657 = vpop.xlane.xlu0 %1656
    %v1658 = vmul.f32 %v1654, %v103
    %v1659 = vmul.f32 %v1657, %v103
    %v1660 = vadd.f32 %v1658, 1e-05
    %v1661 = vadd.f32 %v1659, 1e-05
    %v1662 = vrsqrt.pop %v1660
    %v1663 = vrsqrt.pop %v1661
    %v1664 = vmul.f32 %v1648, %v1662
    %v1665 = vmul.f32 %v1649, %v1663
    %v1667 = vlaneseq
    %v1668 = vshrl.u32 %v1667, 7
    %v1669 = vsub.s32 0, %v1668
    %v1670 = vrot.slane %v1637, %v1669
    %v1672 = vmul.f32 %v1664, %v1670
    %v1673 = vmul.f32 %v1665, %v1670
    %v1675 = vlaneseq
    %v1676 = vshrl.u32 %v1675, 7
    %v1677 = vsub.s32 0, %v1676
    %v1678 = vrot.slane %v1639, %v1677
    %v1680 = vadd.f32 %v1672, %v1678
    %v1681 = vadd.f32 %v1673, %v1678
    %s1682 = scalar_lea.vmem %s18, 16
    %v1683 = vld [vmem:[%s1682] sm:$0xf]
    %v1684 = vld [vmem:[%s1682 + $0x4] sm:$0xf]
    %v1685 = vld [vmem:[%s1682 + $0x8] sm:$0xf]
    %v1686 = vld [vmem:[%s1682 + $0xc] sm:$0xf]
    %v1687 = vpack.c.bf16 %v1681, %v1680
    %s1688 = scalar_lea.vmem %s19, 1
    %v1689 = vld [vmem:[%s1688] sm:$0x1]
    %v1691 = vlaneseq
    %v1692 = vshrl.u32 %v1691, 7
    %v1693 = vsub.s32 0, %v1692
    %v1694 = vrot.slane %v1689, %v1693
    %v1700 = vunpack.c.l.b16 %v1683
    %v1701 = vunpack.c.l.b16 %v1684
    %v1702 = vunpack.c.l.b16 %v1685
    %v1703 = vunpack.c.l.b16 %v1686
    %v1704 = vpack.c.b16 %v1701, %v1700
    %v1705 = vpack.c.b16 %v1703, %v1702
    %v1709 = vsel %vm96, %v1687, 0
    %1711 = vmatprep.subr.bf16.mxu0 0
    %1712 = vmatpush1.bf16.msra.mxu0 %v1704
    %1713 = vmatprep.subr.bf16.mxu0 0
    %1714 = vmatpush1.bf16.msra.mxu0 %v1705
    %1715 = vmatprep.subr.bf16.mxu0 0
    %1716 = vmatpush1.bf16.msra.mxu0 0
    %1717 = vmatprep.subr.bf16.mxu0 0
    %1718 = vmatpush1.bf16.msra.mxu0 0
    %1719 = vmatprep.subr.bf16.mxu0 0
    %1720 = vmatpush1.bf16.msra.mxu0 0
    %1721 = vmatprep.subr.bf16.mxu0 0
    %1722 = vmatpush1.bf16.msra.mxu0 0
    %1723 = vmatprep.subr.bf16.mxu0 0
    %1724 = vmatpush1.bf16.msra.mxu0 0
    %1725 = vmatprep.subr.bf16.mxu0 0
    %1726 = vmatpush1.bf16.msra.mxu0 0
    %1727 = vmatprep.subr.bf16.mxu0 0
    %1728 = vmatpush1.bf16.msra.mxu0 0
    %1729 = vmatprep.subr.bf16.mxu0 0
    %1730 = vmatpush1.bf16.msra.mxu0 0
    %1731 = vmatprep.subr.bf16.mxu0 0
    %1732 = vmatpush1.bf16.msra.mxu0 0
    %1733 = vmatprep.subr.bf16.mxu0 0
    %1734 = vmatpush1.bf16.msra.mxu0 0
    %1735 = vmatprep.subr.bf16.mxu0 0
    %1736 = vmatpush1.bf16.msra.mxu0 0
    %1737 = vmatprep.subr.bf16.mxu0 0
    %1738 = vmatpush1.bf16.msra.mxu0 0
    %1739 = vmatprep.subr.bf16.mxu0 0
    %1740 = vmatpush1.bf16.msra.mxu0 0
    %1741 = vmatprep.subr.bf16.mxu0 0
    %1742 = vmatpush1.bf16.msra.mxu0 0
    %1743 = vmatprep.mubr.bf16.mxu0 0
    %1744 = vmatmul.mubr.bf16.gmra.mrb[0].mxu0 %v1709
    %v1745 = vpop.f32.mrb[0].mxu0
    %v1746 = vadd.f32 %v1694, %v1745
    %v1747 = vpop.f32.mrb[0].mxu0
    %v1748 = vpop.f32.mrb[0].mxu0
    %v1749 = vadd.f32 %v1694, %v1748
    %v1750 = vpop.f32.mrb[0].mxu0
    %1751 = vdwg.mxu0
    %v1752 = vmul.f32 %v1746, 1.702
    %v1753 = vmul.f32 %v1749, 1.702
    %v1754 = vxor.u32 %v1752, 2147483648
    %v1755 = vxor.u32 %v1753, 2147483648
    %v1756 = vmul.f32 %v1754, 1.442695
    %v1757 = vpow.pop %v1756
    %v1758 = vmul.f32 %v1755, 1.442695
    %v1759 = vpow.pop %v1758
    %v1760 = vadd.f32 %v1757, 1.0
    %v1761 = vadd.f32 %v1759, 1.0
    %v1762 = vrcp.pop %v1760
    %v1763 = vmul.f32 1.0, %v1762
    %v1764 = vrcp.pop %v1761
    %v1765 = vmul.f32 1.0, %v1764
    %v1766 = vmul.f32 %v1746, %v1763
    %v1767 = vmul.f32 %v1749, %v1765
    %s1768 = scalar_lea.vmem %s20, 64
    %v1769 = vld [vmem:[%s1768] sm:$0xf]
    %v1770 = vld [vmem:[%s1768 + $0x4] sm:$0xf]
    %v1771 = vld [vmem:[%s1768 + $0x8] sm:$0xf]
    %v1772 = vld [vmem:[%s1768 + $0xc] sm:$0xf]
    %v1773 = vld [vmem:[%s1768 + $0x10] sm:$0xf]
    %v1774 = vld [vmem:[%s1768 + $0x14] sm:$0xf]
    %v1775 = vld [vmem:[%s1768 + $0x18] sm:$0xf]
    %v1776 = vld [vmem:[%s1768 + $0x1c] sm:$0xf]
    %v1777 = vld [vmem:[%s1768 + $0x20] sm:$0xf]
    %v1778 = vld [vmem:[%s1768 + $0x24] sm:$0xf]
    %v1779 = vld [vmem:[%s1768 + $0x28] sm:$0xf]
    %v1780 = vld [vmem:[%s1768 + $0x2c] sm:$0xf]
    %v1781 = vld [vmem:[%s1768 + $0x30] sm:$0xf]
    %v1782 = vld [vmem:[%s1768 + $0x34] sm:$0xf]
    %v1783 = vld [vmem:[%s1768 + $0x38] sm:$0xf]
    %v1784 = vld [vmem:[%s1768 + $0x3c] sm:$0xf]
    %v1785 = vpack.c.bf16 %v1767, %v1766
    %v1802 = vunpack.c.l.b16 %v1769
    %v1803 = vunpack.c.l.b16 %v1770
    %v1804 = vunpack.c.l.b16 %v1771
    %v1805 = vunpack.c.l.b16 %v1772
    %v1806 = vunpack.c.l.b16 %v1773
    %v1807 = vunpack.c.l.b16 %v1774
    %v1808 = vunpack.c.l.b16 %v1775
    %v1809 = vunpack.c.l.b16 %v1776
    %v1810 = vunpack.c.l.b16 %v1777
    %v1811 = vunpack.c.l.b16 %v1778
    %v1812 = vunpack.c.l.b16 %v1779
    %v1813 = vunpack.c.l.b16 %v1780
    %v1814 = vunpack.c.l.b16 %v1781
    %v1815 = vunpack.c.l.b16 %v1782
    %v1816 = vunpack.c.l.b16 %v1783
    %v1817 = vunpack.c.l.b16 %v1784
    %v1818 = vpack.c.b16 %v1803, %v1802
    %v1819 = vpack.c.b16 %v1805, %v1804
    %v1820 = vpack.c.b16 %v1807, %v1806
    %v1821 = vpack.c.b16 %v1809, %v1808
    %v1822 = vpack.c.b16 %v1811, %v1810
    %v1823 = vpack.c.b16 %v1813, %v1812
    %v1824 = vpack.c.b16 %v1815, %v1814
    %v1825 = vpack.c.b16 %v1817, %v1816
    %1834 = vmatprep.subr.bf16.mxu0 0
    %1835 = vmatpush1.bf16.msra.mxu0 %v1818
    %1836 = vmatprep.subr.bf16.mxu0 0
    %1837 = vmatpush1.bf16.msra.mxu0 %v1819
    %1838 = vmatprep.subr.bf16.mxu0 0
    %1839 = vmatpush1.bf16.msra.mxu0 %v1820
    %1840 = vmatprep.subr.bf16.mxu0 0
    %1841 = vmatpush1.bf16.msra.mxu0 %v1821
    %1842 = vmatprep.subr.bf16.mxu0 0
    %1843 = vmatpush1.bf16.msra.mxu0 %v1822
    %1844 = vmatprep.subr.bf16.mxu0 0
    %1845 = vmatpush1.bf16.msra.mxu0 %v1823
    %1846 = vmatprep.subr.bf16.mxu0 0
    %1847 = vmatpush1.bf16.msra.mxu0 %v1824
    %1848 = vmatprep.subr.bf16.mxu0 0
    %1849 = vmatpush1.bf16.msra.mxu0 %v1825
    %1850 = vmatprep.subr.bf16.mxu0 0
    %1851 = vmatpush1.bf16.msra.mxu0 0
    %1852 = vmatprep.subr.bf16.mxu0 0
    %1853 = vmatpush1.bf16.msra.mxu0 0
    %1854 = vmatprep.subr.bf16.mxu0 0
    %1855 = vmatpush1.bf16.msra.mxu0 0
    %1856 = vmatprep.subr.bf16.mxu0 0
    %1857 = vmatpush1.bf16.msra.mxu0 0
    %1858 = vmatprep.subr.bf16.mxu0 0
    %1859 = vmatpush1.bf16.msra.mxu0 0
    %1860 = vmatprep.subr.bf16.mxu0 0
    %1861 = vmatpush1.bf16.msra.mxu0 0
    %1862 = vmatprep.subr.bf16.mxu0 0
    %1863 = vmatpush1.bf16.msra.mxu0 0
    %1864 = vmatprep.subr.bf16.mxu0 0
    %1865 = vmatpush1.bf16.msra.mxu0 0
    %1866 = vmatprep.mubr.bf16.mxu0 0
    %1867 = vmatmul.mubr.bf16.gmra.mrb[0].mxu0 %v1785
    %v1868 = vpop.f32.mrb[0].mxu0
    %v1869 = vadd.f32 0.0, %v1868
    %v1870 = vpop.f32.mrb[0].mxu0
    %v1871 = vpop.f32.mrb[0].mxu0
    %v1872 = vadd.f32 0.0, %v1871
    %v1873 = vpop.f32.mrb[0].mxu0
    %1874 = vdwg.mxu0
    %v1875 = vadd.f32 %v1634, %v1869
    %v1876 = vadd.f32 %v1635, %v1872
    %s1877 = scalar_lea.vmem %s21, 1
    %v1878 = vld [vmem:[%s1877] sm:$0x1]
    %v1880 = vlaneseq
    %v1881 = vshrl.u32 %v1880, 7
    %v1882 = vsub.s32 0, %v1881
    %v1883 = vrot.slane %v1878, %v1882
    %v1885 = vadd.f32 %v1875, %v1883
    %v1886 = vadd.f32 %v1876, %v1883
    %v1887 = vld [vmem:[%s22] sm:$0x1]
    %v1888 = vld [vmem:[%s23] sm:$0x1]
    %v1889 = vsel %vm96, %v1885, 0.0
    %1890 = vadd.xlane.f32.xlu0 %v1889
    %v1891 = vpop.xlane.xlu0 %1890
    %v1892 = vsel %vm96, %v1886, 0.0
    %1893 = vadd.xlane.f32.xlu0 %v1892
    %v1894 = vpop.xlane.xlu0 %1893
    %v1895 = vmul.f32 %v1891, %v103
    %v1896 = vmul.f32 %v1894, %v103
    %v1897 = vsub.f32 %v1885, %v1895
    %v1898 = vsub.f32 %v1886, %v1896
    %v1899 = vmul.f32 %v1897, %v1897
    %v1900 = vmul.f32 %v1898, %v1898
    %v1901 = vsel %vm96, %v1899, 0.0
    %1902 = vadd.xlane.f32.xlu0 %v1901
    %v1903 = vpop.xlane.xlu0 %1902
    %v1904 = vsel %vm96, %v1900, 0.0
    %1905 = vadd.xlane.f32.xlu0 %v1904
    %v1906 = vpop.xlane.xlu0 %1905
    %v1907 = vmul.f32 %v1903, %v103
    %v1908 = vmul.f32 %v1906, %v103
    %v1909 = vadd.f32 %v1907, 1e-05
    %v1910 = vadd.f32 %v1908, 1e-05
    %v1911 = vrsqrt.pop %v1909
    %v1912 = vrsqrt.pop %v1910
    %v1913 = vmul.f32 %v1897, %v1911
    %v1914 = vmul.f32 %v1898, %v1912
    %v1916 = vlaneseq
    %v1917 = vshrl.u32 %v1916, 7
    %v1918 = vsub.s32 0, %v1917
    %v1919 = vrot.slane %v1887, %v1918
    %v1921 = vmul.f32 %v1913, %v1919
    %v1922 = vmul.f32 %v1914, %v1919
    %v1924 = vlaneseq
    %v1925 = vshrl.u32 %v1924, 7
    %v1926 = vsub.s32 0, %v1925
    %v1927 = vrot.slane %v1888, %v1926
    %v1929 = vadd.f32 %v1921, %v1927
    %v1930 = vadd.f32 %v1922, %v1927
    %v1931 = vld [vmem:[%s1] sm:$0x3]
    %vm1932 = vcmask 130048
    %v1934 = vsel %vm1932, %v1931, 0
    %1936 = vmatprep.subr.mxu0 0.0
    %1937 = vmatpush1.msra.mxu0 %v1929
    %1938 = vmatprep.subr.mxu0 0.0
    %1939 = vmatpush1.msra.mxu0 %v1930
    %1940 = vmatprep.subr.mxu0 0.0
    %1941 = vmatpush1.msra.mxu0 0.0
    %1942 = vmatprep.subr.mxu0 0.0
    %1943 = vmatpush1.msra.mxu0 0.0
    %1944 = vmatprep.subr.mxu0 0.0
    %1945 = vmatpush1.msra.mxu0 0.0
    %1946 = vmatprep.subr.mxu0 0.0
    %1947 = vmatpush1.msra.mxu0 0.0
    %1948 = vmatprep.subr.mxu0 0.0
    %1949 = vmatpush1.msra.mxu0 0.0
    %1950 = vmatprep.subr.mxu0 0.0
    %1951 = vmatpush1.msra.mxu0 0.0
    %1952 = vmatprep.subr.mxu0 0.0
    %1953 = vmatpush1.msra.mxu0 0.0
    %1954 = vmatprep.subr.mxu0 0.0
    %1955 = vmatpush1.msra.mxu0 0.0
    %1956 = vmatprep.subr.mxu0 0.0
    %1957 = vmatpush1.msra.mxu0 0.0
    %1958 = vmatprep.subr.mxu0 0.0
    %1959 = vmatpush1.msra.mxu0 0.0
    %1960 = vmatprep.subr.mxu0 0.0
    %1961 = vmatpush1.msra.mxu0 0.0
    %1962 = vmatprep.subr.mxu0 0.0
    %1963 = vmatpush1.msra.mxu0 0.0
    %1964 = vmatprep.subr.mxu0 0.0
    %1965 = vmatpush1.msra.mxu0 0.0
    %1966 = vmatprep.subr.mxu0 0.0
    %1967 = vmatpush1.msra.mxu0 0.0
    %1968 = vmatprep.subr.mxu0 0.0
    %1969 = vmatpush1.msra.mxu0 0.0
    %1970 = vmatprep.subr.mxu0 0.0
    %1971 = vmatpush1.msra.mxu0 0.0
    %1972 = vmatprep.subr.mxu0 0.0
    %1973 = vmatpush1.msra.mxu0 0.0
    %1974 = vmatprep.subr.mxu0 0.0
    %1975 = vmatpush1.msra.mxu0 0.0
    %1976 = vmatprep.subr.mxu0 0.0
    %1977 = vmatpush1.msra.mxu0 0.0
    %1978 = vmatprep.subr.mxu0 0.0
    %1979 = vmatpush1.msra.mxu0 0.0
    %1980 = vmatprep.subr.mxu0 0.0
    %1981 = vmatpush1.msra.mxu0 0.0
    %1982 = vmatprep.subr.mxu0 0.0
    %1983 = vmatpush1.msra.mxu0 0.0
    %1984 = vmatprep.subr.mxu0 0.0
    %1985 = vmatpush1.msra.mxu0 0.0
    %1986 = vmatprep.subr.mxu0 0.0
    %1987 = vmatpush1.msra.mxu0 0.0
    %1988 = vmatprep.subr.mxu0 0.0
    %1989 = vmatpush1.msra.mxu0 0.0
    %1990 = vmatprep.subr.mxu0 0.0
    %1991 = vmatpush1.msra.mxu0 0.0
    %1992 = vmatprep.subr.mxu0 0.0
    %1993 = vmatpush1.msra.mxu0 0.0
    %1994 = vmatprep.subr.mxu0 0.0
    %1995 = vmatpush1.msra.mxu0 0.0
    %1996 = vmatprep.subr.mxu0 0.0
    %1997 = vmatpush1.msra.mxu0 0.0
    %1998 = vmatprep.subr.mxu0 0.0
    %1999 = vmatpush1.msra.mxu0 0.0
    %2000 = vmatprep.mubr.f32.mxu0 0.0
    %2001 = vmatmul.mubr.f32.gmra.mrb[0].mxu0 %v1934
    %v2002 = vpop.f32.mrb[0].mxu0
    %v2003 = vadd.f32 0.0, %v2002
    %v2004 = vpop.f32.mrb[0].mxu0
    %2005 = vdwg.mxu0
    %v2006 = vld [vmem:[%s24] sm:$0xff]
    %v2007 = vld [vmem:[%s24 + $0x8] sm:$0xff]
    %v2008 = vld [vmem:[%s24 + $0x10] sm:$0xff]
    %v2009 = vld [vmem:[%s24 + $0x18] sm:$0xff]
    %v2011 = vsel %vm96, %v2003, 0
    %2013 = vmatprep.subr.mxu0 0.0
    %2014 = vmatpush1.msra.mxu0 %v2006
    %2015 = vmatprep.subr.mxu0 0.0
    %2016 = vmatpush1.msra.mxu0 %v2007
    %2017 = vmatprep.subr.mxu0 0.0
    %2018 = vmatpush1.msra.mxu0 %v2008
    %2019 = vmatprep.subr.mxu0 0.0
    %2020 = vmatpush1.msra.mxu0 %v2009
    %2021 = vmatprep.subr.mxu0 0.0
    %2022 = vmatpush1.msra.mxu0 0.0
    %2023 = vmatprep.subr.mxu0 0.0
    %2024 = vmatpush1.msra.mxu0 0.0
    %2025 = vmatprep.subr.mxu0 0.0
    %2026 = vmatpush1.msra.mxu0 0.0
    %2027 = vmatprep.subr.mxu0 0.0
    %2028 = vmatpush1.msra.mxu0 0.0
    %2029 = vmatprep.subr.mxu0 0.0
    %2030 = vmatpush1.msra.mxu0 0.0
    %2031 = vmatprep.subr.mxu0 0.0
    %2032 = vmatpush1.msra.mxu0 0.0
    %2033 = vmatprep.subr.mxu0 0.0
    %2034 = vmatpush1.msra.mxu0 0.0
    %2035 = vmatprep.subr.mxu0 0.0
    %2036 = vmatpush1.msra.mxu0 0.0
    %2037 = vmatprep.subr.mxu0 0.0
    %2038 = vmatpush1.msra.mxu0 0.0
    %2039 = vmatprep.subr.mxu0 0.0
    %2040 = vmatpush1.msra.mxu0 0.0
    %2041 = vmatprep.subr.mxu0 0.0
    %2042 = vmatpush1.msra.mxu0 0.0
    %2043 = vmatprep.subr.mxu0 0.0
    %2044 = vmatpush1.msra.mxu0 0.0
    %2045 = vmatprep.subr.mxu0 0.0
    %2046 = vmatpush1.msra.mxu0 0.0
    %2047 = vmatprep.subr.mxu0 0.0
    %2048 = vmatpush1.msra.mxu0 0.0
    %2049 = vmatprep.subr.mxu0 0.0
    %2050 = vmatpush1.msra.mxu0 0.0
    %2051 = vmatprep.subr.mxu0 0.0
    %2052 = vmatpush1.msra.mxu0 0.0
    %2053 = vmatprep.subr.mxu0 0.0
    %2054 = vmatpush1.msra.mxu0 0.0
    %2055 = vmatprep.subr.mxu0 0.0
    %2056 = vmatpush1.msra.mxu0 0.0
    %2057 = vmatprep.subr.mxu0 0.0
    %2058 = vmatpush1.msra.mxu0 0.0
    %2059 = vmatprep.subr.mxu0 0.0
    %2060 = vmatpush1.msra.mxu0 0.0
    %2061 = vmatprep.subr.mxu0 0.0
    %2062 = vmatpush1.msra.mxu0 0.0
    %2063 = vmatprep.subr.mxu0 0.0
    %2064 = vmatpush1.msra.mxu0 0.0
    %2065 = vmatprep.subr.mxu0 0.0
    %2066 = vmatpush1.msra.mxu0 0.0
    %2067 = vmatprep.subr.mxu0 0.0
    %2068 = vmatpush1.msra.mxu0 0.0
    %2069 = vmatprep.subr.mxu0 0.0
    %2070 = vmatpush1.msra.mxu0 0.0
    %2071 = vmatprep.subr.mxu0 0.0
    %2072 = vmatpush1.msra.mxu0 0.0
    %2073 = vmatprep.subr.mxu0 0.0
    %2074 = vmatpush1.msra.mxu0 0.0
    %2075 = vmatprep.subr.mxu0 0.0
    %2076 = vmatpush1.msra.mxu0 0.0
    %2077 = vmatprep.mubr.f32.mxu0 0.0
    %2078 = vmatmul.mubr.f32.gmra.mrb[0].mxu0 %v2011
    %v2079 = vpop.f32.mrb[0].mxu0
    %v2080 = vadd.f32 0.0, %v2079
    %v2081 = vpop.f32.mrb[0].mxu0
    %2082 = vdwg.mxu0
    %2083 = vst [vmem:[#allocation2] sm:$0x3] %v2080
    // Predicated region
    $region102: #{text_encoder.1} parent=1 // pred_check
      _
    $region103: #{text_encoder.1} parent=1 // pred_check_branch
      %2085 = sbr.rel (0) target = $region105
    $region104: #{text_encoder.1} parent=1 // pred_region
      %s2087 = ssub.s32 32, 32
      %2088 = vsyncadd [#allocation3], %s2087
      %s2090 = sshll.u32 [#allocation2], 4
      %s2091 = int_to_ptr.vmem [resolvable:$true] %s2090
      %2093 = dma.vmem_to_hbm [thread:$0]  %s2091, 32, %s25, [#allocation3]
    $region105: #{text_encoder.1} parent=1 // pred_fallthru
      _
    // Predicated region
    $region106: #{text_encoder.1} parent=1 // pred_check
      _
    $region107: #{text_encoder.1} parent=1 // pred_check_branch
      %2095 = sbr.rel (0) target = $region109
    $region108: #{text_encoder.1} parent=1 // pred_region
      %2096 = dma.done [#allocation3], 32
    $region109: #{text_encoder.1} parent=1 // pred_fallthru
      _
    %2097 = vsyncpa [#allocation3], 1

</llo_original>
